<compile_context>
chip_gen: v7x
topology: tpu7x:2x2x1
jax: 0.10.0
libtpu: 0.0.40
codegen_flags: <defaults>
</compile_context>

<pallas_src>
import functools
import math

import jax
import jax.numpy as jnp
from jax import lax
from jax.experimental import pallas as pl
from jax.experimental.pallas import tpu as pltpu


_MM_DTYPE = jnp.bfloat16          # MXU operand dtype; accumulation stays f32.
_VMEM_LIMIT = 32 * 1024 * 1024    # scoped-VMEM limit, safe on v5e/v6e/v7x (64 MiB VMEM)
_PRELU_ALPHA = 0.25               # compile-time constant (see TODO above)
_LN_EPS = 1e-5

# Canonical ordering of the packed weight operands passed to the kernel.
_PARAM_ORDER = (
    "ew0", "eb0", "ew1", "eb1",                      # encoder
    "rw0", "rb0", "rw1", "rb1",                      # rel_pos_layer
    "wqkv", "bqkv", "wout", "bout", "attg", "attb",  # attention (stacked over layers)
    "pw0", "pb0", "pw1", "pb1", "pffg", "pffb",      # PFF (stacked over layers)
    "fing", "finb",                                  # final LayerNorm
    "dw0", "db0", "dw1", "db1",                      # decoder
)


def _dot(a, b):
    """(M,K) @ (K,N) on the MXU: bf16 operands, f32 accumulation."""
    return jnp.dot(a.astype(_MM_DTYPE), b.astype(_MM_DTYPE),
                   preferred_element_type=jnp.float32)


def _dot_t(a, b):
    """(M,K) x (N,K) -> (M,N): contract dim 1 of both operands (no in-kernel .T)."""
    return lax.dot_general(a.astype(_MM_DTYPE), b.astype(_MM_DTYPE),
                           dimension_numbers=(((1,), (1,)), ((), ())),
                           preferred_element_type=jnp.float32)


def _prelu(y):
    return jnp.where(y >= 0.0, y, _PRELU_ALPHA * y)


# ----------------------------------------------------------------------------
# Single fused whole-forward kernel (one grid step per batch element).
# ----------------------------------------------------------------------------
def _fwd_kernel(x_ref,
                ew0, eb0, ew1, eb1,
                rw0, rb0, rw1, rb1,
                wqkv, bqkv, wout, bout, attg, attb,
                pw0, pb0, pw1, pb1, pffg, pffb,
                fing, finb,
                dw0, db0, dw1, db1,
                o_ref,
                *, n_layer, n_head, d_head, pre_lnorm):
    x = x_ref[0]                                     # (T, d_in) f32
    t = x.shape[0]
    npos = 2 * t - 1
    hd = n_head * d_head
    scale = 1.0 / math.sqrt(d_head)

    def ln(v, g, b):
        mu = jnp.mean(v, axis=-1, keepdims=True)
        var = jnp.mean((v - mu) ** 2, axis=-1, keepdims=True)
        return (v - mu) * lax.rsqrt(var + _LN_EPS) * g + b

    # ---- encoder: Linear -> PReLU -> (Drop) -> Linear -> PReLU -> (Drop) ----
    h = _prelu(_dot(x, ew0[...]) + eb0[...])
    h = _prelu(_dot(h, ew1[...]) + eb1[...])         # (T, D)

    # ---- rel_pos_layer on pos_idx = arange(-T+1, T); computed in-kernel ----
    pos = (lax.broadcasted_iota(jnp.int32, (npos, 1), 0).astype(jnp.float32)
           - float(t - 1))                           # (2T-1, 1)
    rh = _prelu(pos * rw0[...] + rb0[...])           # K==1 layer: VPU outer product
    r = _dot(rh, rw1[...]) + rb1[...]                # (2T-1, Dh) f32

    # ---- O(1)-op relative shift helper (hoisted out of all loops) ----
    # sel[i, j, m] = 1 iff m == j - i + T - 1, so that
    #   bd[i, j] = sum_m qr[i, m] * sel[i, j, m] = q_i . R[pos = j - i].
    ii = lax.broadcasted_iota(jnp.int32, (t, t, npos), 0)
    jj = lax.broadcasted_iota(jnp.int32, (t, t, npos), 1)
    mm = lax.broadcasted_iota(jnp.int32, (t, t, npos), 2)
    sel = (mm == (jj - ii + (t - 1))).astype(jnp.float32)

    # ---- transformer layers (static unroll; n_layer is small) ----
    hx = h
    for l in range(n_layer):
        # relative multi-head attention
        a_in = ln(hx, attg[l], attb[l]) if pre_lnorm else hx
        qkv = _dot(a_in, wqkv[l]) + bqkv[l]          # (T, 3*H*Dh)
        heads = []
        for hh in range(n_head):                     # static unroll; H is small
            q = qkv[:, hh * d_head:(hh + 1) * d_head]
            k = qkv[:, hd + hh * d_head: hd + (hh + 1) * d_head]
            v = qkv[:, 2 * hd + hh * d_head: 2 * hd + (hh + 1) * d_head]
            ac = _dot_t(q, k)                        # (T, T) content term
            qr = _dot_t(q, r)                        # (T, 2T-1) rel-pos term
            bd = jnp.sum(qr.reshape(t, 1, npos) * sel, axis=-1)   # (T, T) skew
            s = (ac + bd) * scale
            s = s - jnp.max(s, axis=-1, keepdims=True)
            p = jnp.exp(s)
            p = p * pl.reciprocal(jnp.sum(p, axis=-1, keepdims=True), approx=True)
            heads.append(_dot(p, v))                 # (T, Dh)
        o = jnp.concatenate(heads, axis=1)           # (T, H*Dh)
        att = _dot(o, wout[l]) + bout[l]
        hx = hx + att                                # residual
        if not pre_lnorm:
            hx = ln(hx, attg[l], attb[l])

        # position-wise feed-forward
        f_in = ln(hx, pffg[l], pffb[l]) if pre_lnorm else hx
        ff = jnp.maximum(_dot(f_in, pw0[l]) + pb0[l], 0.0)
        ff = _dot(ff, pw1[l]) + pb1[l]
        hx = hx + ff                                 # residual
        if not pre_lnorm:
            hx = ln(hx, pffg[l], pffb[l])

    # ---- final LayerNorm (pre_lnorm only) + decoder ----
    if pre_lnorm:
        hx = ln(hx, fing[...], finb[...])
    y = _prelu(_dot(hx, dw0[...]) + db0[...])
    y = _dot(y, dw1[...]) + db1[...]
    o_ref[0] = y.astype(o_ref.dtype)


# ----------------------------------------------------------------------------
# Wrapper
# ----------------------------------------------------------------------------
def detail_transformer_forward(packed, cfg, x):
    b, t, d_in = x.shape
    d_out = cfg["d_out"]
    kernel = functools.partial(
        _fwd_kernel, n_layer=cfg["n_layer"], n_head=cfg["n_head"],
        d_head=cfg["d_head"], pre_lnorm=cfg["pre_lnorm"])

    weights = [packed[name] for name in _PARAM_ORDER]

    def const_spec(a):
        nd = a.ndim
        return pl.BlockSpec(a.shape, lambda i, nd=nd: (0,) * nd)

    return pl.pallas_call(
        kernel,
        out_shape=jax.ShapeDtypeStruct((b, t, d_out), jnp.float32),
        grid=(b,),
        in_specs=[pl.BlockSpec((1, t, d_in), lambda i: (i, 0, 0))]
                 + [const_spec(w) for w in weights],
        out_specs=pl.BlockSpec((1, t, d_out), lambda i: (i, 0, 0)),
        compiler_params=pltpu.CompilerParams(
            dimension_semantics=("parallel",),
            vmem_limit_bytes=_VMEM_LIMIT),
    )(x, *weights)


# ----------------------------------------------------------------------------
# Parameter init (deterministic, mirrors nn.Linear default init)
# ----------------------------------------------------------------------------
def init_params(key, cfg):
    keys = iter(jax.random.split(key, 128))

    def dense(fan_in, fan_out, bias=True):
        bound = 1.0 / math.sqrt(fan_in)
        w = jax.random.uniform(next(keys), (fan_in, fan_out), jnp.float32, -bound, bound)
        if bias:
            b = jax.random.uniform(next(keys), (fan_out,), jnp.float32, -bound, bound)
        else:
            _ = next(keys)
            b = jnp.zeros((fan_out,), jnp.float32)
        return {"w": w, "b": b}

    d_model, n_head, d_head = cfg["d_model"], cfg["n_head"], cfg["d_head"]
    params = {
        "enc0": dense(cfg["d_encoder_in"], cfg["d_encoder_h"]),
        "enc1": dense(cfg["d_encoder_h"], d_model),
        "rel0": dense(1, d_head),
        "rel1": dense(d_head, d_head),
        "dec0": dense(d_model, cfg["d_decoder_h"]),
        "dec1": dense(cfg["d_decoder_h"], cfg["d_out"]),
        "final_ln_g": jnp.ones((d_model,), jnp.float32),
        "final_ln_b": jnp.zeros((d_model,), jnp.float32),
        "layers": [],
    }
    for _ in range(cfg["n_layer"]):
        params["layers"].append({
            "att_qkv": dense(d_model, 3 * n_head * d_head, bias=cfg["atten_bias"]),
            "att_out": dense(n_head * d_head, d_model, bias=cfg["atten_bias"]),
            "att_ln_g": jnp.ones((d_model,), jnp.float32),
            "att_ln_b": jnp.zeros((d_model,), jnp.float32),
            "pff0": dense(d_model, cfg["d_pff_inner"]),
            "pff1": dense(cfg["d_pff_inner"], d_model),
            "pff_ln_g": jnp.ones((d_model,), jnp.float32),
            "pff_ln_b": jnp.zeros((d_model,), jnp.float32),
        })
    return params


def pack_params(params, cfg):
    """Host-side prep: stack per-layer weights, pre-cast MXU matrices to bf16,
    reshape biases / LN params to (1, n) rows."""
    lyr = params["layers"]

    def bf(a):
        return jnp.asarray(a, _MM_DTYPE)

    def r1(a):
        return jnp.asarray(a, jnp.float32).reshape(1, -1)

    return {
        "ew0": bf(params["enc0"]["w"]), "eb0": r1(params["enc0"]["b"]),
        "ew1": bf(params["enc1"]["w"]), "eb1": r1(params["enc1"]["b"]),
        "rw0": r1(params["rel0"]["w"]),            # (1, Dh) f32: used on the VPU
        "rb0": r1(params["rel0"]["b"]),
        "rw1": bf(params["rel1"]["w"]), "rb1": r1(params["rel1"]["b"]),
        "wqkv": jnp.stack([bf(p["att_qkv"]["w"]) for p in lyr]),
        "bqkv": jnp.stack([r1(p["att_qkv"]["b"]) for p in lyr]),
        "wout": jnp.stack([bf(p["att_out"]["w"]) for p in lyr]),
        "bout": jnp.stack([r1(p["att_out"]["b"]) for p in lyr]),
        "attg": jnp.stack([r1(p["att_ln_g"]) for p in lyr]),
        "attb": jnp.stack([r1(p["att_ln_b"]) for p in lyr]),
        "pw0": jnp.stack([bf(p["pff0"]["w"]) for p in lyr]),
        "pb0": jnp.stack([r1(p["pff0"]["b"]) for p in lyr]),
        "pw1": jnp.stack([bf(p["pff1"]["w"]) for p in lyr]),
        "pb1": jnp.stack([r1(p["pff1"]["b"]) for p in lyr]),
        "pffg": jnp.stack([r1(p["pff_ln_g"]) for p in lyr]),
        "pffb": jnp.stack([r1(p["pff_ln_b"]) for p in lyr]),
        "fing": r1(params["final_ln_g"]), "finb": r1(params["final_ln_b"]),
        "dw0": bf(params["dec0"]["w"]), "db0": r1(params["dec0"]["b"]),
        "dw1": bf(params["dec1"]["w"]), "db1": r1(params["dec1"]["b"]),
    }


if __name__ == "__main__":
    cfg = {
        "d_mask": 4,                          # unused in forward
        "constrained_slices": [(0, 4)],       # unused in forward
        "dropout": 0.1,
        "pre_lnorm": True,
        "n_layer": 2,
        "d_encoder_in": 16,
        "d_encoder_h": 32,
        "d_model": 32,
        "d_decoder_h": 32,
        "d_out": 16,
        "n_head": 2,
        "d_head": 16,
        "d_pff_inner": 64,
        "atten_bias": False,
    }
    key = jax.random.PRNGKey(0)
    kp, kx = jax.random.split(key)
    params = init_params(kp, cfg)
    packed = pack_params(params, cfg)         # host-side stacking + bf16 cast
    x = jax.random.normal(kx, (2, 8, cfg["d_encoder_in"]), dtype=jnp.float32)

    fwd = jax.jit(lambda p, xx: detail_transformer_forward(p, cfg, xx))
    y = jax.block_until_ready(fwd(packed, x))
    assert y.shape == (2, 8, cfg["d_out"]), y.shape
    assert bool(jnp.all(jnp.isfinite(y)))
    print("KERNEL_OK")
</pallas_src>

<mosaic_0001>
module attributes {stable_mosaic.version = 11 : i64} {
  func.func @_fwd_kernel(%arg0: i32, %arg1: memref<1x8x16xf32, #tpu.memory_space<vmem>>, %arg2: memref<16x32xbf16, #tpu.memory_space<vmem>>, %arg3: memref<1x32xf32, #tpu.memory_space<vmem>>, %arg4: memref<32x32xbf16, #tpu.memory_space<vmem>>, %arg5: memref<1x32xf32, #tpu.memory_space<vmem>>, %arg6: memref<1x16xf32, #tpu.memory_space<vmem>>, %arg7: memref<1x16xf32, #tpu.memory_space<vmem>>, %arg8: memref<16x16xbf16, #tpu.memory_space<vmem>>, %arg9: memref<1x16xf32, #tpu.memory_space<vmem>>, %arg10: memref<2x32x96xbf16, #tpu.memory_space<vmem>>, %arg11: memref<2x1x96xf32, #tpu.memory_space<vmem>>, %arg12: memref<2x32x32xbf16, #tpu.memory_space<vmem>>, %arg13: memref<2x1x32xf32, #tpu.memory_space<vmem>>, %arg14: memref<2x1x32xf32, #tpu.memory_space<vmem>>, %arg15: memref<2x1x32xf32, #tpu.memory_space<vmem>>, %arg16: memref<2x32x64xbf16, #tpu.memory_space<vmem>>, %arg17: memref<2x1x64xf32, #tpu.memory_space<vmem>>, %arg18: memref<2x64x32xbf16, #tpu.memory_space<vmem>>, %arg19: memref<2x1x32xf32, #tpu.memory_space<vmem>>, %arg20: memref<2x1x32xf32, #tpu.memory_space<vmem>>, %arg21: memref<2x1x32xf32, #tpu.memory_space<vmem>>, %arg22: memref<1x32xf32, #tpu.memory_space<vmem>>, %arg23: memref<1x32xf32, #tpu.memory_space<vmem>>, %arg24: memref<32x32xbf16, #tpu.memory_space<vmem>>, %arg25: memref<1x32xf32, #tpu.memory_space<vmem>>, %arg26: memref<32x16xbf16, #tpu.memory_space<vmem>>, %arg27: memref<1x16xf32, #tpu.memory_space<vmem>>, %arg28: memref<1x8x16xf32, #tpu.memory_space<vmem>>) attributes {dimension_semantics = [#tpu.dimension_semantics<parallel>], iteration_bounds = array<i64: 2>, scalar_prefetch = 0 : i64, scratch_operands = 0 : i64, tpu.core_type = #tpu.core_type<tc>, window_params = [{transform_indices = @transform_0, window_bounds = array<i64: 1, 8, 16>}, {pipeline_mode = #tpu.pipeline_mode<synchronous>, transform_indices = @transform_1, window_bounds = array<i64: 16, 32>}, {pipeline_mode = #tpu.pipeline_mode<synchronous>, transform_indices = @transform_2, window_bounds = array<i64: 1, 32>}, {pipeline_mode = #tpu.pipeline_mode<synchronous>, transform_indices = @transform_3, window_bounds = array<i64: 32, 32>}, {pipeline_mode = #tpu.pipeline_mode<synchronous>, transform_indices = @transform_4, window_bounds = array<i64: 1, 32>}, {pipeline_mode = #tpu.pipeline_mode<synchronous>, transform_indices = @transform_5, window_bounds = array<i64: 1, 16>}, {pipeline_mode = #tpu.pipeline_mode<synchronous>, transform_indices = @transform_6, window_bounds = array<i64: 1, 16>}, {pipeline_mode = #tpu.pipeline_mode<synchronous>, transform_indices = @transform_7, window_bounds = array<i64: 16, 16>}, {pipeline_mode = #tpu.pipeline_mode<synchronous>, transform_indices = @transform_8, window_bounds = array<i64: 1, 16>}, {pipeline_mode = #tpu.pipeline_mode<synchronous>, transform_indices = @transform_9, window_bounds = array<i64: 2, 32, 96>}, {pipeline_mode = #tpu.pipeline_mode<synchronous>, transform_indices = @transform_10, window_bounds = array<i64: 2, 1, 96>}, {pipeline_mode = #tpu.pipeline_mode<synchronous>, transform_indices = @transform_11, window_bounds = array<i64: 2, 32, 32>}, {pipeline_mode = #tpu.pipeline_mode<synchronous>, transform_indices = @transform_12, window_bounds = array<i64: 2, 1, 32>}, {pipeline_mode = #tpu.pipeline_mode<synchronous>, transform_indices = @transform_13, window_bounds = array<i64: 2, 1, 32>}, {pipeline_mode = #tpu.pipeline_mode<synchronous>, transform_indices = @transform_14, window_bounds = array<i64: 2, 1, 32>}, {pipeline_mode = #tpu.pipeline_mode<synchronous>, transform_indices = @transform_15, window_bounds = array<i64: 2, 32, 64>}, {pipeline_mode = #tpu.pipeline_mode<synchronous>, transform_indices = @transform_16, window_bounds = array<i64: 2, 1, 64>}, {pipeline_mode = #tpu.pipeline_mode<synchronous>, transform_indices = @transform_17, window_bounds = array<i64: 2, 64, 32>}, {pipeline_mode = #tpu.pipeline_mode<synchronous>, transform_indices = @transform_18, window_bounds = array<i64: 2, 1, 32>}, {pipeline_mode = #tpu.pipeline_mode<synchronous>, transform_indices = @transform_19, window_bounds = array<i64: 2, 1, 32>}, {pipeline_mode = #tpu.pipeline_mode<synchronous>, transform_indices = @transform_20, window_bounds = array<i64: 2, 1, 32>}, {pipeline_mode = #tpu.pipeline_mode<synchronous>, transform_indices = @transform_21, window_bounds = array<i64: 1, 32>}, {pipeline_mode = #tpu.pipeline_mode<synchronous>, transform_indices = @transform_22, window_bounds = array<i64: 1, 32>}, {pipeline_mode = #tpu.pipeline_mode<synchronous>, transform_indices = @transform_23, window_bounds = array<i64: 32, 32>}, {pipeline_mode = #tpu.pipeline_mode<synchronous>, transform_indices = @transform_24, window_bounds = array<i64: 1, 32>}, {pipeline_mode = #tpu.pipeline_mode<synchronous>, transform_indices = @transform_25, window_bounds = array<i64: 32, 16>}, {pipeline_mode = #tpu.pipeline_mode<synchronous>, transform_indices = @transform_26, window_bounds = array<i64: 1, 16>}, {transform_indices = @transform_27, window_bounds = array<i64: 1, 8, 16>}]} {
    %c0 = arith.constant 0 : index
    %c0_0 = arith.constant 0 : index
    %c0_1 = arith.constant 0 : index
    %0 = vector.load %arg1[%c0, %c0_0, %c0_1] : memref<1x8x16xf32, #tpu.memory_space<vmem>>, vector<1x8x16xf32>
    %1 = vector.shape_cast %0 : vector<1x8x16xf32> to vector<8x16xf32>
    %c0_2 = arith.constant 0 : index
    %c0_3 = arith.constant 0 : index
    %2 = vector.load %arg2[%c0_2, %c0_3] : memref<16x32xbf16, #tpu.memory_space<vmem>>, vector<16x32xbf16>
    %3 = arith.truncf %1 : vector<8x16xf32> to vector<8x16xbf16>
    %cst = arith.constant dense<0.000000e+00> : vector<8x32xf32>
    %4 = tpu.matmul %3, %2, %cst {dimension_numbers = #tpu.dot_dimension_numbers<[1], [0], [0], [1], [0, 0, 1, 1], [], []>} : vector<8x16xbf16>, vector<16x32xbf16>, vector<8x32xf32> -> vector<8x32xf32>
    %c0_4 = arith.constant 0 : index
    %c0_5 = arith.constant 0 : index
    %5 = vector.load %arg3[%c0_4, %c0_5] : memref<1x32xf32, #tpu.memory_space<vmem>>, vector<1x32xf32>
    %6 = vector.broadcast %5 : vector<1x32xf32> to vector<8x32xf32>
    %7 = arith.addf %4, %6 : vector<8x32xf32>
    %cst_6 = arith.constant 0.000000e+00 : f32
    %8 = vector.broadcast %cst_6 : f32 to vector<8x32xf32>
    %9 = arith.cmpf oge, %7, %8 : vector<8x32xf32>
    %cst_7 = arith.constant 2.500000e-01 : f32
    %10 = vector.broadcast %cst_7 : f32 to vector<8x32xf32>
    %11 = arith.mulf %10, %7 : vector<8x32xf32>
    %12 = arith.select %9, %7, %11 : vector<8x32xi1>, vector<8x32xf32>
    %c0_8 = arith.constant 0 : index
    %c0_9 = arith.constant 0 : index
    %13 = vector.load %arg4[%c0_8, %c0_9] : memref<32x32xbf16, #tpu.memory_space<vmem>>, vector<32x32xbf16>
    %14 = arith.truncf %12 : vector<8x32xf32> to vector<8x32xbf16>
    %cst_10 = arith.constant dense<0.000000e+00> : vector<8x32xf32>
    %15 = tpu.matmul %14, %13, %cst_10 {dimension_numbers = #tpu.dot_dimension_numbers<[1], [0], [0], [1], [0, 0, 1, 1], [], []>} : vector<8x32xbf16>, vector<32x32xbf16>, vector<8x32xf32> -> vector<8x32xf32>
    %c0_11 = arith.constant 0 : index
    %c0_12 = arith.constant 0 : index
    %16 = vector.load %arg5[%c0_11, %c0_12] : memref<1x32xf32, #tpu.memory_space<vmem>>, vector<1x32xf32>
    %17 = vector.broadcast %16 : vector<1x32xf32> to vector<8x32xf32>
    %18 = arith.addf %15, %17 : vector<8x32xf32>
    %cst_13 = arith.constant 0.000000e+00 : f32
    %19 = vector.broadcast %cst_13 : f32 to vector<8x32xf32>
    %20 = arith.cmpf oge, %18, %19 : vector<8x32xf32>
    %cst_14 = arith.constant 2.500000e-01 : f32
    %21 = vector.broadcast %cst_14 : f32 to vector<8x32xf32>
    %22 = arith.mulf %21, %18 : vector<8x32xf32>
    %23 = arith.select %20, %18, %22 : vector<8x32xi1>, vector<8x32xf32>
    %24 = tpu.iota {dimensions = array<i32: 0>} : vector<15x1xi32>
    %25 = arith.sitofp %24 : vector<15x1xi32> to vector<15x1xf32>
    %cst_15 = arith.constant 7.000000e+00 : f32
    %26 = vector.broadcast %cst_15 : f32 to vector<15x1xf32>
    %27 = arith.subf %25, %26 : vector<15x1xf32>
    %c0_16 = arith.constant 0 : index
    %c0_17 = arith.constant 0 : index
    %28 = vector.load %arg6[%c0_16, %c0_17] : memref<1x16xf32, #tpu.memory_space<vmem>>, vector<1x16xf32>
    %29 = vector.broadcast %27 : vector<15x1xf32> to vector<15x16xf32>
    %30 = vector.broadcast %28 : vector<1x16xf32> to vector<15x16xf32>
    %31 = arith.mulf %29, %30 : vector<15x16xf32>
    %c0_18 = arith.constant 0 : index
    %c0_19 = arith.constant 0 : index
    %32 = vector.load %arg7[%c0_18, %c0_19] : memref<1x16xf32, #tpu.memory_space<vmem>>, vector<1x16xf32>
    %33 = vector.broadcast %32 : vector<1x16xf32> to vector<15x16xf32>
    %34 = arith.addf %31, %33 : vector<15x16xf32>
    %cst_20 = arith.constant 0.000000e+00 : f32
    %35 = vector.broadcast %cst_20 : f32 to vector<15x16xf32>
    %36 = arith.cmpf oge, %34, %35 : vector<15x16xf32>
    %cst_21 = arith.constant 2.500000e-01 : f32
    %37 = vector.broadcast %cst_21 : f32 to vector<15x16xf32>
    %38 = arith.mulf %37, %34 : vector<15x16xf32>
    %39 = arith.select %36, %34, %38 : vector<15x16xi1>, vector<15x16xf32>
    %c0_22 = arith.constant 0 : index
    %c0_23 = arith.constant 0 : index
    %40 = vector.load %arg8[%c0_22, %c0_23] : memref<16x16xbf16, #tpu.memory_space<vmem>>, vector<16x16xbf16>
    %41 = arith.truncf %39 : vector<15x16xf32> to vector<15x16xbf16>
    %cst_24 = arith.constant dense<0.000000e+00> : vector<15x16xf32>
    %42 = tpu.matmul %41, %40, %cst_24 {dimension_numbers = #tpu.dot_dimension_numbers<[1], [0], [0], [1], [0, 0, 1, 1], [], []>} : vector<15x16xbf16>, vector<16x16xbf16>, vector<15x16xf32> -> vector<15x16xf32>
    %c0_25 = arith.constant 0 : index
    %c0_26 = arith.constant 0 : index
    %43 = vector.load %arg9[%c0_25, %c0_26] : memref<1x16xf32, #tpu.memory_space<vmem>>, vector<1x16xf32>
    %44 = vector.broadcast %43 : vector<1x16xf32> to vector<15x16xf32>
    %45 = arith.addf %42, %44 : vector<15x16xf32>
    %46 = tpu.iota {dimensions = array<i32: 0>} : vector<8x8x15xi32>
    %47 = tpu.iota {dimensions = array<i32: 1>} : vector<8x8x15xi32>
    %48 = tpu.iota {dimensions = array<i32: 2>} : vector<8x8x15xi32>
    %49 = arith.subi %47, %46 : vector<8x8x15xi32>
    %c7_i32 = arith.constant 7 : i32
    %50 = vector.broadcast %c7_i32 : i32 to vector<8x8x15xi32>
    %51 = arith.addi %49, %50 : vector<8x8x15xi32>
    %52 = arith.cmpi eq, %48, %51 : vector<8x8x15xi32>
    %53 = arith.extui %52 : vector<8x8x15xi1> to vector<8x8x15xi32>
    %54 = arith.sitofp %53 : vector<8x8x15xi32> to vector<8x8x15xf32>
    %c0_27 = arith.constant 0 : index
    %c0_28 = arith.constant 0 : index
    %c0_29 = arith.constant 0 : index
    %55 = vector.load %arg14[%c0_27, %c0_28, %c0_29] : memref<2x1x32xf32, #tpu.memory_space<vmem>>, vector<1x1x32xf32>
    %56 = vector.shape_cast %55 : vector<1x1x32xf32> to vector<1x32xf32>
    %c0_30 = arith.constant 0 : index
    %c0_31 = arith.constant 0 : index
    %c0_32 = arith.constant 0 : index
    %57 = vector.load %arg15[%c0_30, %c0_31, %c0_32] : memref<2x1x32xf32, #tpu.memory_space<vmem>>, vector<1x1x32xf32>
    %58 = vector.shape_cast %57 : vector<1x1x32xf32> to vector<1x32xf32>
    %cst_33 = arith.constant dense<0.000000e+00> : vector<8xf32>
    %59 = vector.multi_reduction <add>, %23, %cst_33 [1] : vector<8x32xf32> to vector<8xf32>
    %60 = vector.shape_cast %59 : vector<8xf32> to vector<8x1xf32>
    %cst_34 = arith.constant 3.200000e+01 : f32
    %61 = vector.broadcast %cst_34 : f32 to vector<8x1xf32>
    %62 = arith.divf %60, %61 : vector<8x1xf32>
    %63 = vector.broadcast %62 : vector<8x1xf32> to vector<8x32xf32>
    %64 = arith.subf %23, %63 : vector<8x32xf32>
    %65 = arith.mulf %64, %64 : vector<8x32xf32>
    %cst_35 = arith.constant dense<0.000000e+00> : vector<8xf32>
    %66 = vector.multi_reduction <add>, %65, %cst_35 [1] : vector<8x32xf32> to vector<8xf32>
    %67 = vector.shape_cast %66 : vector<8xf32> to vector<8x1xf32>
    %cst_36 = arith.constant 3.200000e+01 : f32
    %68 = vector.broadcast %cst_36 : f32 to vector<8x1xf32>
    %69 = arith.divf %67, %68 : vector<8x1xf32>
    %70 = vector.broadcast %62 : vector<8x1xf32> to vector<8x32xf32>
    %71 = arith.subf %23, %70 : vector<8x32xf32>
    %cst_37 = arith.constant 9.99999974E-6 : f32
    %72 = vector.broadcast %cst_37 : f32 to vector<8x1xf32>
    %73 = arith.addf %69, %72 : vector<8x1xf32>
    %74 = math.rsqrt %73 : vector<8x1xf32>
    %75 = vector.broadcast %74 : vector<8x1xf32> to vector<8x32xf32>
    %76 = arith.mulf %71, %75 : vector<8x32xf32>
    %77 = vector.broadcast %56 : vector<1x32xf32> to vector<8x32xf32>
    %78 = arith.mulf %76, %77 : vector<8x32xf32>
    %79 = vector.broadcast %58 : vector<1x32xf32> to vector<8x32xf32>
    %80 = arith.addf %78, %79 : vector<8x32xf32>
    %c0_38 = arith.constant 0 : index
    %c0_39 = arith.constant 0 : index
    %c0_40 = arith.constant 0 : index
    %81 = vector.load %arg10[%c0_38, %c0_39, %c0_40] : memref<2x32x96xbf16, #tpu.memory_space<vmem>>, vector<1x32x96xbf16>
    %82 = vector.shape_cast %81 : vector<1x32x96xbf16> to vector<32x96xbf16>
    %83 = arith.truncf %80 : vector<8x32xf32> to vector<8x32xbf16>
    %cst_41 = arith.constant dense<0.000000e+00> : vector<8x96xf32>
    %84 = tpu.matmul %83, %82, %cst_41 {dimension_numbers = #tpu.dot_dimension_numbers<[1], [0], [0], [1], [0, 0, 1, 1], [], []>} : vector<8x32xbf16>, vector<32x96xbf16>, vector<8x96xf32> -> vector<8x96xf32>
    %c0_42 = arith.constant 0 : index
    %c0_43 = arith.constant 0 : index
    %c0_44 = arith.constant 0 : index
    %85 = vector.load %arg11[%c0_42, %c0_43, %c0_44] : memref<2x1x96xf32, #tpu.memory_space<vmem>>, vector<1x1x96xf32>
    %86 = vector.shape_cast %85 : vector<1x1x96xf32> to vector<1x96xf32>
    %87 = vector.broadcast %86 : vector<1x96xf32> to vector<8x96xf32>
    %88 = arith.addf %84, %87 : vector<8x96xf32>
    %89 = vector.extract_strided_slice %88 {offsets = [0, 0], sizes = [8, 16], strides = [1, 1]} : vector<8x96xf32> to vector<8x16xf32>
    %90 = vector.extract_strided_slice %88 {offsets = [0, 32], sizes = [8, 16], strides = [1, 1]} : vector<8x96xf32> to vector<8x16xf32>
    %91 = vector.extract_strided_slice %88 {offsets = [0, 64], sizes = [8, 16], strides = [1, 1]} : vector<8x96xf32> to vector<8x16xf32>
    %92 = arith.truncf %89 : vector<8x16xf32> to vector<8x16xbf16>
    %93 = arith.truncf %90 : vector<8x16xf32> to vector<8x16xbf16>
    %cst_45 = arith.constant dense<0.000000e+00> : vector<8x8xf32>
    %94 = tpu.matmul %92, %93, %cst_45 {dimension_numbers = #tpu.dot_dimension_numbers<[1], [1], [0], [0], [0, 0, 1, 0], [], []>} : vector<8x16xbf16>, vector<8x16xbf16>, vector<8x8xf32> -> vector<8x8xf32>
    %95 = arith.truncf %89 : vector<8x16xf32> to vector<8x16xbf16>
    %96 = arith.truncf %45 : vector<15x16xf32> to vector<15x16xbf16>
    %cst_46 = arith.constant dense<0.000000e+00> : vector<8x15xf32>
    %97 = tpu.matmul %95, %96, %cst_46 {dimension_numbers = #tpu.dot_dimension_numbers<[1], [1], [0], [0], [0, 0, 1, 0], [], []>} : vector<8x16xbf16>, vector<15x16xbf16>, vector<8x15xf32> -> vector<8x15xf32>
    %98 = vector.shape_cast %97 : vector<8x15xf32> to vector<8x1x15xf32>
    %99 = vector.broadcast %98 : vector<8x1x15xf32> to vector<8x8x15xf32>
    %100 = arith.mulf %99, %54 : vector<8x8x15xf32>
    %cst_47 = arith.constant dense<0.000000e+00> : vector<8x8xf32>
    %101 = vector.multi_reduction <add>, %100, %cst_47 [2] : vector<8x8x15xf32> to vector<8x8xf32>
    %102 = arith.addf %94, %101 : vector<8x8xf32>
    %cst_48 = arith.constant 2.500000e-01 : f32
    %103 = vector.broadcast %cst_48 : f32 to vector<8x8xf32>
    %104 = arith.mulf %102, %103 : vector<8x8xf32>
    %cst_49 = arith.constant dense<0xFF800000> : vector<8xf32>
    %105 = vector.multi_reduction <maximumf>, %104, %cst_49 [1] : vector<8x8xf32> to vector<8xf32>
    %106 = vector.shape_cast %105 : vector<8xf32> to vector<8x1xf32>
    %107 = vector.broadcast %106 : vector<8x1xf32> to vector<8x8xf32>
    %108 = arith.subf %104, %107 : vector<8x8xf32>
    %109 = math.exp %108 : vector<8x8xf32>
    %cst_50 = arith.constant dense<0.000000e+00> : vector<8xf32>
    %110 = vector.multi_reduction <add>, %109, %cst_50 [1] : vector<8x8xf32> to vector<8xf32>
    %111 = vector.shape_cast %110 : vector<8xf32> to vector<8x1xf32>
    %112 = tpu.reciprocal %111 {approx = true} : vector<8x1xf32> -> vector<8x1xf32>
    %113 = vector.broadcast %112 : vector<8x1xf32> to vector<8x8xf32>
    %114 = arith.mulf %109, %113 : vector<8x8xf32>
    %115 = arith.truncf %114 : vector<8x8xf32> to vector<8x8xbf16>
    %116 = arith.truncf %91 : vector<8x16xf32> to vector<8x16xbf16>
    %cst_51 = arith.constant dense<0.000000e+00> : vector<8x16xf32>
    %117 = tpu.matmul %115, %116, %cst_51 {dimension_numbers = #tpu.dot_dimension_numbers<[1], [0], [0], [1], [0, 0, 1, 1], [], []>} : vector<8x8xbf16>, vector<8x16xbf16>, vector<8x16xf32> -> vector<8x16xf32>
    %118 = vector.extract_strided_slice %88 {offsets = [0, 16], sizes = [8, 16], strides = [1, 1]} : vector<8x96xf32> to vector<8x16xf32>
    %119 = vector.extract_strided_slice %88 {offsets = [0, 48], sizes = [8, 16], strides = [1, 1]} : vector<8x96xf32> to vector<8x16xf32>
    %120 = vector.extract_strided_slice %88 {offsets = [0, 80], sizes = [8, 16], strides = [1, 1]} : vector<8x96xf32> to vector<8x16xf32>
    %121 = arith.truncf %118 : vector<8x16xf32> to vector<8x16xbf16>
    %122 = arith.truncf %119 : vector<8x16xf32> to vector<8x16xbf16>
    %cst_52 = arith.constant dense<0.000000e+00> : vector<8x8xf32>
    %123 = tpu.matmul %121, %122, %cst_52 {dimension_numbers = #tpu.dot_dimension_numbers<[1], [1], [0], [0], [0, 0, 1, 0], [], []>} : vector<8x16xbf16>, vector<8x16xbf16>, vector<8x8xf32> -> vector<8x8xf32>
    %124 = arith.truncf %118 : vector<8x16xf32> to vector<8x16xbf16>
    %125 = arith.truncf %45 : vector<15x16xf32> to vector<15x16xbf16>
    %cst_53 = arith.constant dense<0.000000e+00> : vector<8x15xf32>
    %126 = tpu.matmul %124, %125, %cst_53 {dimension_numbers = #tpu.dot_dimension_numbers<[1], [1], [0], [0], [0, 0, 1, 0], [], []>} : vector<8x16xbf16>, vector<15x16xbf16>, vector<8x15xf32> -> vector<8x15xf32>
    %127 = vector.shape_cast %126 : vector<8x15xf32> to vector<8x1x15xf32>
    %128 = vector.broadcast %127 : vector<8x1x15xf32> to vector<8x8x15xf32>
    %129 = arith.mulf %128, %54 : vector<8x8x15xf32>
    %cst_54 = arith.constant dense<0.000000e+00> : vector<8x8xf32>
    %130 = vector.multi_reduction <add>, %129, %cst_54 [2] : vector<8x8x15xf32> to vector<8x8xf32>
    %131 = arith.addf %123, %130 : vector<8x8xf32>
    %cst_55 = arith.constant 2.500000e-01 : f32
    %132 = vector.broadcast %cst_55 : f32 to vector<8x8xf32>
    %133 = arith.mulf %131, %132 : vector<8x8xf32>
    %cst_56 = arith.constant dense<0xFF800000> : vector<8xf32>
    %134 = vector.multi_reduction <maximumf>, %133, %cst_56 [1] : vector<8x8xf32> to vector<8xf32>
    %135 = vector.shape_cast %134 : vector<8xf32> to vector<8x1xf32>
    %136 = vector.broadcast %135 : vector<8x1xf32> to vector<8x8xf32>
    %137 = arith.subf %133, %136 : vector<8x8xf32>
    %138 = math.exp %137 : vector<8x8xf32>
    %cst_57 = arith.constant dense<0.000000e+00> : vector<8xf32>
    %139 = vector.multi_reduction <add>, %138, %cst_57 [1] : vector<8x8xf32> to vector<8xf32>
    %140 = vector.shape_cast %139 : vector<8xf32> to vector<8x1xf32>
    %141 = tpu.reciprocal %140 {approx = true} : vector<8x1xf32> -> vector<8x1xf32>
    %142 = vector.broadcast %141 : vector<8x1xf32> to vector<8x8xf32>
    %143 = arith.mulf %138, %142 : vector<8x8xf32>
    %144 = arith.truncf %143 : vector<8x8xf32> to vector<8x8xbf16>
    %145 = arith.truncf %120 : vector<8x16xf32> to vector<8x16xbf16>
    %cst_58 = arith.constant dense<0.000000e+00> : vector<8x16xf32>
    %146 = tpu.matmul %144, %145, %cst_58 {dimension_numbers = #tpu.dot_dimension_numbers<[1], [0], [0], [1], [0, 0, 1, 1], [], []>} : vector<8x8xbf16>, vector<8x16xbf16>, vector<8x16xf32> -> vector<8x16xf32>
    %147 = tpu.concatenate %117, %146 in 1 : vector<8x16xf32>, vector<8x16xf32> -> vector<8x32xf32>
    %c0_59 = arith.constant 0 : index
    %c0_60 = arith.constant 0 : index
    %c0_61 = arith.constant 0 : index
    %148 = vector.load %arg12[%c0_59, %c0_60, %c0_61] : memref<2x32x32xbf16, #tpu.memory_space<vmem>>, vector<1x32x32xbf16>
    %149 = vector.shape_cast %148 : vector<1x32x32xbf16> to vector<32x32xbf16>
    %150 = arith.truncf %147 : vector<8x32xf32> to vector<8x32xbf16>
    %cst_62 = arith.constant dense<0.000000e+00> : vector<8x32xf32>
    %151 = tpu.matmul %150, %149, %cst_62 {dimension_numbers = #tpu.dot_dimension_numbers<[1], [0], [0], [1], [0, 0, 1, 1], [], []>} : vector<8x32xbf16>, vector<32x32xbf16>, vector<8x32xf32> -> vector<8x32xf32>
    %c0_63 = arith.constant 0 : index
    %c0_64 = arith.constant 0 : index
    %c0_65 = arith.constant 0 : index
    %152 = vector.load %arg13[%c0_63, %c0_64, %c0_65] : memref<2x1x32xf32, #tpu.memory_space<vmem>>, vector<1x1x32xf32>
    %153 = vector.shape_cast %152 : vector<1x1x32xf32> to vector<1x32xf32>
    %154 = vector.broadcast %153 : vector<1x32xf32> to vector<8x32xf32>
    %155 = arith.addf %151, %154 : vector<8x32xf32>
    %156 = arith.addf %23, %155 : vector<8x32xf32>
    %c0_66 = arith.constant 0 : index
    %c0_67 = arith.constant 0 : index
    %c0_68 = arith.constant 0 : index
    %157 = vector.load %arg20[%c0_66, %c0_67, %c0_68] : memref<2x1x32xf32, #tpu.memory_space<vmem>>, vector<1x1x32xf32>
    %158 = vector.shape_cast %157 : vector<1x1x32xf32> to vector<1x32xf32>
    %c0_69 = arith.constant 0 : index
    %c0_70 = arith.constant 0 : index
    %c0_71 = arith.constant 0 : index
    %159 = vector.load %arg21[%c0_69, %c0_70, %c0_71] : memref<2x1x32xf32, #tpu.memory_space<vmem>>, vector<1x1x32xf32>
    %160 = vector.shape_cast %159 : vector<1x1x32xf32> to vector<1x32xf32>
    %cst_72 = arith.constant dense<0.000000e+00> : vector<8xf32>
    %161 = vector.multi_reduction <add>, %156, %cst_72 [1] : vector<8x32xf32> to vector<8xf32>
    %162 = vector.shape_cast %161 : vector<8xf32> to vector<8x1xf32>
    %cst_73 = arith.constant 3.200000e+01 : f32
    %163 = vector.broadcast %cst_73 : f32 to vector<8x1xf32>
    %164 = arith.divf %162, %163 : vector<8x1xf32>
    %165 = vector.broadcast %164 : vector<8x1xf32> to vector<8x32xf32>
    %166 = arith.subf %156, %165 : vector<8x32xf32>
    %167 = arith.mulf %166, %166 : vector<8x32xf32>
    %cst_74 = arith.constant dense<0.000000e+00> : vector<8xf32>
    %168 = vector.multi_reduction <add>, %167, %cst_74 [1] : vector<8x32xf32> to vector<8xf32>
    %169 = vector.shape_cast %168 : vector<8xf32> to vector<8x1xf32>
    %cst_75 = arith.constant 3.200000e+01 : f32
    %170 = vector.broadcast %cst_75 : f32 to vector<8x1xf32>
    %171 = arith.divf %169, %170 : vector<8x1xf32>
    %172 = vector.broadcast %164 : vector<8x1xf32> to vector<8x32xf32>
    %173 = arith.subf %156, %172 : vector<8x32xf32>
    %cst_76 = arith.constant 9.99999974E-6 : f32
    %174 = vector.broadcast %cst_76 : f32 to vector<8x1xf32>
    %175 = arith.addf %171, %174 : vector<8x1xf32>
    %176 = math.rsqrt %175 : vector<8x1xf32>
    %177 = vector.broadcast %176 : vector<8x1xf32> to vector<8x32xf32>
    %178 = arith.mulf %173, %177 : vector<8x32xf32>
    %179 = vector.broadcast %158 : vector<1x32xf32> to vector<8x32xf32>
    %180 = arith.mulf %178, %179 : vector<8x32xf32>
    %181 = vector.broadcast %160 : vector<1x32xf32> to vector<8x32xf32>
    %182 = arith.addf %180, %181 : vector<8x32xf32>
    %c0_77 = arith.constant 0 : index
    %c0_78 = arith.constant 0 : index
    %c0_79 = arith.constant 0 : index
    %183 = vector.load %arg16[%c0_77, %c0_78, %c0_79] : memref<2x32x64xbf16, #tpu.memory_space<vmem>>, vector<1x32x64xbf16>
    %184 = vector.shape_cast %183 : vector<1x32x64xbf16> to vector<32x64xbf16>
    %185 = arith.truncf %182 : vector<8x32xf32> to vector<8x32xbf16>
    %cst_80 = arith.constant dense<0.000000e+00> : vector<8x64xf32>
    %186 = tpu.matmul %185, %184, %cst_80 {dimension_numbers = #tpu.dot_dimension_numbers<[1], [0], [0], [1], [0, 0, 1, 1], [], []>} : vector<8x32xbf16>, vector<32x64xbf16>, vector<8x64xf32> -> vector<8x64xf32>
    %c0_81 = arith.constant 0 : index
    %c0_82 = arith.constant 0 : index
    %c0_83 = arith.constant 0 : index
    %187 = vector.load %arg17[%c0_81, %c0_82, %c0_83] : memref<2x1x64xf32, #tpu.memory_space<vmem>>, vector<1x1x64xf32>
    %188 = vector.shape_cast %187 : vector<1x1x64xf32> to vector<1x64xf32>
    %189 = vector.broadcast %188 : vector<1x64xf32> to vector<8x64xf32>
    %190 = arith.addf %186, %189 : vector<8x64xf32>
    %cst_84 = arith.constant 0.000000e+00 : f32
    %191 = vector.broadcast %cst_84 : f32 to vector<8x64xf32>
    %192 = arith.maximumf %190, %191 : vector<8x64xf32>
    %c0_85 = arith.constant 0 : index
    %c0_86 = arith.constant 0 : index
    %c0_87 = arith.constant 0 : index
    %193 = vector.load %arg18[%c0_85, %c0_86, %c0_87] : memref<2x64x32xbf16, #tpu.memory_space<vmem>>, vector<1x64x32xbf16>
    %194 = vector.shape_cast %193 : vector<1x64x32xbf16> to vector<64x32xbf16>
    %195 = arith.truncf %192 : vector<8x64xf32> to vector<8x64xbf16>
    %cst_88 = arith.constant dense<0.000000e+00> : vector<8x32xf32>
    %196 = tpu.matmul %195, %194, %cst_88 {dimension_numbers = #tpu.dot_dimension_numbers<[1], [0], [0], [1], [0, 0, 1, 1], [], []>} : vector<8x64xbf16>, vector<64x32xbf16>, vector<8x32xf32> -> vector<8x32xf32>
    %c0_89 = arith.constant 0 : index
    %c0_90 = arith.constant 0 : index
    %c0_91 = arith.constant 0 : index
    %197 = vector.load %arg19[%c0_89, %c0_90, %c0_91] : memref<2x1x32xf32, #tpu.memory_space<vmem>>, vector<1x1x32xf32>
    %198 = vector.shape_cast %197 : vector<1x1x32xf32> to vector<1x32xf32>
    %199 = vector.broadcast %198 : vector<1x32xf32> to vector<8x32xf32>
    %200 = arith.addf %196, %199 : vector<8x32xf32>
    %201 = arith.addf %156, %200 : vector<8x32xf32>
    %c1 = arith.constant 1 : index
    %c0_92 = arith.constant 0 : index
    %c0_93 = arith.constant 0 : index
    %202 = vector.load %arg14[%c1, %c0_92, %c0_93] : memref<2x1x32xf32, #tpu.memory_space<vmem>>, vector<1x1x32xf32>
    %203 = vector.shape_cast %202 : vector<1x1x32xf32> to vector<1x32xf32>
    %c1_94 = arith.constant 1 : index
    %c0_95 = arith.constant 0 : index
    %c0_96 = arith.constant 0 : index
    %204 = vector.load %arg15[%c1_94, %c0_95, %c0_96] : memref<2x1x32xf32, #tpu.memory_space<vmem>>, vector<1x1x32xf32>
    %205 = vector.shape_cast %204 : vector<1x1x32xf32> to vector<1x32xf32>
    %cst_97 = arith.constant dense<0.000000e+00> : vector<8xf32>
    %206 = vector.multi_reduction <add>, %201, %cst_97 [1] : vector<8x32xf32> to vector<8xf32>
    %207 = vector.shape_cast %206 : vector<8xf32> to vector<8x1xf32>
    %cst_98 = arith.constant 3.200000e+01 : f32
    %208 = vector.broadcast %cst_98 : f32 to vector<8x1xf32>
    %209 = arith.divf %207, %208 : vector<8x1xf32>
    %210 = vector.broadcast %209 : vector<8x1xf32> to vector<8x32xf32>
    %211 = arith.subf %201, %210 : vector<8x32xf32>
    %212 = arith.mulf %211, %211 : vector<8x32xf32>
    %cst_99 = arith.constant dense<0.000000e+00> : vector<8xf32>
    %213 = vector.multi_reduction <add>, %212, %cst_99 [1] : vector<8x32xf32> to vector<8xf32>
    %214 = vector.shape_cast %213 : vector<8xf32> to vector<8x1xf32>
    %cst_100 = arith.constant 3.200000e+01 : f32
    %215 = vector.broadcast %cst_100 : f32 to vector<8x1xf32>
    %216 = arith.divf %214, %215 : vector<8x1xf32>
    %217 = vector.broadcast %209 : vector<8x1xf32> to vector<8x32xf32>
    %218 = arith.subf %201, %217 : vector<8x32xf32>
    %cst_101 = arith.constant 9.99999974E-6 : f32
    %219 = vector.broadcast %cst_101 : f32 to vector<8x1xf32>
    %220 = arith.addf %216, %219 : vector<8x1xf32>
    %221 = math.rsqrt %220 : vector<8x1xf32>
    %222 = vector.broadcast %221 : vector<8x1xf32> to vector<8x32xf32>
    %223 = arith.mulf %218, %222 : vector<8x32xf32>
    %224 = vector.broadcast %203 : vector<1x32xf32> to vector<8x32xf32>
    %225 = arith.mulf %223, %224 : vector<8x32xf32>
    %226 = vector.broadcast %205 : vector<1x32xf32> to vector<8x32xf32>
    %227 = arith.addf %225, %226 : vector<8x32xf32>
    %c1_102 = arith.constant 1 : index
    %c0_103 = arith.constant 0 : index
    %c0_104 = arith.constant 0 : index
    %228 = vector.load %arg10[%c1_102, %c0_103, %c0_104] : memref<2x32x96xbf16, #tpu.memory_space<vmem>>, vector<1x32x96xbf16>
    %229 = vector.shape_cast %228 : vector<1x32x96xbf16> to vector<32x96xbf16>
    %230 = arith.truncf %227 : vector<8x32xf32> to vector<8x32xbf16>
    %cst_105 = arith.constant dense<0.000000e+00> : vector<8x96xf32>
    %231 = tpu.matmul %230, %229, %cst_105 {dimension_numbers = #tpu.dot_dimension_numbers<[1], [0], [0], [1], [0, 0, 1, 1], [], []>} : vector<8x32xbf16>, vector<32x96xbf16>, vector<8x96xf32> -> vector<8x96xf32>
    %c1_106 = arith.constant 1 : index
    %c0_107 = arith.constant 0 : index
    %c0_108 = arith.constant 0 : index
    %232 = vector.load %arg11[%c1_106, %c0_107, %c0_108] : memref<2x1x96xf32, #tpu.memory_space<vmem>>, vector<1x1x96xf32>
    %233 = vector.shape_cast %232 : vector<1x1x96xf32> to vector<1x96xf32>
    %234 = vector.broadcast %233 : vector<1x96xf32> to vector<8x96xf32>
    %235 = arith.addf %231, %234 : vector<8x96xf32>
    %236 = vector.extract_strided_slice %235 {offsets = [0, 0], sizes = [8, 16], strides = [1, 1]} : vector<8x96xf32> to vector<8x16xf32>
    %237 = vector.extract_strided_slice %235 {offsets = [0, 32], sizes = [8, 16], strides = [1, 1]} : vector<8x96xf32> to vector<8x16xf32>
    %238 = vector.extract_strided_slice %235 {offsets = [0, 64], sizes = [8, 16], strides = [1, 1]} : vector<8x96xf32> to vector<8x16xf32>
    %239 = arith.truncf %236 : vector<8x16xf32> to vector<8x16xbf16>
    %240 = arith.truncf %237 : vector<8x16xf32> to vector<8x16xbf16>
    %cst_109 = arith.constant dense<0.000000e+00> : vector<8x8xf32>
    %241 = tpu.matmul %239, %240, %cst_109 {dimension_numbers = #tpu.dot_dimension_numbers<[1], [1], [0], [0], [0, 0, 1, 0], [], []>} : vector<8x16xbf16>, vector<8x16xbf16>, vector<8x8xf32> -> vector<8x8xf32>
    %242 = arith.truncf %236 : vector<8x16xf32> to vector<8x16xbf16>
    %243 = arith.truncf %45 : vector<15x16xf32> to vector<15x16xbf16>
    %cst_110 = arith.constant dense<0.000000e+00> : vector<8x15xf32>
    %244 = tpu.matmul %242, %243, %cst_110 {dimension_numbers = #tpu.dot_dimension_numbers<[1], [1], [0], [0], [0, 0, 1, 0], [], []>} : vector<8x16xbf16>, vector<15x16xbf16>, vector<8x15xf32> -> vector<8x15xf32>
    %245 = vector.shape_cast %244 : vector<8x15xf32> to vector<8x1x15xf32>
    %246 = vector.broadcast %245 : vector<8x1x15xf32> to vector<8x8x15xf32>
    %247 = arith.mulf %246, %54 : vector<8x8x15xf32>
    %cst_111 = arith.constant dense<0.000000e+00> : vector<8x8xf32>
    %248 = vector.multi_reduction <add>, %247, %cst_111 [2] : vector<8x8x15xf32> to vector<8x8xf32>
    %249 = arith.addf %241, %248 : vector<8x8xf32>
    %cst_112 = arith.constant 2.500000e-01 : f32
    %250 = vector.broadcast %cst_112 : f32 to vector<8x8xf32>
    %251 = arith.mulf %249, %250 : vector<8x8xf32>
    %cst_113 = arith.constant dense<0xFF800000> : vector<8xf32>
    %252 = vector.multi_reduction <maximumf>, %251, %cst_113 [1] : vector<8x8xf32> to vector<8xf32>
    %253 = vector.shape_cast %252 : vector<8xf32> to vector<8x1xf32>
    %254 = vector.broadcast %253 : vector<8x1xf32> to vector<8x8xf32>
    %255 = arith.subf %251, %254 : vector<8x8xf32>
    %256 = math.exp %255 : vector<8x8xf32>
    %cst_114 = arith.constant dense<0.000000e+00> : vector<8xf32>
    %257 = vector.multi_reduction <add>, %256, %cst_114 [1] : vector<8x8xf32> to vector<8xf32>
    %258 = vector.shape_cast %257 : vector<8xf32> to vector<8x1xf32>
    %259 = tpu.reciprocal %258 {approx = true} : vector<8x1xf32> -> vector<8x1xf32>
    %260 = vector.broadcast %259 : vector<8x1xf32> to vector<8x8xf32>
    %261 = arith.mulf %256, %260 : vector<8x8xf32>
    %262 = arith.truncf %261 : vector<8x8xf32> to vector<8x8xbf16>
    %263 = arith.truncf %238 : vector<8x16xf32> to vector<8x16xbf16>
    %cst_115 = arith.constant dense<0.000000e+00> : vector<8x16xf32>
    %264 = tpu.matmul %262, %263, %cst_115 {dimension_numbers = #tpu.dot_dimension_numbers<[1], [0], [0], [1], [0, 0, 1, 1], [], []>} : vector<8x8xbf16>, vector<8x16xbf16>, vector<8x16xf32> -> vector<8x16xf32>
    %265 = vector.extract_strided_slice %235 {offsets = [0, 16], sizes = [8, 16], strides = [1, 1]} : vector<8x96xf32> to vector<8x16xf32>
    %266 = vector.extract_strided_slice %235 {offsets = [0, 48], sizes = [8, 16], strides = [1, 1]} : vector<8x96xf32> to vector<8x16xf32>
    %267 = vector.extract_strided_slice %235 {offsets = [0, 80], sizes = [8, 16], strides = [1, 1]} : vector<8x96xf32> to vector<8x16xf32>
    %268 = arith.truncf %265 : vector<8x16xf32> to vector<8x16xbf16>
    %269 = arith.truncf %266 : vector<8x16xf32> to vector<8x16xbf16>
    %cst_116 = arith.constant dense<0.000000e+00> : vector<8x8xf32>
    %270 = tpu.matmul %268, %269, %cst_116 {dimension_numbers = #tpu.dot_dimension_numbers<[1], [1], [0], [0], [0, 0, 1, 0], [], []>} : vector<8x16xbf16>, vector<8x16xbf16>, vector<8x8xf32> -> vector<8x8xf32>
    %271 = arith.truncf %265 : vector<8x16xf32> to vector<8x16xbf16>
    %272 = arith.truncf %45 : vector<15x16xf32> to vector<15x16xbf16>
    %cst_117 = arith.constant dense<0.000000e+00> : vector<8x15xf32>
    %273 = tpu.matmul %271, %272, %cst_117 {dimension_numbers = #tpu.dot_dimension_numbers<[1], [1], [0], [0], [0, 0, 1, 0], [], []>} : vector<8x16xbf16>, vector<15x16xbf16>, vector<8x15xf32> -> vector<8x15xf32>
    %274 = vector.shape_cast %273 : vector<8x15xf32> to vector<8x1x15xf32>
    %275 = vector.broadcast %274 : vector<8x1x15xf32> to vector<8x8x15xf32>
    %276 = arith.mulf %275, %54 : vector<8x8x15xf32>
    %cst_118 = arith.constant dense<0.000000e+00> : vector<8x8xf32>
    %277 = vector.multi_reduction <add>, %276, %cst_118 [2] : vector<8x8x15xf32> to vector<8x8xf32>
    %278 = arith.addf %270, %277 : vector<8x8xf32>
    %cst_119 = arith.constant 2.500000e-01 : f32
    %279 = vector.broadcast %cst_119 : f32 to vector<8x8xf32>
    %280 = arith.mulf %278, %279 : vector<8x8xf32>
    %cst_120 = arith.constant dense<0xFF800000> : vector<8xf32>
    %281 = vector.multi_reduction <maximumf>, %280, %cst_120 [1] : vector<8x8xf32> to vector<8xf32>
    %282 = vector.shape_cast %281 : vector<8xf32> to vector<8x1xf32>
    %283 = vector.broadcast %282 : vector<8x1xf32> to vector<8x8xf32>
    %284 = arith.subf %280, %283 : vector<8x8xf32>
    %285 = math.exp %284 : vector<8x8xf32>
    %cst_121 = arith.constant dense<0.000000e+00> : vector<8xf32>
    %286 = vector.multi_reduction <add>, %285, %cst_121 [1] : vector<8x8xf32> to vector<8xf32>
    %287 = vector.shape_cast %286 : vector<8xf32> to vector<8x1xf32>
    %288 = tpu.reciprocal %287 {approx = true} : vector<8x1xf32> -> vector<8x1xf32>
    %289 = vector.broadcast %288 : vector<8x1xf32> to vector<8x8xf32>
    %290 = arith.mulf %285, %289 : vector<8x8xf32>
    %291 = arith.truncf %290 : vector<8x8xf32> to vector<8x8xbf16>
    %292 = arith.truncf %267 : vector<8x16xf32> to vector<8x16xbf16>
    %cst_122 = arith.constant dense<0.000000e+00> : vector<8x16xf32>
    %293 = tpu.matmul %291, %292, %cst_122 {dimension_numbers = #tpu.dot_dimension_numbers<[1], [0], [0], [1], [0, 0, 1, 1], [], []>} : vector<8x8xbf16>, vector<8x16xbf16>, vector<8x16xf32> -> vector<8x16xf32>
    %294 = tpu.concatenate %264, %293 in 1 : vector<8x16xf32>, vector<8x16xf32> -> vector<8x32xf32>
    %c1_123 = arith.constant 1 : index
    %c0_124 = arith.constant 0 : index
    %c0_125 = arith.constant 0 : index
    %295 = vector.load %arg12[%c1_123, %c0_124, %c0_125] : memref<2x32x32xbf16, #tpu.memory_space<vmem>>, vector<1x32x32xbf16>
    %296 = vector.shape_cast %295 : vector<1x32x32xbf16> to vector<32x32xbf16>
    %297 = arith.truncf %294 : vector<8x32xf32> to vector<8x32xbf16>
    %cst_126 = arith.constant dense<0.000000e+00> : vector<8x32xf32>
    %298 = tpu.matmul %297, %296, %cst_126 {dimension_numbers = #tpu.dot_dimension_numbers<[1], [0], [0], [1], [0, 0, 1, 1], [], []>} : vector<8x32xbf16>, vector<32x32xbf16>, vector<8x32xf32> -> vector<8x32xf32>
    %c1_127 = arith.constant 1 : index
    %c0_128 = arith.constant 0 : index
    %c0_129 = arith.constant 0 : index
    %299 = vector.load %arg13[%c1_127, %c0_128, %c0_129] : memref<2x1x32xf32, #tpu.memory_space<vmem>>, vector<1x1x32xf32>
    %300 = vector.shape_cast %299 : vector<1x1x32xf32> to vector<1x32xf32>
    %301 = vector.broadcast %300 : vector<1x32xf32> to vector<8x32xf32>
    %302 = arith.addf %298, %301 : vector<8x32xf32>
    %303 = arith.addf %201, %302 : vector<8x32xf32>
    %c1_130 = arith.constant 1 : index
    %c0_131 = arith.constant 0 : index
    %c0_132 = arith.constant 0 : index
    %304 = vector.load %arg20[%c1_130, %c0_131, %c0_132] : memref<2x1x32xf32, #tpu.memory_space<vmem>>, vector<1x1x32xf32>
    %305 = vector.shape_cast %304 : vector<1x1x32xf32> to vector<1x32xf32>
    %c1_133 = arith.constant 1 : index
    %c0_134 = arith.constant 0 : index
    %c0_135 = arith.constant 0 : index
    %306 = vector.load %arg21[%c1_133, %c0_134, %c0_135] : memref<2x1x32xf32, #tpu.memory_space<vmem>>, vector<1x1x32xf32>
    %307 = vector.shape_cast %306 : vector<1x1x32xf32> to vector<1x32xf32>
    %cst_136 = arith.constant dense<0.000000e+00> : vector<8xf32>
    %308 = vector.multi_reduction <add>, %303, %cst_136 [1] : vector<8x32xf32> to vector<8xf32>
    %309 = vector.shape_cast %308 : vector<8xf32> to vector<8x1xf32>
    %cst_137 = arith.constant 3.200000e+01 : f32
    %310 = vector.broadcast %cst_137 : f32 to vector<8x1xf32>
    %311 = arith.divf %309, %310 : vector<8x1xf32>
    %312 = vector.broadcast %311 : vector<8x1xf32> to vector<8x32xf32>
    %313 = arith.subf %303, %312 : vector<8x32xf32>
    %314 = arith.mulf %313, %313 : vector<8x32xf32>
    %cst_138 = arith.constant dense<0.000000e+00> : vector<8xf32>
    %315 = vector.multi_reduction <add>, %314, %cst_138 [1] : vector<8x32xf32> to vector<8xf32>
    %316 = vector.shape_cast %315 : vector<8xf32> to vector<8x1xf32>
    %cst_139 = arith.constant 3.200000e+01 : f32
    %317 = vector.broadcast %cst_139 : f32 to vector<8x1xf32>
    %318 = arith.divf %316, %317 : vector<8x1xf32>
    %319 = vector.broadcast %311 : vector<8x1xf32> to vector<8x32xf32>
    %320 = arith.subf %303, %319 : vector<8x32xf32>
    %cst_140 = arith.constant 9.99999974E-6 : f32
    %321 = vector.broadcast %cst_140 : f32 to vector<8x1xf32>
    %322 = arith.addf %318, %321 : vector<8x1xf32>
    %323 = math.rsqrt %322 : vector<8x1xf32>
    %324 = vector.broadcast %323 : vector<8x1xf32> to vector<8x32xf32>
    %325 = arith.mulf %320, %324 : vector<8x32xf32>
    %326 = vector.broadcast %305 : vector<1x32xf32> to vector<8x32xf32>
    %327 = arith.mulf %325, %326 : vector<8x32xf32>
    %328 = vector.broadcast %307 : vector<1x32xf32> to vector<8x32xf32>
    %329 = arith.addf %327, %328 : vector<8x32xf32>
    %c1_141 = arith.constant 1 : index
    %c0_142 = arith.constant 0 : index
    %c0_143 = arith.constant 0 : index
    %330 = vector.load %arg16[%c1_141, %c0_142, %c0_143] : memref<2x32x64xbf16, #tpu.memory_space<vmem>>, vector<1x32x64xbf16>
    %331 = vector.shape_cast %330 : vector<1x32x64xbf16> to vector<32x64xbf16>
    %332 = arith.truncf %329 : vector<8x32xf32> to vector<8x32xbf16>
    %cst_144 = arith.constant dense<0.000000e+00> : vector<8x64xf32>
    %333 = tpu.matmul %332, %331, %cst_144 {dimension_numbers = #tpu.dot_dimension_numbers<[1], [0], [0], [1], [0, 0, 1, 1], [], []>} : vector<8x32xbf16>, vector<32x64xbf16>, vector<8x64xf32> -> vector<8x64xf32>
    %c1_145 = arith.constant 1 : index
    %c0_146 = arith.constant 0 : index
    %c0_147 = arith.constant 0 : index
    %334 = vector.load %arg17[%c1_145, %c0_146, %c0_147] : memref<2x1x64xf32, #tpu.memory_space<vmem>>, vector<1x1x64xf32>
    %335 = vector.shape_cast %334 : vector<1x1x64xf32> to vector<1x64xf32>
    %336 = vector.broadcast %335 : vector<1x64xf32> to vector<8x64xf32>
    %337 = arith.addf %333, %336 : vector<8x64xf32>
    %cst_148 = arith.constant 0.000000e+00 : f32
    %338 = vector.broadcast %cst_148 : f32 to vector<8x64xf32>
    %339 = arith.maximumf %337, %338 : vector<8x64xf32>
    %c1_149 = arith.constant 1 : index
    %c0_150 = arith.constant 0 : index
    %c0_151 = arith.constant 0 : index
    %340 = vector.load %arg18[%c1_149, %c0_150, %c0_151] : memref<2x64x32xbf16, #tpu.memory_space<vmem>>, vector<1x64x32xbf16>
    %341 = vector.shape_cast %340 : vector<1x64x32xbf16> to vector<64x32xbf16>
    %342 = arith.truncf %339 : vector<8x64xf32> to vector<8x64xbf16>
    %cst_152 = arith.constant dense<0.000000e+00> : vector<8x32xf32>
    %343 = tpu.matmul %342, %341, %cst_152 {dimension_numbers = #tpu.dot_dimension_numbers<[1], [0], [0], [1], [0, 0, 1, 1], [], []>} : vector<8x64xbf16>, vector<64x32xbf16>, vector<8x32xf32> -> vector<8x32xf32>
    %c1_153 = arith.constant 1 : index
    %c0_154 = arith.constant 0 : index
    %c0_155 = arith.constant 0 : index
    %344 = vector.load %arg19[%c1_153, %c0_154, %c0_155] : memref<2x1x32xf32, #tpu.memory_space<vmem>>, vector<1x1x32xf32>
    %345 = vector.shape_cast %344 : vector<1x1x32xf32> to vector<1x32xf32>
    %346 = vector.broadcast %345 : vector<1x32xf32> to vector<8x32xf32>
    %347 = arith.addf %343, %346 : vector<8x32xf32>
    %348 = arith.addf %303, %347 : vector<8x32xf32>
    %c0_156 = arith.constant 0 : index
    %c0_157 = arith.constant 0 : index
    %349 = vector.load %arg22[%c0_156, %c0_157] : memref<1x32xf32, #tpu.memory_space<vmem>>, vector<1x32xf32>
    %c0_158 = arith.constant 0 : index
    %c0_159 = arith.constant 0 : index
    %350 = vector.load %arg23[%c0_158, %c0_159] : memref<1x32xf32, #tpu.memory_space<vmem>>, vector<1x32xf32>
    %cst_160 = arith.constant dense<0.000000e+00> : vector<8xf32>
    %351 = vector.multi_reduction <add>, %348, %cst_160 [1] : vector<8x32xf32> to vector<8xf32>
    %352 = vector.shape_cast %351 : vector<8xf32> to vector<8x1xf32>
    %cst_161 = arith.constant 3.200000e+01 : f32
    %353 = vector.broadcast %cst_161 : f32 to vector<8x1xf32>
    %354 = arith.divf %352, %353 : vector<8x1xf32>
    %355 = vector.broadcast %354 : vector<8x1xf32> to vector<8x32xf32>
    %356 = arith.subf %348, %355 : vector<8x32xf32>
    %357 = arith.mulf %356, %356 : vector<8x32xf32>
    %cst_162 = arith.constant dense<0.000000e+00> : vector<8xf32>
    %358 = vector.multi_reduction <add>, %357, %cst_162 [1] : vector<8x32xf32> to vector<8xf32>
    %359 = vector.shape_cast %358 : vector<8xf32> to vector<8x1xf32>
    %cst_163 = arith.constant 3.200000e+01 : f32
    %360 = vector.broadcast %cst_163 : f32 to vector<8x1xf32>
    %361 = arith.divf %359, %360 : vector<8x1xf32>
    %362 = vector.broadcast %354 : vector<8x1xf32> to vector<8x32xf32>
    %363 = arith.subf %348, %362 : vector<8x32xf32>
    %cst_164 = arith.constant 9.99999974E-6 : f32
    %364 = vector.broadcast %cst_164 : f32 to vector<8x1xf32>
    %365 = arith.addf %361, %364 : vector<8x1xf32>
    %366 = math.rsqrt %365 : vector<8x1xf32>
    %367 = vector.broadcast %366 : vector<8x1xf32> to vector<8x32xf32>
    %368 = arith.mulf %363, %367 : vector<8x32xf32>
    %369 = vector.broadcast %349 : vector<1x32xf32> to vector<8x32xf32>
    %370 = arith.mulf %368, %369 : vector<8x32xf32>
    %371 = vector.broadcast %350 : vector<1x32xf32> to vector<8x32xf32>
    %372 = arith.addf %370, %371 : vector<8x32xf32>
    %c0_165 = arith.constant 0 : index
    %c0_166 = arith.constant 0 : index
    %373 = vector.load %arg24[%c0_165, %c0_166] : memref<32x32xbf16, #tpu.memory_space<vmem>>, vector<32x32xbf16>
    %374 = arith.truncf %372 : vector<8x32xf32> to vector<8x32xbf16>
    %cst_167 = arith.constant dense<0.000000e+00> : vector<8x32xf32>
    %375 = tpu.matmul %374, %373, %cst_167 {dimension_numbers = #tpu.dot_dimension_numbers<[1], [0], [0], [1], [0, 0, 1, 1], [], []>} : vector<8x32xbf16>, vector<32x32xbf16>, vector<8x32xf32> -> vector<8x32xf32>
    %c0_168 = arith.constant 0 : index
    %c0_169 = arith.constant 0 : index
    %376 = vector.load %arg25[%c0_168, %c0_169] : memref<1x32xf32, #tpu.memory_space<vmem>>, vector<1x32xf32>
    %377 = vector.broadcast %376 : vector<1x32xf32> to vector<8x32xf32>
    %378 = arith.addf %375, %377 : vector<8x32xf32>
    %cst_170 = arith.constant 0.000000e+00 : f32
    %379 = vector.broadcast %cst_170 : f32 to vector<8x32xf32>
    %380 = arith.cmpf oge, %378, %379 : vector<8x32xf32>
    %cst_171 = arith.constant 2.500000e-01 : f32
    %381 = vector.broadcast %cst_171 : f32 to vector<8x32xf32>
    %382 = arith.mulf %381, %378 : vector<8x32xf32>
    %383 = arith.select %380, %378, %382 : vector<8x32xi1>, vector<8x32xf32>
    %c0_172 = arith.constant 0 : index
    %c0_173 = arith.constant 0 : index
    %384 = vector.load %arg26[%c0_172, %c0_173] : memref<32x16xbf16, #tpu.memory_space<vmem>>, vector<32x16xbf16>
    %385 = arith.truncf %383 : vector<8x32xf32> to vector<8x32xbf16>
    %cst_174 = arith.constant dense<0.000000e+00> : vector<8x16xf32>
    %386 = tpu.matmul %385, %384, %cst_174 {dimension_numbers = #tpu.dot_dimension_numbers<[1], [0], [0], [1], [0, 0, 1, 1], [], []>} : vector<8x32xbf16>, vector<32x16xbf16>, vector<8x16xf32> -> vector<8x16xf32>
    %c0_175 = arith.constant 0 : index
    %c0_176 = arith.constant 0 : index
    %387 = vector.load %arg27[%c0_175, %c0_176] : memref<1x16xf32, #tpu.memory_space<vmem>>, vector<1x16xf32>
    %388 = vector.broadcast %387 : vector<1x16xf32> to vector<8x16xf32>
    %389 = arith.addf %386, %388 : vector<8x16xf32>
    %c0_177 = arith.constant 0 : index
    %c0_178 = arith.constant 0 : index
    %c0_179 = arith.constant 0 : index
    %390 = vector.load %arg28[%c0_177, %c0_178, %c0_179] : memref<1x8x16xf32, #tpu.memory_space<vmem>>, vector<1x8x16xf32>
    %391 = vector.shape_cast %390 : vector<1x8x16xf32> to vector<8x16xf32>
    %392 = vector.shape_cast %389 : vector<8x16xf32> to vector<1x8x16xf32>
    tpu.vector_store %arg28[%c0_177, %c0_178, %c0_179], %392 {strides = array<i32>} : memref<1x8x16xf32, #tpu.memory_space<vmem>>, vector<1x8x16xf32>,
    return
  }
  func.func @transform_0(%arg0: i32) -> (i32, i32, i32) {
    %c0_i32 = arith.constant 0 : i32
    %c0_i32_0 = arith.constant 0 : i32
    %c0_i32_1 = arith.constant 0 : i32
    return %arg0, %c0_i32, %c0_i32_0 : i32, i32, i32
  }
  func.func @transform_1(%arg0: i32) -> (i32, i32) {
    %c0_i32 = arith.constant 0 : i32
    %c0_i32_0 = arith.constant 0 : i32
    %c0_i32_1 = arith.constant 0 : i32
    return %c0_i32, %c0_i32_0 : i32, i32
  }
  func.func @transform_2(%arg0: i32) -> (i32, i32) {
    %c0_i32 = arith.constant 0 : i32
    %c0_i32_0 = arith.constant 0 : i32
    %c0_i32_1 = arith.constant 0 : i32
    return %c0_i32, %c0_i32_0 : i32, i32
  }
  func.func @transform_3(%arg0: i32) -> (i32, i32) {
    %c0_i32 = arith.constant 0 : i32
    %c0_i32_0 = arith.constant 0 : i32
    %c0_i32_1 = arith.constant 0 : i32
    return %c0_i32, %c0_i32_0 : i32, i32
  }
  func.func @transform_4(%arg0: i32) -> (i32, i32) {
    %c0_i32 = arith.constant 0 : i32
    %c0_i32_0 = arith.constant 0 : i32
    %c0_i32_1 = arith.constant 0 : i32
    return %c0_i32, %c0_i32_0 : i32, i32
  }
  func.func @transform_5(%arg0: i32) -> (i32, i32) {
    %c0_i32 = arith.constant 0 : i32
    %c0_i32_0 = arith.constant 0 : i32
    %c0_i32_1 = arith.constant 0 : i32
    return %c0_i32, %c0_i32_0 : i32, i32
  }
  func.func @transform_6(%arg0: i32) -> (i32, i32) {
    %c0_i32 = arith.constant 0 : i32
    %c0_i32_0 = arith.constant 0 : i32
    %c0_i32_1 = arith.constant 0 : i32
    return %c0_i32, %c0_i32_0 : i32, i32
  }
  func.func @transform_7(%arg0: i32) -> (i32, i32) {
    %c0_i32 = arith.constant 0 : i32
    %c0_i32_0 = arith.constant 0 : i32
    %c0_i32_1 = arith.constant 0 : i32
    return %c0_i32, %c0_i32_0 : i32, i32
  }
  func.func @transform_8(%arg0: i32) -> (i32, i32) {
    %c0_i32 = arith.constant 0 : i32
    %c0_i32_0 = arith.constant 0 : i32
    %c0_i32_1 = arith.constant 0 : i32
    return %c0_i32, %c0_i32_0 : i32, i32
  }
  func.func @transform_9(%arg0: i32) -> (i32, i32, i32) {
    %c0_i32 = arith.constant 0 : i32
    %c0_i32_0 = arith.constant 0 : i32
    %c0_i32_1 = arith.constant 0 : i32
    %c0_i32_2 = arith.constant 0 : i32
    return %c0_i32, %c0_i32_0, %c0_i32_1 : i32, i32, i32
  }
  func.func @transform_10(%arg0: i32) -> (i32, i32, i32) {
    %c0_i32 = arith.constant 0 : i32
    %c0_i32_0 = arith.constant 0 : i32
    %c0_i32_1 = arith.constant 0 : i32
    %c0_i32_2 = arith.constant 0 : i32
    return %c0_i32, %c0_i32_0, %c0_i32_1 : i32, i32, i32
  }
  func.func @transform_11(%arg0: i32) -> (i32, i32, i32) {
    %c0_i32 = arith.constant 0 : i32
    %c0_i32_0 = arith.constant 0 : i32
    %c0_i32_1 = arith.constant 0 : i32
    %c0_i32_2 = arith.constant 0 : i32
    return %c0_i32, %c0_i32_0, %c0_i32_1 : i32, i32, i32
  }
  func.func @transform_12(%arg0: i32) -> (i32, i32, i32) {
    %c0_i32 = arith.constant 0 : i32
    %c0_i32_0 = arith.constant 0 : i32
    %c0_i32_1 = arith.constant 0 : i32
    %c0_i32_2 = arith.constant 0 : i32
    return %c0_i32, %c0_i32_0, %c0_i32_1 : i32, i32, i32
  }
  func.func @transform_13(%arg0: i32) -> (i32, i32, i32) {
    %c0_i32 = arith.constant 0 : i32
    %c0_i32_0 = arith.constant 0 : i32
    %c0_i32_1 = arith.constant 0 : i32
    %c0_i32_2 = arith.constant 0 : i32
    return %c0_i32, %c0_i32_0, %c0_i32_1 : i32, i32, i32
  }
  func.func @transform_14(%arg0: i32) -> (i32, i32, i32) {
    %c0_i32 = arith.constant 0 : i32
    %c0_i32_0 = arith.constant 0 : i32
    %c0_i32_1 = arith.constant 0 : i32
    %c0_i32_2 = arith.constant 0 : i32
    return %c0_i32, %c0_i32_0, %c0_i32_1 : i32, i32, i32
  }
  func.func @transform_15(%arg0: i32) -> (i32, i32, i32) {
    %c0_i32 = arith.constant 0 : i32
    %c0_i32_0 = arith.constant 0 : i32
    %c0_i32_1 = arith.constant 0 : i32
    %c0_i32_2 = arith.constant 0 : i32
    return %c0_i32, %c0_i32_0, %c0_i32_1 : i32, i32, i32
  }
  func.func @transform_16(%arg0: i32) -> (i32, i32, i32) {
    %c0_i32 = arith.constant 0 : i32
    %c0_i32_0 = arith.constant 0 : i32
    %c0_i32_1 = arith.constant 0 : i32
    %c0_i32_2 = arith.constant 0 : i32
    return %c0_i32, %c0_i32_0, %c0_i32_1 : i32, i32, i32
  }
  func.func @transform_17(%arg0: i32) -> (i32, i32, i32) {
    %c0_i32 = arith.constant 0 : i32
    %c0_i32_0 = arith.constant 0 : i32
    %c0_i32_1 = arith.constant 0 : i32
    %c0_i32_2 = arith.constant 0 : i32
    return %c0_i32, %c0_i32_0, %c0_i32_1 : i32, i32, i32
  }
  func.func @transform_18(%arg0: i32) -> (i32, i32, i32) {
    %c0_i32 = arith.constant 0 : i32
    %c0_i32_0 = arith.constant 0 : i32
    %c0_i32_1 = arith.constant 0 : i32
    %c0_i32_2 = arith.constant 0 : i32
    return %c0_i32, %c0_i32_0, %c0_i32_1 : i32, i32, i32
  }
  func.func @transform_19(%arg0: i32) -> (i32, i32, i32) {
    %c0_i32 = arith.constant 0 : i32
    %c0_i32_0 = arith.constant 0 : i32
    %c0_i32_1 = arith.constant 0 : i32
    %c0_i32_2 = arith.constant 0 : i32
    return %c0_i32, %c0_i32_0, %c0_i32_1 : i32, i32, i32
  }
  func.func @transform_20(%arg0: i32) -> (i32, i32, i32) {
    %c0_i32 = arith.constant 0 : i32
    %c0_i32_0 = arith.constant 0 : i32
    %c0_i32_1 = arith.constant 0 : i32
    %c0_i32_2 = arith.constant 0 : i32
    return %c0_i32, %c0_i32_0, %c0_i32_1 : i32, i32, i32
  }
  func.func @transform_21(%arg0: i32) -> (i32, i32) {
    %c0_i32 = arith.constant 0 : i32
    %c0_i32_0 = arith.constant 0 : i32
    %c0_i32_1 = arith.constant 0 : i32
    return %c0_i32, %c0_i32_0 : i32, i32
  }
  func.func @transform_22(%arg0: i32) -> (i32, i32) {
    %c0_i32 = arith.constant 0 : i32
    %c0_i32_0 = arith.constant 0 : i32
    %c0_i32_1 = arith.constant 0 : i32
    return %c0_i32, %c0_i32_0 : i32, i32
  }
  func.func @transform_23(%arg0: i32) -> (i32, i32) {
    %c0_i32 = arith.constant 0 : i32
    %c0_i32_0 = arith.constant 0 : i32
    %c0_i32_1 = arith.constant 0 : i32
    return %c0_i32, %c0_i32_0 : i32, i32
  }
  func.func @transform_24(%arg0: i32) -> (i32, i32) {
    %c0_i32 = arith.constant 0 : i32
    %c0_i32_0 = arith.constant 0 : i32
    %c0_i32_1 = arith.constant 0 : i32
    return %c0_i32, %c0_i32_0 : i32, i32
  }
  func.func @transform_25(%arg0: i32) -> (i32, i32) {
    %c0_i32 = arith.constant 0 : i32
    %c0_i32_0 = arith.constant 0 : i32
    %c0_i32_1 = arith.constant 0 : i32
    return %c0_i32, %c0_i32_0 : i32, i32
  }
  func.func @transform_26(%arg0: i32) -> (i32, i32) {
    %c0_i32 = arith.constant 0 : i32
    %c0_i32_0 = arith.constant 0 : i32
    %c0_i32_1 = arith.constant 0 : i32
    return %c0_i32, %c0_i32_0 : i32, i32
  }
  func.func @transform_27(%arg0: i32) -> (i32, i32, i32) {
    %c0_i32 = arith.constant 0 : i32
    %c0_i32_0 = arith.constant 0 : i32
    %c0_i32_1 = arith.constant 0 : i32
    return %arg0, %c0_i32, %c0_i32_0 : i32, i32, i32
  }
}

</mosaic_0001>

<llo_original>
// kernel: _lambda_.1
$region0: #{_lambda_.1}
  #allocation0 [shape = 'u32[]', space=smem, size = 0x4, offset = 0x4, fixed_abs, tag = 'smem constant byte address 0x4 - core index']
  #allocation1 [shape = 'u32[144,128]{1,0:T(1,128)}', space=vmem, size = 0x12000, scoped, tag = 'internal scratch']
  %s0 = inlined_call_operand.vmem [shape: f32[2,8,16], index: 0, kind: input, shape index: {}]
  %s1 = inlined_call_operand.hbm [shape: bf16[16,32], index: 1, kind: input, shape index: {}]
  %s2 = inlined_call_operand.hbm [shape: f32[1,32], index: 2, kind: input, shape index: {}]
  %s3 = inlined_call_operand.vmem [shape: bf16[32,32], index: 3, kind: input, shape index: {}]
  %s4 = inlined_call_operand.hbm [shape: f32[1,32], index: 4, kind: input, shape index: {}]
  %s5 = inlined_call_operand.vmem [shape: f32[1,16], index: 5, kind: input, shape index: {}]
  %s6 = inlined_call_operand.vmem [shape: f32[1,16], index: 6, kind: input, shape index: {}]
  %s7 = inlined_call_operand.vmem [shape: bf16[16,16], index: 7, kind: input, shape index: {}]
  %s8 = inlined_call_operand.vmem [shape: f32[1,16], index: 8, kind: input, shape index: {}]
  %s9 = inlined_call_operand.vmem [shape: bf16[2,32,96], index: 9, kind: input, shape index: {}]
  %s10 = inlined_call_operand.hbm [shape: f32[2,1,96], index: 10, kind: input, shape index: {}]
  %s11 = inlined_call_operand.vmem [shape: bf16[2,32,32], index: 11, kind: input, shape index: {}]
  %s12 = inlined_call_operand.hbm [shape: f32[2,1,32], index: 12, kind: input, shape index: {}]
  %s13 = inlined_call_operand.hbm [shape: f32[2,1,32], index: 13, kind: input, shape index: {}]
  %s14 = inlined_call_operand.hbm [shape: f32[2,1,32], index: 14, kind: input, shape index: {}]
  %s15 = inlined_call_operand.vmem [shape: bf16[2,32,64], index: 15, kind: input, shape index: {}]
  %s16 = inlined_call_operand.vmem [shape: f32[2,1,64], index: 16, kind: input, shape index: {}]
  %s17 = inlined_call_operand.vmem [shape: bf16[2,64,32], index: 17, kind: input, shape index: {}]
  %s18 = inlined_call_operand.vmem [shape: f32[2,1,32], index: 18, kind: input, shape index: {}]
  %s19 = inlined_call_operand.vmem [shape: f32[2,1,32], index: 19, kind: input, shape index: {}]
  %s20 = inlined_call_operand.vmem [shape: f32[2,1,32], index: 20, kind: input, shape index: {}]
  %s21 = inlined_call_operand.hbm [shape: f32[1,32], index: 21, kind: input, shape index: {}]
  %s22 = inlined_call_operand.hbm [shape: f32[1,32], index: 22, kind: input, shape index: {}]
  %s23 = inlined_call_operand.hbm [shape: bf16[32,32], index: 23, kind: input, shape index: {}]
  %s24 = inlined_call_operand.hbm [shape: f32[1,32], index: 24, kind: input, shape index: {}]
  %s25 = inlined_call_operand.vmem [shape: bf16[32,16], index: 25, kind: input, shape index: {}]
  %s26 = inlined_call_operand.hbm [shape: f32[1,16], index: 26, kind: input, shape index: {}]
  %s27 = inlined_call_operand.hbm [shape: f32[2,8,16], index: 27, kind: output, shape index: {}]
  %s28 = sld [smem:[#allocation0]]
  $region189: #{_lambda_.1} parent=0
    _
  %s30 = ssub.s32 1, %s28
  %s31 = scalar_select 0, %s30, %s28
  $region1: #{_lambda_.1} parent=0
    #allocation2 [shape = 'u8[4096]{0}', space=vmem, size = 0x1000, scoped, tag = 'input window, operand 1, single buffered']
    #allocation3 [shape = 's32[2]{0}', space=sflag, size = 0x8, scoped, tag = 'scoped memory for _lambda_.1']
    #allocation4 [shape = 's32[2]{0}', space=sflag, size = 0x8, scoped, tag = 'scoped memory for _lambda_.1']
    #allocation5 [shape = 'u8[512]{0}', space=vmem, size = 0x400, scoped, tag = 'input window, operand 2, single buffered']
    #allocation6 [shape = 's32[1]{0}', space=sflag, size = 0x4, scoped, tag = 'scoped memory for _lambda_.1']
    #allocation7 [shape = 'u8[512]{0}', space=vmem, size = 0x400, scoped, tag = 'input window, operand 4, single buffered']
    #allocation8 [shape = 'u8[1024]{0}', space=vmem, size = 0x400, scoped, tag = 'input window, operand 10, single buffered']
    #allocation9 [shape = 's32[1]{0}', space=sflag, size = 0x4, scoped, tag = 'scoped memory for _lambda_.1']
    #allocation10 [shape = 'u8[1024]{0}', space=vmem, size = 0x400, scoped, tag = 'input window, operand 12, single buffered']
    #allocation11 [shape = 'u8[1024]{0}', space=vmem, size = 0x400, scoped, tag = 'input window, operand 13, single buffered']
    #allocation12 [shape = 's32[1]{0}', space=sflag, size = 0x4, scoped, tag = 'scoped memory for _lambda_.1']
    #allocation13 [shape = 'u8[1024]{0}', space=vmem, size = 0x400, scoped, tag = 'input window, operand 14, single buffered']
    #allocation14 [shape = 'u8[512]{0}', space=vmem, size = 0x400, scoped, tag = 'input window, operand 21, single buffered']
    #allocation15 [shape = 's32[1]{0}', space=sflag, size = 0x4, scoped, tag = 'scoped memory for _lambda_.1']
    #allocation16 [shape = 'u8[512]{0}', space=vmem, size = 0x400, scoped, tag = 'input window, operand 22, single buffered']
    #allocation17 [shape = 'u8[8192]{0}', space=vmem, size = 0x2000, scoped, tag = 'input window, operand 23, single buffered']
    #allocation18 [shape = 's32[1]{0}', space=sflag, size = 0x4, scoped, tag = 'scoped memory for _lambda_.1']
    #allocation19 [shape = 'u8[512]{0}', space=vmem, size = 0x400, scoped, tag = 'input window, operand 24, single buffered']
    #allocation20 [shape = 'u8[512]{0}', space=vmem, size = 0x400, scoped, tag = 'input window, operand 26, single buffered']
    #allocation21 [shape = 's32[1]{0}', space=sflag, size = 0x4, scoped, tag = 'scoped memory for _lambda_.1']
    #allocation22 [shape = 'u8[8192]{0}', space=vmem, size = 0x2000, scoped, tag = 'output window, operand 0']
    %32 = vsyncpa [#allocation3], 0
    %33 = vsyncpa [#allocation6], 0
    %34 = vsyncpa [#allocation9], 0
    %35 = vsyncpa [#allocation12], 0
    %36 = vsyncpa [#allocation15], 0
    %37 = vsyncpa [#allocation18], 0
    %38 = vsyncpa [#allocation21], 0
    %39 = vsyncpa [#allocation4], 0
    %s40 = scalar_lea.sflag [#allocation4], 1
    %41 = vsyncpa %s40, 0
    loop: start=0, step=1, limit=4
    $region2: #{_lambda_.1} parent=1 // loop_pre_header
      _
    $region3: #{_lambda_.1} parent=1 // loop_header
      %s43 = sphi 0, %s47
      %p44 = scmp.ge.s32.totalorder %s43, 4
      %s53 = sphi 0, %s55
      %s56 = sphi 0, %s53
      %s57 = sphi 0, %s56
      %s73 = sphi 0, %s57
      %s77 = sphi 0, %s77
      %s79 = sphi 0, %s77
      %s80 = sphi 0, %s79
      %s94 = sphi 0, %s80
      %s98 = sphi 0, %s98
      %s100 = sphi 0, %s98
      %s101 = sphi 0, %s100
      %s115 = sphi 0, %s101
      %s119 = sphi 0, %s119
      %s121 = sphi 0, %s119
      %s122 = sphi 0, %s121
      %s136 = sphi 0, %s122
      %s140 = sphi 0, %s140
      %s142 = sphi 0, %s140
      %s143 = sphi 0, %s142
      %s157 = sphi 0, %s143
      %s161 = sphi 0, %s161
      %s163 = sphi 0, %s161
      %s164 = sphi 0, %s163
      %s178 = sphi 0, %s164
      %s182 = sphi 0, %s182
      %s184 = sphi 0, %s182
      %s185 = sphi 0, %s184
      %s199 = sphi 0, %s185
      %s203 = sphi 0, %s203
      %s205 = sphi 0, %s203
      %s206 = sphi 0, %s205
      %s220 = sphi 0, %s206
      %s224 = sphi 0, %s224
      %s226 = sphi 0, %s224
      %s227 = sphi 0, %s226
      %s241 = sphi 0, %s227
      %s245 = sphi 0, %s245
      %s247 = sphi 0, %s245
      %s248 = sphi 0, %s247
      %s262 = sphi 0, %s248
      %s266 = sphi 0, %s266
      %s268 = sphi 0, %s266
      %s269 = sphi 0, %s268
      %s283 = sphi 0, %s269
      %s287 = sphi 0, %s287
      %s289 = sphi 0, %s287
      %s290 = sphi 0, %s289
      %s304 = sphi 0, %s290
      %s308 = sphi 0, %s308
      %s310 = sphi 0, %s308
      %s311 = sphi 0, %s310
      %s325 = sphi 0, %s311
      %s329 = sphi 0, %s329
      %s331 = sphi 0, %s329
      %s332 = sphi 0, %s331
      %s346 = sphi 0, %s332
      %s350 = sphi 0, %s350
      %s352 = sphi 0, %s350
      %s353 = sphi 0, %s352
      %s367 = sphi 0, %s353
      %s371 = sphi 0, %s371
      %s373 = sphi 0, %s371
      %s374 = sphi 0, %s373
      %s388 = sphi 0, %s374
      %s392 = sphi 0, %s392
      %s394 = sphi 0, %s392
      %s395 = sphi 0, %s394
      %s409 = sphi 0, %s395
      %s413 = sphi 0, %s413
      %s415 = sphi 0, %s413
      %s416 = sphi 0, %s415
      %s430 = sphi 0, %s416
      %s434 = sphi 0, %s434
      %s436 = sphi 0, %s434
      %s437 = sphi 0, %s436
      %s451 = sphi 0, %s437
      %s455 = sphi 0, %s455
      %s457 = sphi 0, %s455
      %s458 = sphi 0, %s457
      %s472 = sphi 0, %s458
      %s476 = sphi 0, %s476
      %s478 = sphi 0, %s476
      %s479 = sphi 0, %s478
      %s493 = sphi 0, %s479
      %s497 = sphi 0, %s497
      %s499 = sphi 0, %s497
      %s500 = sphi 0, %s499
      %s514 = sphi 0, %s500
      %s518 = sphi 0, %s518
      %s520 = sphi 0, %s518
      %s521 = sphi 0, %s520
      %s535 = sphi 0, %s521
      %s539 = sphi 0, %s539
      %s541 = sphi 0, %s539
      %s542 = sphi 0, %s541
      %s556 = sphi 0, %s542
      %s560 = sphi 0, %s560
      %s562 = sphi 0, %s560
      %s563 = sphi 0, %s562
      %s577 = sphi 0, %s563
      %s581 = sphi 0, %s581
      %s583 = sphi 0, %s581
      %s584 = sphi 0, %s583
      %s598 = sphi 0, %s584
      %s602 = sphi 0, %s602
      %s604 = sphi 0, %s602
      %s605 = sphi 0, %s604
      %s619 = sphi 0, %s605
      %s625 = sphi 0, %s627
      %s628 = sphi 0, %s625
      %s629 = sphi 0, %s628
      %s645 = sphi 0, %s629
    $region4: #{_lambda_.1} parent=1 // loop_header_branch
      %46 = sbr.rel (%p44) target = $region8
    $region5: #{_lambda_.1} parent=1 // loop_body
      %s48 = ssub.s32 %s43, 1
      %s49 = ssub.s32 %s43, 2
      %s50 = sadd.s32 %s43, 1
      %s51 = ssub.s32 %s43, %s50
      %p52 = scmp.eq.s32.totalorder %s51, 0
      %s54 = sadd.s32 %s53, 1
      %s55 = scalar_select %p52, %s53, %s54
      %p58 = pneg %p52
      %p59 = scmp.eq.s32.totalorder %s43, 1
      %p60 = por %p58, %p59
      %p61 = scmp.ne.s32.totalorder %s53, %s56
      %p62 = scmp.eq.s32.totalorder %s43, 0
      %p63 = por %p61, %p62
      %p64 = scmp.ne.s32.totalorder %s53, %s56
      %p65 = scmp.eq.s32.totalorder %s48, 1
      %p66 = por %p64, %p65
      %p67 = scmp.ne.s32.totalorder %s56, %s57
      %p68 = scmp.eq.s32.totalorder %s48, 0
      %p69 = por %p67, %p68
      %p70 = scmp.ne.s32.totalorder %s56, %s57
      %p71 = scmp.eq.s32.totalorder %s49, 1
      %p72 = por %p70, %p71
      %p74 = scmp.ne.s32.totalorder %s57, %s73
      %p75 = scmp.eq.s32.totalorder %s49, 0
      %p76 = por %p74, %p75
      %s78 = sadd.s32 %s77, 1
      %p81 = scmp.eq.s32.totalorder %s43, 1
      %p82 = scmp.ne.s32.totalorder %s77, %s79
      %p83 = scmp.eq.s32.totalorder %s43, 0
      %p84 = por %p82, %p83
      %p85 = scmp.ne.s32.totalorder %s77, %s79
      %p86 = scmp.eq.s32.totalorder %s48, 1
      %p87 = por %p85, %p86
      %p88 = scmp.ne.s32.totalorder %s79, %s80
      %p89 = scmp.eq.s32.totalorder %s48, 0
      %p90 = por %p88, %p89
      %p91 = scmp.ne.s32.totalorder %s79, %s80
      %p92 = scmp.eq.s32.totalorder %s49, 1
      %p93 = por %p91, %p92
      %p95 = scmp.ne.s32.totalorder %s80, %s94
      %p96 = scmp.eq.s32.totalorder %s49, 0
      %p97 = por %p95, %p96
      %s99 = sadd.s32 %s98, 1
      %p102 = scmp.eq.s32.totalorder %s43, 1
      %p103 = scmp.ne.s32.totalorder %s98, %s100
      %p104 = scmp.eq.s32.totalorder %s43, 0
      %p105 = por %p103, %p104
      %p106 = scmp.ne.s32.totalorder %s98, %s100
      %p107 = scmp.eq.s32.totalorder %s48, 1
      %p108 = por %p106, %p107
      %p109 = scmp.ne.s32.totalorder %s100, %s101
      %p110 = scmp.eq.s32.totalorder %s48, 0
      %p111 = por %p109, %p110
      %p112 = scmp.ne.s32.totalorder %s100, %s101
      %p113 = scmp.eq.s32.totalorder %s49, 1
      %p114 = por %p112, %p113
      %p116 = scmp.ne.s32.totalorder %s101, %s115
      %p117 = scmp.eq.s32.totalorder %s49, 0
      %p118 = por %p116, %p117
      %s120 = sadd.s32 %s119, 1
      %p123 = scmp.eq.s32.totalorder %s43, 1
      %p124 = scmp.ne.s32.totalorder %s119, %s121
      %p125 = scmp.eq.s32.totalorder %s43, 0
      %p126 = por %p124, %p125
      %p127 = scmp.ne.s32.totalorder %s119, %s121
      %p128 = scmp.eq.s32.totalorder %s48, 1
      %p129 = por %p127, %p128
      %p130 = scmp.ne.s32.totalorder %s121, %s122
      %p131 = scmp.eq.s32.totalorder %s48, 0
      %p132 = por %p130, %p131
      %p133 = scmp.ne.s32.totalorder %s121, %s122
      %p134 = scmp.eq.s32.totalorder %s49, 1
      %p135 = por %p133, %p134
      %p137 = scmp.ne.s32.totalorder %s122, %s136
      %p138 = scmp.eq.s32.totalorder %s49, 0
      %p139 = por %p137, %p138
      %s141 = sadd.s32 %s140, 1
      %p144 = scmp.eq.s32.totalorder %s43, 1
      %p145 = scmp.ne.s32.totalorder %s140, %s142
      %p146 = scmp.eq.s32.totalorder %s43, 0
      %p147 = por %p145, %p146
      %p148 = scmp.ne.s32.totalorder %s140, %s142
      %p149 = scmp.eq.s32.totalorder %s48, 1
      %p150 = por %p148, %p149
      %p151 = scmp.ne.s32.totalorder %s142, %s143
      %p152 = scmp.eq.s32.totalorder %s48, 0
      %p153 = por %p151, %p152
      %p154 = scmp.ne.s32.totalorder %s142, %s143
      %p155 = scmp.eq.s32.totalorder %s49, 1
      %p156 = por %p154, %p155
      %p158 = scmp.ne.s32.totalorder %s143, %s157
      %p159 = scmp.eq.s32.totalorder %s49, 0
      %p160 = por %p158, %p159
      %s162 = sadd.s32 %s161, 1
      %p165 = scmp.eq.s32.totalorder %s43, 1
      %p166 = scmp.ne.s32.totalorder %s161, %s163
      %p167 = scmp.eq.s32.totalorder %s43, 0
      %p168 = por %p166, %p167
      %p169 = scmp.ne.s32.totalorder %s161, %s163
      %p170 = scmp.eq.s32.totalorder %s48, 1
      %p171 = por %p169, %p170
      %p172 = scmp.ne.s32.totalorder %s163, %s164
      %p173 = scmp.eq.s32.totalorder %s48, 0
      %p174 = por %p172, %p173
      %p175 = scmp.ne.s32.totalorder %s163, %s164
      %p176 = scmp.eq.s32.totalorder %s49, 1
      %p177 = por %p175, %p176
      %p179 = scmp.ne.s32.totalorder %s164, %s178
      %p180 = scmp.eq.s32.totalorder %s49, 0
      %p181 = por %p179, %p180
      %s183 = sadd.s32 %s182, 1
      %p186 = scmp.eq.s32.totalorder %s43, 1
      %p187 = scmp.ne.s32.totalorder %s182, %s184
      %p188 = scmp.eq.s32.totalorder %s43, 0
      %p189 = por %p187, %p188
      %p190 = scmp.ne.s32.totalorder %s182, %s184
      %p191 = scmp.eq.s32.totalorder %s48, 1
      %p192 = por %p190, %p191
      %p193 = scmp.ne.s32.totalorder %s184, %s185
      %p194 = scmp.eq.s32.totalorder %s48, 0
      %p195 = por %p193, %p194
      %p196 = scmp.ne.s32.totalorder %s184, %s185
      %p197 = scmp.eq.s32.totalorder %s49, 1
      %p198 = por %p196, %p197
      %p200 = scmp.ne.s32.totalorder %s185, %s199
      %p201 = scmp.eq.s32.totalorder %s49, 0
      %p202 = por %p200, %p201
      %s204 = sadd.s32 %s203, 1
      %p207 = scmp.eq.s32.totalorder %s43, 1
      %p208 = scmp.ne.s32.totalorder %s203, %s205
      %p209 = scmp.eq.s32.totalorder %s43, 0
      %p210 = por %p208, %p209
      %p211 = scmp.ne.s32.totalorder %s203, %s205
      %p212 = scmp.eq.s32.totalorder %s48, 1
      %p213 = por %p211, %p212
      %p214 = scmp.ne.s32.totalorder %s205, %s206
      %p215 = scmp.eq.s32.totalorder %s48, 0
      %p216 = por %p214, %p215
      %p217 = scmp.ne.s32.totalorder %s205, %s206
      %p218 = scmp.eq.s32.totalorder %s49, 1
      %p219 = por %p217, %p218
      %p221 = scmp.ne.s32.totalorder %s206, %s220
      %p222 = scmp.eq.s32.totalorder %s49, 0
      %p223 = por %p221, %p222
      %s225 = sadd.s32 %s224, 1
      %p228 = scmp.eq.s32.totalorder %s43, 1
      %p229 = scmp.ne.s32.totalorder %s224, %s226
      %p230 = scmp.eq.s32.totalorder %s43, 0
      %p231 = por %p229, %p230
      %p232 = scmp.ne.s32.totalorder %s224, %s226
      %p233 = scmp.eq.s32.totalorder %s48, 1
      %p234 = por %p232, %p233
      %p235 = scmp.ne.s32.totalorder %s226, %s227
      %p236 = scmp.eq.s32.totalorder %s48, 0
      %p237 = por %p235, %p236
      %p238 = scmp.ne.s32.totalorder %s226, %s227
      %p239 = scmp.eq.s32.totalorder %s49, 1
      %p240 = por %p238, %p239
      %p242 = scmp.ne.s32.totalorder %s227, %s241
      %p243 = scmp.eq.s32.totalorder %s49, 0
      %p244 = por %p242, %p243
      %s246 = sadd.s32 %s245, 1
      %p249 = scmp.eq.s32.totalorder %s43, 1
      %p250 = scmp.ne.s32.totalorder %s245, %s247
      %p251 = scmp.eq.s32.totalorder %s43, 0
      %p252 = por %p250, %p251
      %p253 = scmp.ne.s32.totalorder %s245, %s247
      %p254 = scmp.eq.s32.totalorder %s48, 1
      %p255 = por %p253, %p254
      %p256 = scmp.ne.s32.totalorder %s247, %s248
      %p257 = scmp.eq.s32.totalorder %s48, 0
      %p258 = por %p256, %p257
      %p259 = scmp.ne.s32.totalorder %s247, %s248
      %p260 = scmp.eq.s32.totalorder %s49, 1
      %p261 = por %p259, %p260
      %p263 = scmp.ne.s32.totalorder %s248, %s262
      %p264 = scmp.eq.s32.totalorder %s49, 0
      %p265 = por %p263, %p264
      %s267 = sadd.s32 %s266, 1
      %p270 = scmp.eq.s32.totalorder %s43, 1
      %p271 = scmp.ne.s32.totalorder %s266, %s268
      %p272 = scmp.eq.s32.totalorder %s43, 0
      %p273 = por %p271, %p272
      %p274 = scmp.ne.s32.totalorder %s266, %s268
      %p275 = scmp.eq.s32.totalorder %s48, 1
      %p276 = por %p274, %p275
      %p277 = scmp.ne.s32.totalorder %s268, %s269
      %p278 = scmp.eq.s32.totalorder %s48, 0
      %p279 = por %p277, %p278
      %p280 = scmp.ne.s32.totalorder %s268, %s269
      %p281 = scmp.eq.s32.totalorder %s49, 1
      %p282 = por %p280, %p281
      %p284 = scmp.ne.s32.totalorder %s269, %s283
      %p285 = scmp.eq.s32.totalorder %s49, 0
      %p286 = por %p284, %p285
      %s288 = sadd.s32 %s287, 1
      %p291 = scmp.eq.s32.totalorder %s43, 1
      %p292 = scmp.ne.s32.totalorder %s287, %s289
      %p293 = scmp.eq.s32.totalorder %s43, 0
      %p294 = por %p292, %p293
      %p295 = scmp.ne.s32.totalorder %s287, %s289
      %p296 = scmp.eq.s32.totalorder %s48, 1
      %p297 = por %p295, %p296
      %p298 = scmp.ne.s32.totalorder %s289, %s290
      %p299 = scmp.eq.s32.totalorder %s48, 0
      %p300 = por %p298, %p299
      %p301 = scmp.ne.s32.totalorder %s289, %s290
      %p302 = scmp.eq.s32.totalorder %s49, 1
      %p303 = por %p301, %p302
      %p305 = scmp.ne.s32.totalorder %s290, %s304
      %p306 = scmp.eq.s32.totalorder %s49, 0
      %p307 = por %p305, %p306
      %s309 = sadd.s32 %s308, 1
      %p312 = scmp.eq.s32.totalorder %s43, 1
      %p313 = scmp.ne.s32.totalorder %s308, %s310
      %p314 = scmp.eq.s32.totalorder %s43, 0
      %p315 = por %p313, %p314
      %p316 = scmp.ne.s32.totalorder %s308, %s310
      %p317 = scmp.eq.s32.totalorder %s48, 1
      %p318 = por %p316, %p317
      %p319 = scmp.ne.s32.totalorder %s310, %s311
      %p320 = scmp.eq.s32.totalorder %s48, 0
      %p321 = por %p319, %p320
      %p322 = scmp.ne.s32.totalorder %s310, %s311
      %p323 = scmp.eq.s32.totalorder %s49, 1
      %p324 = por %p322, %p323
      %p326 = scmp.ne.s32.totalorder %s311, %s325
      %p327 = scmp.eq.s32.totalorder %s49, 0
      %p328 = por %p326, %p327
      %s330 = sadd.s32 %s329, 1
      %p333 = scmp.eq.s32.totalorder %s43, 1
      %p334 = scmp.ne.s32.totalorder %s329, %s331
      %p335 = scmp.eq.s32.totalorder %s43, 0
      %p336 = por %p334, %p335
      %p337 = scmp.ne.s32.totalorder %s329, %s331
      %p338 = scmp.eq.s32.totalorder %s48, 1
      %p339 = por %p337, %p338
      %p340 = scmp.ne.s32.totalorder %s331, %s332
      %p341 = scmp.eq.s32.totalorder %s48, 0
      %p342 = por %p340, %p341
      %p343 = scmp.ne.s32.totalorder %s331, %s332
      %p344 = scmp.eq.s32.totalorder %s49, 1
      %p345 = por %p343, %p344
      %p347 = scmp.ne.s32.totalorder %s332, %s346
      %p348 = scmp.eq.s32.totalorder %s49, 0
      %p349 = por %p347, %p348
      %s351 = sadd.s32 %s350, 1
      %p354 = scmp.eq.s32.totalorder %s43, 1
      %p355 = scmp.ne.s32.totalorder %s350, %s352
      %p356 = scmp.eq.s32.totalorder %s43, 0
      %p357 = por %p355, %p356
      %p358 = scmp.ne.s32.totalorder %s350, %s352
      %p359 = scmp.eq.s32.totalorder %s48, 1
      %p360 = por %p358, %p359
      %p361 = scmp.ne.s32.totalorder %s352, %s353
      %p362 = scmp.eq.s32.totalorder %s48, 0
      %p363 = por %p361, %p362
      %p364 = scmp.ne.s32.totalorder %s352, %s353
      %p365 = scmp.eq.s32.totalorder %s49, 1
      %p366 = por %p364, %p365
      %p368 = scmp.ne.s32.totalorder %s353, %s367
      %p369 = scmp.eq.s32.totalorder %s49, 0
      %p370 = por %p368, %p369
      %s372 = sadd.s32 %s371, 1
      %p375 = scmp.eq.s32.totalorder %s43, 1
      %p376 = scmp.ne.s32.totalorder %s371, %s373
      %p377 = scmp.eq.s32.totalorder %s43, 0
      %p378 = por %p376, %p377
      %p379 = scmp.ne.s32.totalorder %s371, %s373
      %p380 = scmp.eq.s32.totalorder %s48, 1
      %p381 = por %p379, %p380
      %p382 = scmp.ne.s32.totalorder %s373, %s374
      %p383 = scmp.eq.s32.totalorder %s48, 0
      %p384 = por %p382, %p383
      %p385 = scmp.ne.s32.totalorder %s373, %s374
      %p386 = scmp.eq.s32.totalorder %s49, 1
      %p387 = por %p385, %p386
      %p389 = scmp.ne.s32.totalorder %s374, %s388
      %p390 = scmp.eq.s32.totalorder %s49, 0
      %p391 = por %p389, %p390
      %s393 = sadd.s32 %s392, 1
      %p396 = scmp.eq.s32.totalorder %s43, 1
      %p397 = scmp.ne.s32.totalorder %s392, %s394
      %p398 = scmp.eq.s32.totalorder %s43, 0
      %p399 = por %p397, %p398
      %p400 = scmp.ne.s32.totalorder %s392, %s394
      %p401 = scmp.eq.s32.totalorder %s48, 1
      %p402 = por %p400, %p401
      %p403 = scmp.ne.s32.totalorder %s394, %s395
      %p404 = scmp.eq.s32.totalorder %s48, 0
      %p405 = por %p403, %p404
      %p406 = scmp.ne.s32.totalorder %s394, %s395
      %p407 = scmp.eq.s32.totalorder %s49, 1
      %p408 = por %p406, %p407
      %p410 = scmp.ne.s32.totalorder %s395, %s409
      %p411 = scmp.eq.s32.totalorder %s49, 0
      %p412 = por %p410, %p411
      %s414 = sadd.s32 %s413, 1
      %p417 = scmp.eq.s32.totalorder %s43, 1
      %p418 = scmp.ne.s32.totalorder %s413, %s415
      %p419 = scmp.eq.s32.totalorder %s43, 0
      %p420 = por %p418, %p419
      %p421 = scmp.ne.s32.totalorder %s413, %s415
      %p422 = scmp.eq.s32.totalorder %s48, 1
      %p423 = por %p421, %p422
      %p424 = scmp.ne.s32.totalorder %s415, %s416
      %p425 = scmp.eq.s32.totalorder %s48, 0
      %p426 = por %p424, %p425
      %p427 = scmp.ne.s32.totalorder %s415, %s416
      %p428 = scmp.eq.s32.totalorder %s49, 1
      %p429 = por %p427, %p428
      %p431 = scmp.ne.s32.totalorder %s416, %s430
      %p432 = scmp.eq.s32.totalorder %s49, 0
      %p433 = por %p431, %p432
      %s435 = sadd.s32 %s434, 1
      %p438 = scmp.eq.s32.totalorder %s43, 1
      %p439 = scmp.ne.s32.totalorder %s434, %s436
      %p440 = scmp.eq.s32.totalorder %s43, 0
      %p441 = por %p439, %p440
      %p442 = scmp.ne.s32.totalorder %s434, %s436
      %p443 = scmp.eq.s32.totalorder %s48, 1
      %p444 = por %p442, %p443
      %p445 = scmp.ne.s32.totalorder %s436, %s437
      %p446 = scmp.eq.s32.totalorder %s48, 0
      %p447 = por %p445, %p446
      %p448 = scmp.ne.s32.totalorder %s436, %s437
      %p449 = scmp.eq.s32.totalorder %s49, 1
      %p450 = por %p448, %p449
      %p452 = scmp.ne.s32.totalorder %s437, %s451
      %p453 = scmp.eq.s32.totalorder %s49, 0
      %p454 = por %p452, %p453
      %s456 = sadd.s32 %s455, 1
      %p459 = scmp.eq.s32.totalorder %s43, 1
      %p460 = scmp.ne.s32.totalorder %s455, %s457
      %p461 = scmp.eq.s32.totalorder %s43, 0
      %p462 = por %p460, %p461
      %p463 = scmp.ne.s32.totalorder %s455, %s457
      %p464 = scmp.eq.s32.totalorder %s48, 1
      %p465 = por %p463, %p464
      %p466 = scmp.ne.s32.totalorder %s457, %s458
      %p467 = scmp.eq.s32.totalorder %s48, 0
      %p468 = por %p466, %p467
      %p469 = scmp.ne.s32.totalorder %s457, %s458
      %p470 = scmp.eq.s32.totalorder %s49, 1
      %p471 = por %p469, %p470
      %p473 = scmp.ne.s32.totalorder %s458, %s472
      %p474 = scmp.eq.s32.totalorder %s49, 0
      %p475 = por %p473, %p474
      %s477 = sadd.s32 %s476, 1
      %p480 = scmp.eq.s32.totalorder %s43, 1
      %p481 = scmp.ne.s32.totalorder %s476, %s478
      %p482 = scmp.eq.s32.totalorder %s43, 0
      %p483 = por %p481, %p482
      %p484 = scmp.ne.s32.totalorder %s476, %s478
      %p485 = scmp.eq.s32.totalorder %s48, 1
      %p486 = por %p484, %p485
      %p487 = scmp.ne.s32.totalorder %s478, %s479
      %p488 = scmp.eq.s32.totalorder %s48, 0
      %p489 = por %p487, %p488
      %p490 = scmp.ne.s32.totalorder %s478, %s479
      %p491 = scmp.eq.s32.totalorder %s49, 1
      %p492 = por %p490, %p491
      %p494 = scmp.ne.s32.totalorder %s479, %s493
      %p495 = scmp.eq.s32.totalorder %s49, 0
      %p496 = por %p494, %p495
      %s498 = sadd.s32 %s497, 1
      %p501 = scmp.eq.s32.totalorder %s43, 1
      %p502 = scmp.ne.s32.totalorder %s497, %s499
      %p503 = scmp.eq.s32.totalorder %s43, 0
      %p504 = por %p502, %p503
      %p505 = scmp.ne.s32.totalorder %s497, %s499
      %p506 = scmp.eq.s32.totalorder %s48, 1
      %p507 = por %p505, %p506
      %p508 = scmp.ne.s32.totalorder %s499, %s500
      %p509 = scmp.eq.s32.totalorder %s48, 0
      %p510 = por %p508, %p509
      %p511 = scmp.ne.s32.totalorder %s499, %s500
      %p512 = scmp.eq.s32.totalorder %s49, 1
      %p513 = por %p511, %p512
      %p515 = scmp.ne.s32.totalorder %s500, %s514
      %p516 = scmp.eq.s32.totalorder %s49, 0
      %p517 = por %p515, %p516
      %s519 = sadd.s32 %s518, 1
      %p522 = scmp.eq.s32.totalorder %s43, 1
      %p523 = scmp.ne.s32.totalorder %s518, %s520
      %p524 = scmp.eq.s32.totalorder %s43, 0
      %p525 = por %p523, %p524
      %p526 = scmp.ne.s32.totalorder %s518, %s520
      %p527 = scmp.eq.s32.totalorder %s48, 1
      %p528 = por %p526, %p527
      %p529 = scmp.ne.s32.totalorder %s520, %s521
      %p530 = scmp.eq.s32.totalorder %s48, 0
      %p531 = por %p529, %p530
      %p532 = scmp.ne.s32.totalorder %s520, %s521
      %p533 = scmp.eq.s32.totalorder %s49, 1
      %p534 = por %p532, %p533
      %p536 = scmp.ne.s32.totalorder %s521, %s535
      %p537 = scmp.eq.s32.totalorder %s49, 0
      %p538 = por %p536, %p537
      %s540 = sadd.s32 %s539, 1
      %p543 = scmp.eq.s32.totalorder %s43, 1
      %p544 = scmp.ne.s32.totalorder %s539, %s541
      %p545 = scmp.eq.s32.totalorder %s43, 0
      %p546 = por %p544, %p545
      %p547 = scmp.ne.s32.totalorder %s539, %s541
      %p548 = scmp.eq.s32.totalorder %s48, 1
      %p549 = por %p547, %p548
      %p550 = scmp.ne.s32.totalorder %s541, %s542
      %p551 = scmp.eq.s32.totalorder %s48, 0
      %p552 = por %p550, %p551
      %p553 = scmp.ne.s32.totalorder %s541, %s542
      %p554 = scmp.eq.s32.totalorder %s49, 1
      %p555 = por %p553, %p554
      %p557 = scmp.ne.s32.totalorder %s542, %s556
      %p558 = scmp.eq.s32.totalorder %s49, 0
      %p559 = por %p557, %p558
      %s561 = sadd.s32 %s560, 1
      %p564 = scmp.eq.s32.totalorder %s43, 1
      %p565 = scmp.ne.s32.totalorder %s560, %s562
      %p566 = scmp.eq.s32.totalorder %s43, 0
      %p567 = por %p565, %p566
      %p568 = scmp.ne.s32.totalorder %s560, %s562
      %p569 = scmp.eq.s32.totalorder %s48, 1
      %p570 = por %p568, %p569
      %p571 = scmp.ne.s32.totalorder %s562, %s563
      %p572 = scmp.eq.s32.totalorder %s48, 0
      %p573 = por %p571, %p572
      %p574 = scmp.ne.s32.totalorder %s562, %s563
      %p575 = scmp.eq.s32.totalorder %s49, 1
      %p576 = por %p574, %p575
      %p578 = scmp.ne.s32.totalorder %s563, %s577
      %p579 = scmp.eq.s32.totalorder %s49, 0
      %p580 = por %p578, %p579
      %s582 = sadd.s32 %s581, 1
      %p585 = scmp.eq.s32.totalorder %s43, 1
      %p586 = scmp.ne.s32.totalorder %s581, %s583
      %p587 = scmp.eq.s32.totalorder %s43, 0
      %p588 = por %p586, %p587
      %p589 = scmp.ne.s32.totalorder %s581, %s583
      %p590 = scmp.eq.s32.totalorder %s48, 1
      %p591 = por %p589, %p590
      %p592 = scmp.ne.s32.totalorder %s583, %s584
      %p593 = scmp.eq.s32.totalorder %s48, 0
      %p594 = por %p592, %p593
      %p595 = scmp.ne.s32.totalorder %s583, %s584
      %p596 = scmp.eq.s32.totalorder %s49, 1
      %p597 = por %p595, %p596
      %p599 = scmp.ne.s32.totalorder %s584, %s598
      %p600 = scmp.eq.s32.totalorder %s49, 0
      %p601 = por %p599, %p600
      %s603 = sadd.s32 %s602, 1
      %p606 = scmp.eq.s32.totalorder %s43, 1
      %p607 = scmp.ne.s32.totalorder %s602, %s604
      %p608 = scmp.eq.s32.totalorder %s43, 0
      %p609 = por %p607, %p608
      %p610 = scmp.ne.s32.totalorder %s602, %s604
      %p611 = scmp.eq.s32.totalorder %s48, 1
      %p612 = por %p610, %p611
      %p613 = scmp.ne.s32.totalorder %s604, %s605
      %p614 = scmp.eq.s32.totalorder %s48, 0
      %p615 = por %p613, %p614
      %p616 = scmp.ne.s32.totalorder %s604, %s605
      %p617 = scmp.eq.s32.totalorder %s49, 1
      %p618 = por %p616, %p617
      %p620 = scmp.ne.s32.totalorder %s605, %s619
      %p621 = scmp.eq.s32.totalorder %s49, 0
      %p622 = por %p620, %p621
      %s623 = ssub.s32 %s43, %s50
      %p624 = scmp.eq.s32.totalorder %s623, 0
      %s626 = sadd.s32 %s625, 1
      %s627 = scalar_select %p624, %s625, %s626
      %p630 = pneg %p624
      %p631 = scmp.eq.s32.totalorder %s43, 1
      %p632 = por %p630, %p631
      %p633 = scmp.ne.s32.totalorder %s625, %s628
      %p634 = scmp.eq.s32.totalorder %s43, 0
      %p635 = por %p633, %p634
      %p636 = scmp.ne.s32.totalorder %s625, %s628
      %p637 = scmp.eq.s32.totalorder %s48, 1
      %p638 = por %p636, %p637
      %p639 = scmp.ne.s32.totalorder %s628, %s629
      %p640 = scmp.eq.s32.totalorder %s48, 0
      %p641 = por %p639, %p640
      %p642 = scmp.ne.s32.totalorder %s628, %s629
      %p643 = scmp.eq.s32.totalorder %s49, 1
      %p644 = por %p642, %p643
      %p646 = scmp.ne.s32.totalorder %s629, %s645
      %p647 = scmp.eq.s32.totalorder %s49, 0
      %p648 = por %p646, %p647
      %p649 = scmp.le.s32.totalorder 1, %s43
      %p650 = scmp.lt.s32.totalorder %s43, 3
      %p651 = pnand %p649, %p650
      %p652 = pneg %p651
      // Predicated region
      $region9: #{_lambda_.1} parent=5 // pred_check
        _
      $region10: #{_lambda_.1} parent=5 // pred_check_branch
        %654 = sbr.rel (%p651) target = $region12
      $region11: #{_lambda_.1} parent=5 // pred_region
        %s655 = ssub.s32 %s43, 1
        // Predicated region
        $region13: #{_lambda_.1} parent=11 // pred_check
          %p656 = pneg %p90
        $region14: #{_lambda_.1} parent=11 // pred_check_branch
          %658 = sbr.rel (%p656) target = $region16
        $region15: #{_lambda_.1} parent=11 // pred_region
          %s660 = ssub.s32 128, 128
          %661 = vsyncadd [#allocation3], %s660
          %s662 = sshll.u32 [#allocation2], 4
          %s663 = int_to_ptr.vmem [resolvable:$true] %s662
          %668 = dma.hbm_to_vmem [thread:$0]  %s1, 128, %s663, [#allocation3], 64, 64, 4
        $region16: #{_lambda_.1} parent=11 // pred_fallthru
          _
        // Predicated region
        $region17: #{_lambda_.1} parent=11 // pred_check
          %p669 = pneg %p111
        $region18: #{_lambda_.1} parent=11 // pred_check_branch
          %671 = sbr.rel (%p669) target = $region20
        $region19: #{_lambda_.1} parent=11 // pred_region
          %s673 = ssub.s32 16, 16
          %674 = vsyncadd [#allocation6], %s673
          %s676 = sshll.u32 [#allocation5], 4
          %s677 = int_to_ptr.vmem [resolvable:$true] %s676
          %679 = dma.hbm_to_vmem [thread:$0]  %s2, 16, %s677, [#allocation6]
        $region20: #{_lambda_.1} parent=11 // pred_fallthru
          _
        // Predicated region
        $region21: #{_lambda_.1} parent=11 // pred_check
          %p680 = pneg %p132
        $region22: #{_lambda_.1} parent=11 // pred_check_branch
          %682 = sbr.rel (%p680) target = $region24
        $region23: #{_lambda_.1} parent=11 // pred_region
          _
        $region24: #{_lambda_.1} parent=11 // pred_fallthru
          _
        // Predicated region
        $region25: #{_lambda_.1} parent=11 // pred_check
          %p683 = pneg %p153
        $region26: #{_lambda_.1} parent=11 // pred_check_branch
          %685 = sbr.rel (%p683) target = $region28
        $region27: #{_lambda_.1} parent=11 // pred_region
          %s687 = ssub.s32 16, 16
          %688 = vsyncadd [#allocation6], %s687
          %s690 = sshll.u32 [#allocation7], 4
          %s691 = int_to_ptr.vmem [resolvable:$true] %s690
          %693 = dma.hbm_to_vmem [thread:$0]  %s4, 16, %s691, [#allocation6]
        $region28: #{_lambda_.1} parent=11 // pred_fallthru
          _
        // Predicated region
        $region29: #{_lambda_.1} parent=11 // pred_check
          %p694 = pneg %p174
        $region30: #{_lambda_.1} parent=11 // pred_check_branch
          %696 = sbr.rel (%p694) target = $region32
        $region31: #{_lambda_.1} parent=11 // pred_region
          _
        $region32: #{_lambda_.1} parent=11 // pred_fallthru
          _
        // Predicated region
        $region33: #{_lambda_.1} parent=11 // pred_check
          %p697 = pneg %p195
        $region34: #{_lambda_.1} parent=11 // pred_check_branch
          %699 = sbr.rel (%p697) target = $region36
        $region35: #{_lambda_.1} parent=11 // pred_region
          _
        $region36: #{_lambda_.1} parent=11 // pred_fallthru
          _
        // Predicated region
        $region37: #{_lambda_.1} parent=11 // pred_check
          %p700 = pneg %p216
        $region38: #{_lambda_.1} parent=11 // pred_check_branch
          %702 = sbr.rel (%p700) target = $region40
        $region39: #{_lambda_.1} parent=11 // pred_region
          _
        $region40: #{_lambda_.1} parent=11 // pred_fallthru
          _
        // Predicated region
        $region41: #{_lambda_.1} parent=11 // pred_check
          %p703 = pneg %p237
        $region42: #{_lambda_.1} parent=11 // pred_check_branch
          %705 = sbr.rel (%p703) target = $region44
        $region43: #{_lambda_.1} parent=11 // pred_region
          _
        $region44: #{_lambda_.1} parent=11 // pred_fallthru
          _
        // Predicated region
        $region45: #{_lambda_.1} parent=11 // pred_check
          %p706 = pneg %p258
        $region46: #{_lambda_.1} parent=11 // pred_check_branch
          %708 = sbr.rel (%p706) target = $region48
        $region47: #{_lambda_.1} parent=11 // pred_region
          _
        $region48: #{_lambda_.1} parent=11 // pred_fallthru
          _
        // Predicated region
        $region49: #{_lambda_.1} parent=11 // pred_check
          %p709 = pneg %p279
        $region50: #{_lambda_.1} parent=11 // pred_check_branch
          %711 = sbr.rel (%p709) target = $region52
        $region51: #{_lambda_.1} parent=11 // pred_region
          %s713 = ssub.s32 32, 32
          %714 = vsyncadd [#allocation9], %s713
          %s715 = sshll.u32 [#allocation8], 4
          %s716 = int_to_ptr.vmem [resolvable:$true] %s715
          %721 = dma.hbm_to_vmem [thread:$0]  %s10, 32, %s716, [#allocation9], 16, 16, 1
        $region52: #{_lambda_.1} parent=11 // pred_fallthru
          _
        // Predicated region
        $region53: #{_lambda_.1} parent=11 // pred_check
          %p722 = pneg %p300
        $region54: #{_lambda_.1} parent=11 // pred_check_branch
          %724 = sbr.rel (%p722) target = $region56
        $region55: #{_lambda_.1} parent=11 // pred_region
          _
        $region56: #{_lambda_.1} parent=11 // pred_fallthru
          _
        // Predicated region
        $region57: #{_lambda_.1} parent=11 // pred_check
          %p725 = pneg %p321
        $region58: #{_lambda_.1} parent=11 // pred_check_branch
          %727 = sbr.rel (%p725) target = $region60
        $region59: #{_lambda_.1} parent=11 // pred_region
          %s729 = ssub.s32 32, 32
          %730 = vsyncadd [#allocation9], %s729
          %s731 = sshll.u32 [#allocation10], 4
          %s732 = int_to_ptr.vmem [resolvable:$true] %s731
          %737 = dma.hbm_to_vmem [thread:$0]  %s12, 32, %s732, [#allocation9], 16, 16, 1
        $region60: #{_lambda_.1} parent=11 // pred_fallthru
          _
        // Predicated region
        $region61: #{_lambda_.1} parent=11 // pred_check
          %p738 = pneg %p342
        $region62: #{_lambda_.1} parent=11 // pred_check_branch
          %740 = sbr.rel (%p738) target = $region64
        $region63: #{_lambda_.1} parent=11 // pred_region
          %s742 = ssub.s32 32, 32
          %743 = vsyncadd [#allocation12], %s742
          %s744 = sshll.u32 [#allocation11], 4
          %s745 = int_to_ptr.vmem [resolvable:$true] %s744
          %750 = dma.hbm_to_vmem [thread:$0]  %s13, 32, %s745, [#allocation12], 16, 16, 1
        $region64: #{_lambda_.1} parent=11 // pred_fallthru
          _
        // Predicated region
        $region65: #{_lambda_.1} parent=11 // pred_check
          %p751 = pneg %p363
        $region66: #{_lambda_.1} parent=11 // pred_check_branch
          %753 = sbr.rel (%p751) target = $region68
        $region67: #{_lambda_.1} parent=11 // pred_region
          %s755 = ssub.s32 32, 32
          %756 = vsyncadd [#allocation12], %s755
          %s757 = sshll.u32 [#allocation13], 4
          %s758 = int_to_ptr.vmem [resolvable:$true] %s757
          %763 = dma.hbm_to_vmem [thread:$0]  %s14, 32, %s758, [#allocation12], 16, 16, 1
        $region68: #{_lambda_.1} parent=11 // pred_fallthru
          _
        // Predicated region
        $region69: #{_lambda_.1} parent=11 // pred_check
          %p764 = pneg %p384
        $region70: #{_lambda_.1} parent=11 // pred_check_branch
          %766 = sbr.rel (%p764) target = $region72
        $region71: #{_lambda_.1} parent=11 // pred_region
          _
        $region72: #{_lambda_.1} parent=11 // pred_fallthru
          _
        // Predicated region
        $region73: #{_lambda_.1} parent=11 // pred_check
          %p767 = pneg %p405
        $region74: #{_lambda_.1} parent=11 // pred_check_branch
          %769 = sbr.rel (%p767) target = $region76
        $region75: #{_lambda_.1} parent=11 // pred_region
          _
        $region76: #{_lambda_.1} parent=11 // pred_fallthru
          _
        // Predicated region
        $region77: #{_lambda_.1} parent=11 // pred_check
          %p770 = pneg %p426
        $region78: #{_lambda_.1} parent=11 // pred_check_branch
          %772 = sbr.rel (%p770) target = $region80
        $region79: #{_lambda_.1} parent=11 // pred_region
          _
        $region80: #{_lambda_.1} parent=11 // pred_fallthru
          _
        // Predicated region
        $region81: #{_lambda_.1} parent=11 // pred_check
          %p773 = pneg %p447
        $region82: #{_lambda_.1} parent=11 // pred_check_branch
          %775 = sbr.rel (%p773) target = $region84
        $region83: #{_lambda_.1} parent=11 // pred_region
          _
        $region84: #{_lambda_.1} parent=11 // pred_fallthru
          _
        // Predicated region
        $region85: #{_lambda_.1} parent=11 // pred_check
          %p776 = pneg %p468
        $region86: #{_lambda_.1} parent=11 // pred_check_branch
          %778 = sbr.rel (%p776) target = $region88
        $region87: #{_lambda_.1} parent=11 // pred_region
          _
        $region88: #{_lambda_.1} parent=11 // pred_fallthru
          _
        // Predicated region
        $region89: #{_lambda_.1} parent=11 // pred_check
          %p779 = pneg %p489
        $region90: #{_lambda_.1} parent=11 // pred_check_branch
          %781 = sbr.rel (%p779) target = $region92
        $region91: #{_lambda_.1} parent=11 // pred_region
          _
        $region92: #{_lambda_.1} parent=11 // pred_fallthru
          _
        // Predicated region
        $region93: #{_lambda_.1} parent=11 // pred_check
          %p782 = pneg %p510
        $region94: #{_lambda_.1} parent=11 // pred_check_branch
          %784 = sbr.rel (%p782) target = $region96
        $region95: #{_lambda_.1} parent=11 // pred_region
          %s786 = ssub.s32 16, 16
          %787 = vsyncadd [#allocation15], %s786
          %s789 = sshll.u32 [#allocation14], 4
          %s790 = int_to_ptr.vmem [resolvable:$true] %s789
          %792 = dma.hbm_to_vmem [thread:$0]  %s21, 16, %s790, [#allocation15]
        $region96: #{_lambda_.1} parent=11 // pred_fallthru
          _
        // Predicated region
        $region97: #{_lambda_.1} parent=11 // pred_check
          %p793 = pneg %p531
        $region98: #{_lambda_.1} parent=11 // pred_check_branch
          %795 = sbr.rel (%p793) target = $region100
        $region99: #{_lambda_.1} parent=11 // pred_region
          %s797 = ssub.s32 16, 16
          %798 = vsyncadd [#allocation15], %s797
          %s800 = sshll.u32 [#allocation16], 4
          %s801 = int_to_ptr.vmem [resolvable:$true] %s800
          %803 = dma.hbm_to_vmem [thread:$0]  %s22, 16, %s801, [#allocation15]
        $region100: #{_lambda_.1} parent=11 // pred_fallthru
          _
        // Predicated region
        $region101: #{_lambda_.1} parent=11 // pred_check
          %p804 = pneg %p552
        $region102: #{_lambda_.1} parent=11 // pred_check_branch
          %806 = sbr.rel (%p804) target = $region104
        $region103: #{_lambda_.1} parent=11 // pred_region
          %s808 = ssub.s32 256, 256
          %809 = vsyncadd [#allocation18], %s808
          %s810 = sshll.u32 [#allocation17], 4
          %s811 = int_to_ptr.vmem [resolvable:$true] %s810
          %816 = dma.hbm_to_vmem [thread:$0]  %s23, 256, %s811, [#allocation18], 64, 64, 4
        $region104: #{_lambda_.1} parent=11 // pred_fallthru
          _
        // Predicated region
        $region105: #{_lambda_.1} parent=11 // pred_check
          %p817 = pneg %p573
        $region106: #{_lambda_.1} parent=11 // pred_check_branch
          %819 = sbr.rel (%p817) target = $region108
        $region107: #{_lambda_.1} parent=11 // pred_region
          %s821 = ssub.s32 16, 16
          %822 = vsyncadd [#allocation18], %s821
          %s824 = sshll.u32 [#allocation19], 4
          %s825 = int_to_ptr.vmem [resolvable:$true] %s824
          %827 = dma.hbm_to_vmem [thread:$0]  %s24, 16, %s825, [#allocation18]
        $region108: #{_lambda_.1} parent=11 // pred_fallthru
          _
        // Predicated region
        $region109: #{_lambda_.1} parent=11 // pred_check
          %p828 = pneg %p594
        $region110: #{_lambda_.1} parent=11 // pred_check_branch
          %830 = sbr.rel (%p828) target = $region112
        $region111: #{_lambda_.1} parent=11 // pred_region
          _
        $region112: #{_lambda_.1} parent=11 // pred_fallthru
          _
        // Predicated region
        $region113: #{_lambda_.1} parent=11 // pred_check
          %p831 = pneg %p615
        $region114: #{_lambda_.1} parent=11 // pred_check_branch
          %833 = sbr.rel (%p831) target = $region116
        $region115: #{_lambda_.1} parent=11 // pred_region
          %s835 = ssub.s32 16, 16
          %836 = vsyncadd [#allocation21], %s835
          %s838 = sshll.u32 [#allocation20], 4
          %s839 = int_to_ptr.vmem [resolvable:$true] %s838
          %841 = dma.hbm_to_vmem [thread:$0]  %s26, 16, %s839, [#allocation21]
        $region116: #{_lambda_.1} parent=11 // pred_fallthru
          _
      $region12: #{_lambda_.1} parent=5 // pred_fallthru
        _
      %p842 = scmp.lt.s32.totalorder %s43, 2
      // Predicated region
      $region117: #{_lambda_.1} parent=5 // pred_check
        %p843 = pneg %p842
      $region118: #{_lambda_.1} parent=5 // pred_check_branch
        %845 = sbr.rel (%p843) target = $region120
      $region119: #{_lambda_.1} parent=5 // pred_region
        // Predicated region
        $region121: #{_lambda_.1} parent=119 // pred_check
          %p846 = pneg %p63
        $region122: #{_lambda_.1} parent=119 // pred_check_branch
          %848 = sbr.rel (%p846) target = $region124
        $region123: #{_lambda_.1} parent=119 // pred_region
          %p849 = scmp.lt.s32.totalorder %s43, 1
          %s850 = scalar_select %p849, %s43, 1
          %s851 = smul.addr %s850, 8
          %s852 = scalar_lea.vmem %s0, %s851
        $region124: #{_lambda_.1} parent=119 // pred_fallthru
          _
      $region120: #{_lambda_.1} parent=5 // pred_fallthru
        _
      %p853 = scmp.le.s32.totalorder 1, %s43
      %p854 = scmp.lt.s32.totalorder %s43, 3
      %p855 = pnand %p853, %p854
      %p856 = pneg %p855
      // Predicated region
      $region125: #{_lambda_.1} parent=5 // pred_check
        _
      $region126: #{_lambda_.1} parent=5 // pred_check_branch
        %858 = sbr.rel (%p855) target = $region128
      $region127: #{_lambda_.1} parent=5 // pred_region
        %s859 = ssub.s32 %s43, 1
        // Predicated region
        $region129: #{_lambda_.1} parent=127 // pred_check
          %p860 = pneg %p90
        $region130: #{_lambda_.1} parent=127 // pred_check_branch
          %862 = sbr.rel (%p860) target = $region132
        $region131: #{_lambda_.1} parent=127 // pred_region
          %863 = dma.done [#allocation3], 128
        $region132: #{_lambda_.1} parent=127 // pred_fallthru
          _
        // Predicated region
        $region133: #{_lambda_.1} parent=127 // pred_check
          %p864 = pneg %p111
        $region134: #{_lambda_.1} parent=127 // pred_check_branch
          %866 = sbr.rel (%p864) target = $region136
        $region135: #{_lambda_.1} parent=127 // pred_region
          %867 = dma.done [#allocation6], 16
        $region136: #{_lambda_.1} parent=127 // pred_fallthru
          _
        // Predicated region
        $region137: #{_lambda_.1} parent=127 // pred_check
          %p868 = pneg %p153
        $region138: #{_lambda_.1} parent=127 // pred_check_branch
          %870 = sbr.rel (%p868) target = $region140
        $region139: #{_lambda_.1} parent=127 // pred_region
          %871 = dma.done [#allocation6], 16
        $region140: #{_lambda_.1} parent=127 // pred_fallthru
          _
        // Predicated region
        $region141: #{_lambda_.1} parent=127 // pred_check
          %p872 = pneg %p279
        $region142: #{_lambda_.1} parent=127 // pred_check_branch
          %874 = sbr.rel (%p872) target = $region144
        $region143: #{_lambda_.1} parent=127 // pred_region
          %875 = dma.done [#allocation9], 32
        $region144: #{_lambda_.1} parent=127 // pred_fallthru
          _
        // Predicated region
        $region145: #{_lambda_.1} parent=127 // pred_check
          %p876 = pneg %p321
        $region146: #{_lambda_.1} parent=127 // pred_check_branch
          %878 = sbr.rel (%p876) target = $region148
        $region147: #{_lambda_.1} parent=127 // pred_region
          %879 = dma.done [#allocation9], 32
        $region148: #{_lambda_.1} parent=127 // pred_fallthru
          _
        // Predicated region
        $region149: #{_lambda_.1} parent=127 // pred_check
          %p880 = pneg %p342
        $region150: #{_lambda_.1} parent=127 // pred_check_branch
          %882 = sbr.rel (%p880) target = $region152
        $region151: #{_lambda_.1} parent=127 // pred_region
          %883 = dma.done [#allocation12], 32
        $region152: #{_lambda_.1} parent=127 // pred_fallthru
          _
        // Predicated region
        $region153: #{_lambda_.1} parent=127 // pred_check
          %p884 = pneg %p363
        $region154: #{_lambda_.1} parent=127 // pred_check_branch
          %886 = sbr.rel (%p884) target = $region156
        $region155: #{_lambda_.1} parent=127 // pred_region
          %887 = dma.done [#allocation12], 32
        $region156: #{_lambda_.1} parent=127 // pred_fallthru
          _
        // Predicated region
        $region157: #{_lambda_.1} parent=127 // pred_check
          %p888 = pneg %p510
        $region158: #{_lambda_.1} parent=127 // pred_check_branch
          %890 = sbr.rel (%p888) target = $region160
        $region159: #{_lambda_.1} parent=127 // pred_region
          %891 = dma.done [#allocation15], 16
        $region160: #{_lambda_.1} parent=127 // pred_fallthru
          _
        // Predicated region
        $region161: #{_lambda_.1} parent=127 // pred_check
          %p892 = pneg %p531
        $region162: #{_lambda_.1} parent=127 // pred_check_branch
          %894 = sbr.rel (%p892) target = $region164
        $region163: #{_lambda_.1} parent=127 // pred_region
          %895 = dma.done [#allocation15], 16
        $region164: #{_lambda_.1} parent=127 // pred_fallthru
          _
        // Predicated region
        $region165: #{_lambda_.1} parent=127 // pred_check
          %p896 = pneg %p552
        $region166: #{_lambda_.1} parent=127 // pred_check_branch
          %898 = sbr.rel (%p896) target = $region168
        $region167: #{_lambda_.1} parent=127 // pred_region
          %899 = dma.done [#allocation18], 256
        $region168: #{_lambda_.1} parent=127 // pred_fallthru
          _
        // Predicated region
        $region169: #{_lambda_.1} parent=127 // pred_check
          %p900 = pneg %p573
        $region170: #{_lambda_.1} parent=127 // pred_check_branch
          %902 = sbr.rel (%p900) target = $region172
        $region171: #{_lambda_.1} parent=127 // pred_region
          %903 = dma.done [#allocation18], 16
        $region172: #{_lambda_.1} parent=127 // pred_fallthru
          _
        // Predicated region
        $region173: #{_lambda_.1} parent=127 // pred_check
          %p904 = pneg %p615
        $region174: #{_lambda_.1} parent=127 // pred_check_branch
          %906 = sbr.rel (%p904) target = $region176
        $region175: #{_lambda_.1} parent=127 // pred_region
          %907 = dma.done [#allocation21], 16
        $region176: #{_lambda_.1} parent=127 // pred_fallthru
          _
        %p908 = scmp.lt.s32.totalorder %s48, 1
        %s909 = scalar_select %p908, %s48, 1
        %s910 = smul.addr %s909, 8
        %s911 = scalar_lea.vmem %s0, %s910
        %p912 = pneg %p69
        %p913 = pneg %p66
        %p914 = pneg %p90
        %p915 = pneg %p87
        %p916 = pneg %p111
        %p917 = pneg %p108
        %p918 = pneg %p132
        %p919 = pneg %p129
        %p920 = pneg %p153
        %p921 = pneg %p150
        %p922 = pneg %p174
        %p923 = pneg %p171
        %p924 = pneg %p195
        %p925 = pneg %p192
        %p926 = pneg %p216
        %p927 = pneg %p213
        %p928 = pneg %p237
        %p929 = pneg %p234
        %p930 = pneg %p258
        %p931 = pneg %p255
        %p932 = pneg %p279
        %p933 = pneg %p276
        %p934 = pneg %p300
        %p935 = pneg %p297
        %p936 = pneg %p321
        %p937 = pneg %p318
        %p938 = pneg %p342
        %p939 = pneg %p339
        %p940 = pneg %p363
        %p941 = pneg %p360
        %p942 = pneg %p384
        %p943 = pneg %p381
        %p944 = pneg %p405
        %p945 = pneg %p402
        %p946 = pneg %p426
        %p947 = pneg %p423
        %p948 = pneg %p447
        %p949 = pneg %p444
        %p950 = pneg %p468
        %p951 = pneg %p465
        %p952 = pneg %p489
        %p953 = pneg %p486
        %p954 = pneg %p510
        %p955 = pneg %p507
        %p956 = pneg %p531
        %p957 = pneg %p528
        %p958 = pneg %p552
        %p959 = pneg %p549
        %p960 = pneg %p573
        %p961 = pneg %p570
        %p962 = pneg %p594
        %p963 = pneg %p591
        %p964 = pneg %p615
        %p965 = pneg %p612
        %p966 = pneg %p641
        %p967 = pneg %p638
        %s968 = sand.u32 %s628, 1
        %s969 = scalar_lea.sflag [#allocation4], %s968
        %s970 = sand.u32 %s628, 1
        %s971 = smul.addr %s970, 8
        %s972 = scalar_lea.vmem [#allocation22], %s971
        %p973 = scmp.lt.s32.totalorder %s48, 1
        %s974 = scalar_select %p973, %s48, 1
        %s975 = smul.addr %s974, 8
        %s976 = scalar_lea.vmem %s0, %s975
        %v978 = vld [vmem:[%s976] sm:$0xff]
        %v979 = vld [vmem:[#allocation2] sm:$0xf]
        %v980 = vld [vmem:[#allocation2 + $0x4] sm:$0xf]
        %v981 = vpack.c.bf16 %v978, %v978
        %v982 = vld [vmem:[#allocation5] sm:$0x1]
        %v984 = vlaneseq
        %v985 = vshrl.u32 %v984, 7
        %v986 = vsub.s32 0, %v985
        %v987 = vrot.slane %v982, %v986
        %v991 = vunpack.c.l.b16 %v979
        %v992 = vunpack.c.l.b16 %v980
        %v993 = vpack.c.b16 %v992, %v991
        %vm995 = vcmask 130048
        %v997 = vsel %vm995, %v981, 0
        %999 = vmatprep.subr.bf16.mxu0 0
        %1000 = vmatpush1.bf16.msra.mxu0 %v993
        %1001 = vmatprep.subr.bf16.mxu0 0
        %1002 = vmatpush1.bf16.msra.mxu0 0
        %1003 = vmatprep.subr.bf16.mxu0 0
        %1004 = vmatpush1.bf16.msra.mxu0 0
        %1005 = vmatprep.subr.bf16.mxu0 0
        %1006 = vmatpush1.bf16.msra.mxu0 0
        %1007 = vmatprep.subr.bf16.mxu0 0
        %1008 = vmatpush1.bf16.msra.mxu0 0
        %1009 = vmatprep.subr.bf16.mxu0 0
        %1010 = vmatpush1.bf16.msra.mxu0 0
        %1011 = vmatprep.subr.bf16.mxu0 0
        %1012 = vmatpush1.bf16.msra.mxu0 0
        %1013 = vmatprep.subr.bf16.mxu0 0
        %1014 = vmatpush1.bf16.msra.mxu0 0
        %1015 = vmatprep.subr.bf16.mxu0 0
        %1016 = vmatpush1.bf16.msra.mxu0 0
        %1017 = vmatprep.subr.bf16.mxu0 0
        %1018 = vmatpush1.bf16.msra.mxu0 0
        %1019 = vmatprep.subr.bf16.mxu0 0
        %1020 = vmatpush1.bf16.msra.mxu0 0
        %1021 = vmatprep.subr.bf16.mxu0 0
        %1022 = vmatpush1.bf16.msra.mxu0 0
        %1023 = vmatprep.subr.bf16.mxu0 0
        %1024 = vmatpush1.bf16.msra.mxu0 0
        %1025 = vmatprep.subr.bf16.mxu0 0
        %1026 = vmatpush1.bf16.msra.mxu0 0
        %1027 = vmatprep.subr.bf16.mxu0 0
        %1028 = vmatpush1.bf16.msra.mxu0 0
        %1029 = vmatprep.subr.bf16.mxu0 0
        %1030 = vmatpush1.bf16.msra.mxu0 0
        %1031 = vmatprep.mubr.bf16.mxu0 0
        %1032 = vmatmul.mubr.bf16.gmra.mrb[0].mxu0 %v997
        %v1033 = vpop.f32.mrb[0].mxu0
        %v1034 = vadd.f32 %v987, %v1033
        %v1035 = vpop.f32.mrb[0].mxu0
        %v1036 = vpop.f32.mrb[0].mxu0
        %v1037 = vpop.f32.mrb[0].mxu0
        %1038 = vdwg.mxu0
        %vm1039 = vcmp.ge.f32.partialorder %v1034, 0.0
        %v1040 = vmul.f32 %v1034, 0.25
        %v1041 = vsel %vm1039, %v1034, %v1040
        %v1042 = vld [vmem:[%s3] sm:$0xf]
        %v1043 = vld [vmem:[%s3 + $0x4] sm:$0xf]
        %v1044 = vld [vmem:[%s3 + $0x8] sm:$0xf]
        %v1045 = vld [vmem:[%s3 + $0xc] sm:$0xf]
        %v1046 = vpack.c.bf16 %v1041, %v1041
        %v1047 = vld [vmem:[#allocation7] sm:$0x1]
        %v1049 = vlaneseq
        %v1050 = vshrl.u32 %v1049, 7
        %v1051 = vsub.s32 0, %v1050
        %v1052 = vrot.slane %v1047, %v1051
        %v1058 = vunpack.c.l.b16 %v1042
        %v1059 = vunpack.c.l.b16 %v1043
        %v1060 = vunpack.c.l.b16 %v1044
        %v1061 = vunpack.c.l.b16 %v1045
        %v1062 = vpack.c.b16 %v1059, %v1058
        %v1063 = vpack.c.b16 %v1061, %v1060
        %vm1066 = vcmask 261120
        %v1068 = vsel %vm1066, %v1046, 0
        %1070 = vmatprep.subr.bf16.mxu0 0
        %1071 = vmatpush1.bf16.msra.mxu0 %v1062
        %1072 = vmatprep.subr.bf16.mxu0 0
        %1073 = vmatpush1.bf16.msra.mxu0 %v1063
        %1074 = vmatprep.subr.bf16.mxu0 0
        %1075 = vmatpush1.bf16.msra.mxu0 0
        %1076 = vmatprep.subr.bf16.mxu0 0
        %1077 = vmatpush1.bf16.msra.mxu0 0
        %1078 = vmatprep.subr.bf16.mxu0 0
        %1079 = vmatpush1.bf16.msra.mxu0 0
        %1080 = vmatprep.subr.bf16.mxu0 0
        %1081 = vmatpush1.bf16.msra.mxu0 0
        %1082 = vmatprep.subr.bf16.mxu0 0
        %1083 = vmatpush1.bf16.msra.mxu0 0
        %1084 = vmatprep.subr.bf16.mxu0 0
        %1085 = vmatpush1.bf16.msra.mxu0 0
        %1086 = vmatprep.subr.bf16.mxu0 0
        %1087 = vmatpush1.bf16.msra.mxu0 0
        %1088 = vmatprep.subr.bf16.mxu0 0
        %1089 = vmatpush1.bf16.msra.mxu0 0
        %1090 = vmatprep.subr.bf16.mxu0 0
        %1091 = vmatpush1.bf16.msra.mxu0 0
        %1092 = vmatprep.subr.bf16.mxu0 0
        %1093 = vmatpush1.bf16.msra.mxu0 0
        %1094 = vmatprep.subr.bf16.mxu0 0
        %1095 = vmatpush1.bf16.msra.mxu0 0
        %1096 = vmatprep.subr.bf16.mxu0 0
        %1097 = vmatpush1.bf16.msra.mxu0 0
        %1098 = vmatprep.subr.bf16.mxu0 0
        %1099 = vmatpush1.bf16.msra.mxu0 0
        %1100 = vmatprep.subr.bf16.mxu0 0
        %1101 = vmatpush1.bf16.msra.mxu0 0
        %1102 = vmatprep.mubr.bf16.mxu0 0
        %1103 = vmatmul.mubr.bf16.gmra.mrb[0].mxu0 %v1068
        %v1104 = vpop.f32.mrb[0].mxu0
        %v1105 = vadd.f32 %v1052, %v1104
        %v1106 = vpop.f32.mrb[0].mxu0
        %v1107 = vpop.f32.mrb[0].mxu0
        %v1108 = vpop.f32.mrb[0].mxu0
        %1109 = vdwg.mxu0
        %vm1110 = vcmp.ge.f32.partialorder %v1105, 0.0
        %v1111 = vmul.f32 %v1105, 0.25
        %v1112 = vsel %vm1110, %v1105, %v1111
        %v1113 = vlaneseq
        %v1114 = vshrl.u32 %v1113, 7
        %v1115 = vadd.s32 %v1114, 8
        %v1116 = vcvt.s32.f32 %v1114
        %v1117 = vcvt.s32.f32 %v1115
        %v1118 = vsub.f32 %v1116, 7.0
        %v1119 = vsub.f32 %v1117, 7.0
        %v1120 = vld [vmem:[%s5] sm:$0x1]
        %v1122 = vlaneseq
        %v1123 = vshrl.u32 %v1122, 7
        %v1124 = vsub.s32 0, %v1123
        %v1125 = vrot.slane %v1120, %v1124
        %v1127 = vmul.f32 %v1118, %v1125
        %v1128 = vmul.f32 %v1119, %v1125
        %v1129 = vld [vmem:[%s6] sm:$0x1]
        %v1131 = vlaneseq
        %v1132 = vshrl.u32 %v1131, 7
        %v1133 = vsub.s32 0, %v1132
        %v1134 = vrot.slane %v1129, %v1133
        %v1136 = vadd.f32 %v1127, %v1134
        %v1137 = vadd.f32 %v1128, %v1134
        %vm1138 = vcmp.ge.f32.partialorder %v1136, 0.0
        %vm1139 = vcmp.ge.f32.partialorder %v1137, 0.0
        %v1140 = vmul.f32 %v1136, 0.25
        %v1141 = vmul.f32 %v1137, 0.25
        %v1142 = vsel %vm1138, %v1136, %v1140
        %v1143 = vsel %vm1139, %v1137, %v1141
        %v1144 = vld [vmem:[%s7] sm:$0xf]
        %v1145 = vld [vmem:[%s7 + $0x4] sm:$0xf]
        %v1146 = vpack.c.bf16 %v1143, %v1142
        %v1147 = vld [vmem:[%s8] sm:$0x1]
        %v1149 = vlaneseq
        %v1150 = vshrl.u32 %v1149, 7
        %v1151 = vsub.s32 0, %v1150
        %v1152 = vrot.slane %v1147, %v1151
        %v1156 = vunpack.c.l.b16 %v1144
        %v1157 = vunpack.c.l.b16 %v1145
        %v1158 = vpack.c.b16 %v1157, %v1156
        %v1161 = vsel %vm995, %v1146, 0
        %1163 = vmatprep.subr.bf16.mxu0 0
        %1164 = vmatpush1.bf16.msra.mxu0 %v1158
        %1165 = vmatprep.subr.bf16.mxu0 0
        %1166 = vmatpush1.bf16.msra.mxu0 0
        %1167 = vmatprep.subr.bf16.mxu0 0
        %1168 = vmatpush1.bf16.msra.mxu0 0
        %1169 = vmatprep.subr.bf16.mxu0 0
        %1170 = vmatpush1.bf16.msra.mxu0 0
        %1171 = vmatprep.subr.bf16.mxu0 0
        %1172 = vmatpush1.bf16.msra.mxu0 0
        %1173 = vmatprep.subr.bf16.mxu0 0
        %1174 = vmatpush1.bf16.msra.mxu0 0
        %1175 = vmatprep.subr.bf16.mxu0 0
        %1176 = vmatpush1.bf16.msra.mxu0 0
        %1177 = vmatprep.subr.bf16.mxu0 0
        %1178 = vmatpush1.bf16.msra.mxu0 0
        %1179 = vmatprep.subr.bf16.mxu0 0
        %1180 = vmatpush1.bf16.msra.mxu0 0
        %1181 = vmatprep.subr.bf16.mxu0 0
        %1182 = vmatpush1.bf16.msra.mxu0 0
        %1183 = vmatprep.subr.bf16.mxu0 0
        %1184 = vmatpush1.bf16.msra.mxu0 0
        %1185 = vmatprep.subr.bf16.mxu0 0
        %1186 = vmatpush1.bf16.msra.mxu0 0
        %1187 = vmatprep.subr.bf16.mxu0 0
        %1188 = vmatpush1.bf16.msra.mxu0 0
        %1189 = vmatprep.subr.bf16.mxu0 0
        %1190 = vmatpush1.bf16.msra.mxu0 0
        %1191 = vmatprep.subr.bf16.mxu0 0
        %1192 = vmatpush1.bf16.msra.mxu0 0
        %1193 = vmatprep.subr.bf16.mxu0 0
        %1194 = vmatpush1.bf16.msra.mxu0 0
        %1195 = vmatprep.mubr.bf16.mxu0 0
        %1196 = vmatmul.mubr.bf16.gmra.mrb[0].mxu0 %v1161
        %v1197 = vpop.f32.mrb[0].mxu0
        %v1198 = vadd.f32 %v1152, %v1197
        %v1199 = vpop.f32.mrb[0].mxu0
        %v1200 = vpop.f32.mrb[0].mxu0
        %v1201 = vadd.f32 %v1152, %v1200
        %v1202 = vpop.f32.mrb[0].mxu0
        %1203 = vdwg.mxu0
        %v1204 = vlaneseq
        %v1205 = vand.u32 %v1204, 127
        %v1206 = vsub.s32 %v1114, 1
        %v1207 = vsub.s32 %v1114, 2
        %v1208 = vsub.s32 %v1114, 3
        %v1209 = vsub.s32 %v1114, 4
        %v1210 = vsub.s32 %v1114, 5
        %v1211 = vsub.s32 %v1114, 6
        %v1212 = vadd.s32 %v1114, 7
        %v1213 = vadd.s32 %v1206, 7
        %v1214 = vadd.s32 %v1207, 7
        %v1215 = vadd.s32 %v1208, 7
        %v1216 = vadd.s32 %v1209, 7
        %v1217 = vadd.s32 %v1210, 7
        %v1218 = vadd.s32 %v1211, 7
        %vm1219 = vcmp.eq.s32.totalorder %v1205, %v1212
        %vm1220 = vcmp.eq.s32.totalorder %v1205, %v1213
        %vm1221 = vcmp.eq.s32.totalorder %v1205, %v1214
        %vm1222 = vcmp.eq.s32.totalorder %v1205, %v1215
        %vm1223 = vcmp.eq.s32.totalorder %v1205, %v1216
        %vm1224 = vcmp.eq.s32.totalorder %v1205, %v1217
        %vm1225 = vcmp.eq.s32.totalorder %v1205, %v1218
        %vm1226 = vcmp.eq.s32.totalorder %v1205, %v1114
        %v1227 = vsel %vm1219, 1, 0
        %v1228 = vsel %vm1220, 1, 0
        %v1229 = vsel %vm1221, 1, 0
        %v1230 = vsel %vm1222, 1, 0
        %v1231 = vsel %vm1223, 1, 0
        %v1232 = vsel %vm1224, 1, 0
        %v1233 = vsel %vm1225, 1, 0
        %v1234 = vsel %vm1226, 1, 0
        %v1235 = vcvt.s32.f32 %v1227
        %v1236 = vcvt.s32.f32 %v1228
        %v1237 = vcvt.s32.f32 %v1229
        %v1238 = vcvt.s32.f32 %v1230
        %v1239 = vcvt.s32.f32 %v1231
        %v1240 = vcvt.s32.f32 %v1232
        %v1241 = vcvt.s32.f32 %v1233
        %v1242 = vcvt.s32.f32 %v1234
        %v1243 = vld [vmem:[#allocation11] sm:$0x1]
        %v1244 = vld [vmem:[#allocation13] sm:$0x1]
        %v1245 = vsel %vm1066, %v1112, 0.0
        %1246 = vadd.xlane.f32.xlu0 %v1245
        %v1247 = vpop.xlane.xlu0 %1246
        %v1248 = vrcp.pop 32.0
        %v1249 = vmul.f32 %v1247, %v1248
        %v1250 = vsub.f32 %v1112, %v1249
        %v1251 = vmul.f32 %v1250, %v1250
        %v1252 = vsel %vm1066, %v1251, 0.0
        %1253 = vadd.xlane.f32.xlu0 %v1252
        %v1254 = vpop.xlane.xlu0 %1253
        %v1255 = vmul.f32 %v1254, %v1248
        %v1256 = vadd.f32 %v1255, 1e-05
        %v1257 = vrsqrt.pop %v1256
        %v1258 = vmul.f32 %v1250, %v1257
        %v1260 = vlaneseq
        %v1261 = vshrl.u32 %v1260, 7
        %v1262 = vsub.s32 0, %v1261
        %v1263 = vrot.slane %v1243, %v1262
        %v1265 = vmul.f32 %v1258, %v1263
        %v1267 = vlaneseq
        %v1268 = vshrl.u32 %v1267, 7
        %v1269 = vsub.s32 0, %v1268
        %v1270 = vrot.slane %v1244, %v1269
        %v1272 = vadd.f32 %v1265, %v1270
        %v1273 = vld [vmem:[%s9] sm:$0xf]
        %v1274 = vld [vmem:[%s9 + $0x4] sm:$0xf]
        %v1275 = vld [vmem:[%s9 + $0x8] sm:$0xf]
        %v1276 = vld [vmem:[%s9 + $0xc] sm:$0xf]
        %v1277 = vpack.c.bf16 %v1272, %v1272
        %v1278 = vld [vmem:[#allocation8] sm:$0x1]
        %v1280 = vlaneseq
        %v1281 = vshrl.u32 %v1280, 7
        %v1282 = vsub.s32 0, %v1281
        %v1283 = vrot.slane %v1278, %v1282
        %v1289 = vunpack.c.l.b16 %v1273
        %v1290 = vunpack.c.l.b16 %v1274
        %v1291 = vunpack.c.l.b16 %v1275
        %v1292 = vunpack.c.l.b16 %v1276
        %v1293 = vpack.c.b16 %v1290, %v1289
        %v1294 = vpack.c.b16 %v1292, %v1291
        %v1298 = vsel %vm1066, %v1277, 0
        %1300 = vmatprep.subr.bf16.mxu0 0
        %1301 = vmatpush1.bf16.msra.mxu0 %v1293
        %1302 = vmatprep.subr.bf16.mxu0 0
        %1303 = vmatpush1.bf16.msra.mxu0 %v1294
        %1304 = vmatprep.subr.bf16.mxu0 0
        %1305 = vmatpush1.bf16.msra.mxu0 0
        %1306 = vmatprep.subr.bf16.mxu0 0
        %1307 = vmatpush1.bf16.msra.mxu0 0
        %1308 = vmatprep.subr.bf16.mxu0 0
        %1309 = vmatpush1.bf16.msra.mxu0 0
        %1310 = vmatprep.subr.bf16.mxu0 0
        %1311 = vmatpush1.bf16.msra.mxu0 0
        %1312 = vmatprep.subr.bf16.mxu0 0
        %1313 = vmatpush1.bf16.msra.mxu0 0
        %1314 = vmatprep.subr.bf16.mxu0 0
        %1315 = vmatpush1.bf16.msra.mxu0 0
        %1316 = vmatprep.subr.bf16.mxu0 0
        %1317 = vmatpush1.bf16.msra.mxu0 0
        %1318 = vmatprep.subr.bf16.mxu0 0
        %1319 = vmatpush1.bf16.msra.mxu0 0
        %1320 = vmatprep.subr.bf16.mxu0 0
        %1321 = vmatpush1.bf16.msra.mxu0 0
        %1322 = vmatprep.subr.bf16.mxu0 0
        %1323 = vmatpush1.bf16.msra.mxu0 0
        %1324 = vmatprep.subr.bf16.mxu0 0
        %1325 = vmatpush1.bf16.msra.mxu0 0
        %1326 = vmatprep.subr.bf16.mxu0 0
        %1327 = vmatpush1.bf16.msra.mxu0 0
        %1328 = vmatprep.subr.bf16.mxu0 0
        %1329 = vmatpush1.bf16.msra.mxu0 0
        %1330 = vmatprep.subr.bf16.mxu0 0
        %1331 = vmatpush1.bf16.msra.mxu0 0
        %1332 = vmatprep.mubr.bf16.mxu0 0
        %1333 = vmatmul.mubr.bf16.gmra.mrb[0].mxu0 %v1298
        %v1334 = vpop.f32.mrb[0].mxu0
        %v1335 = vadd.f32 %v1283, %v1334
        %v1336 = vpop.f32.mrb[0].mxu0
        %v1337 = vpop.f32.mrb[0].mxu0
        %v1338 = vpop.f32.mrb[0].mxu0
        %1339 = vdwg.mxu0
        %v1340 = vpack.c.bf16 %v1335, %v1335
        %v1341 = vpack.c.bf16 %v1201, %v1198
        %v1343 = vsel %vm995, %v1340, 0
        %v1346 = vsel %vm995, %v1341, 0
        %1348 = vmatprep.subr.bf16.mxu0 0
        %1349 = vmatpush1.bf16.xpose.msra.mxu0 %v1346
        %1350 = vmatprep.subr.bf16.mxu0 0
        %1351 = vmatpush1.bf16.xpose.msra.mxu0 0
        %1352 = vmatprep.subr.bf16.mxu0 0
        %1353 = vmatpush1.bf16.xpose.msra.mxu0 0
        %1354 = vmatprep.subr.bf16.mxu0 0
        %1355 = vmatpush1.bf16.xpose.msra.mxu0 0
        %1356 = vmatprep.subr.bf16.mxu0 0
        %1357 = vmatpush1.bf16.xpose.msra.mxu0 0
        %1358 = vmatprep.subr.bf16.mxu0 0
        %1359 = vmatpush1.bf16.xpose.msra.mxu0 0
        %1360 = vmatprep.subr.bf16.mxu0 0
        %1361 = vmatpush1.bf16.xpose.msra.mxu0 0
        %1362 = vmatprep.subr.bf16.mxu0 0
        %1363 = vmatpush1.bf16.xpose.msra.mxu0 0
        %1364 = vmatprep.subr.bf16.mxu0 0
        %1365 = vmatpush1.bf16.xpose.msra.mxu0 0
        %1366 = vmatprep.subr.bf16.mxu0 0
        %1367 = vmatpush1.bf16.xpose.msra.mxu0 0
        %1368 = vmatprep.subr.bf16.mxu0 0
        %1369 = vmatpush1.bf16.xpose.msra.mxu0 0
        %1370 = vmatprep.subr.bf16.mxu0 0
        %1371 = vmatpush1.bf16.xpose.msra.mxu0 0
        %1372 = vmatprep.subr.bf16.mxu0 0
        %1373 = vmatpush1.bf16.xpose.msra.mxu0 0
        %1374 = vmatprep.subr.bf16.mxu0 0
        %1375 = vmatpush1.bf16.xpose.msra.mxu0 0
        %1376 = vmatprep.subr.bf16.mxu0 0
        %1377 = vmatpush1.bf16.xpose.msra.mxu0 0
        %1378 = vmatprep.subr.bf16.mxu0 0
        %1379 = vmatpush1.bf16.xpose.msra.mxu0 0
        %1380 = vmatprep.mubr.bf16.mxu0 0
        %1381 = vmatmul.mubr.bf16.gmra.mrb[0].mxu0 %v1343
        %v1382 = vpop.f32.mrb[0].mxu0
        %v1383 = vadd.f32 0.0, %v1382
        %v1384 = vpop.f32.mrb[0].mxu0
        %v1385 = vpop.f32.mrb[0].mxu0
        %v1386 = vpop.f32.mrb[0].mxu0
        %1387 = vdwg.mxu0
        %v1389 = vcombine.high %v1383, %v1383
        %v1391 = vunpack.c.l.s4 1966171168
        %v1392 = vunpack.c.0.s8 %v1391
        %v1393 = vlaneseq
        %v1394 = vshrl.u32 %v1393, 7
        %v1395 = vsub.s32 %v1392, %v1394
        %v1396 = vrot.slane %v1383, %v1395
        %v1398 = vunpack.c.l.s4 1966171168
        %v1399 = vunpack.c.0.s8 %v1398
        %v1400 = vlaneseq
        %v1401 = vshrl.u32 %v1400, 7
        %v1402 = vsub.s32 %v1399, %v1401
        %v1403 = vrot.slane %v1389, %v1402
        %v1404 = vcombine.high %v1396, %v1396
        %v1405 = vcombine.high %v1403, %v1403
        %v1407 = vunpack.c.l.s4 1966171168
        %v1408 = vunpack.c.0.s8 %v1407
        %v1409 = vlaneseq
        %v1410 = vshrl.u32 %v1409, 7
        %v1411 = vsub.s32 %v1408, %v1410
        %v1412 = vrot.slane %v1396, %v1411
        %v1414 = vunpack.c.l.s4 1966171168
        %v1415 = vunpack.c.0.s8 %v1414
        %v1416 = vlaneseq
        %v1417 = vshrl.u32 %v1416, 7
        %v1418 = vsub.s32 %v1415, %v1417
        %v1419 = vrot.slane %v1403, %v1418
        %v1421 = vunpack.c.l.s4 1966171168
        %v1422 = vunpack.c.0.s8 %v1421
        %v1423 = vlaneseq
        %v1424 = vshrl.u32 %v1423, 7
        %v1425 = vsub.s32 %v1422, %v1424
        %v1426 = vrot.slane %v1404, %v1425
        %v1428 = vunpack.c.l.s4 1966171168
        %v1429 = vunpack.c.0.s8 %v1428
        %v1430 = vlaneseq
        %v1431 = vshrl.u32 %v1430, 7
        %v1432 = vsub.s32 %v1429, %v1431
        %v1433 = vrot.slane %v1405, %v1432
        %v1434 = vcombine.high %v1412, %v1412
        %v1435 = vcombine.high %v1419, %v1419
        %v1436 = vcombine.high %v1426, %v1426
        %v1437 = vcombine.high %v1433, %v1433
        %v1438 = vlaneseq
        %v1439 = vshrl.u32 %v1438, 7
        %v1440 = vsub.s32 0, %v1439
        %v1441 = vrot.slane %v1412, %v1440
        %v1442 = vlaneseq
        %v1443 = vshrl.u32 %v1442, 7
        %v1444 = vsub.s32 0, %v1443
        %v1445 = vrot.slane %v1426, %v1444
        %v1446 = vlaneseq
        %v1447 = vshrl.u32 %v1446, 7
        %v1448 = vsub.s32 0, %v1447
        %v1449 = vrot.slane %v1434, %v1448
        %v1450 = vlaneseq
        %v1451 = vshrl.u32 %v1450, 7
        %v1452 = vsub.s32 0, %v1451
        %v1453 = vrot.slane %v1436, %v1452
        %v1454 = vlaneseq
        %v1455 = vshrl.u32 %v1454, 7
        %v1456 = vsub.s32 0, %v1455
        %v1457 = vrot.slane %v1419, %v1456
        %v1458 = vlaneseq
        %v1459 = vshrl.u32 %v1458, 7
        %v1460 = vsub.s32 0, %v1459
        %v1461 = vrot.slane %v1433, %v1460
        %v1462 = vlaneseq
        %v1463 = vshrl.u32 %v1462, 7
        %v1464 = vsub.s32 0, %v1463
        %v1465 = vrot.slane %v1435, %v1464
        %v1466 = vlaneseq
        %v1467 = vshrl.u32 %v1466, 7
        %v1468 = vsub.s32 0, %v1467
        %v1469 = vrot.slane %v1437, %v1468
        %v1478 = vmul.f32 %v1441, %v1235
        %v1479 = vmul.f32 %v1445, %v1236
        %v1480 = vmul.f32 %v1449, %v1237
        %v1481 = vmul.f32 %v1453, %v1238
        %v1482 = vmul.f32 %v1457, %v1239
        %v1483 = vmul.f32 %v1461, %v1240
        %v1484 = vmul.f32 %v1465, %v1241
        %v1485 = vmul.f32 %v1469, %v1242
        %vm1486 = vcmask 121856
        %v1487 = vsel %vm1486, %v1478, 0.0
        %1488 = vadd.xlane.f32.xlu0 %v1487
        %v1489 = vpop.xlane.xlu0 %1488
        %v1490 = vsel %vm1486, %v1479, 0.0
        %1491 = vadd.xlane.f32.xlu0 %v1490
        %v1492 = vpop.xlane.xlu0 %1491
        %v1493 = vsel %vm1486, %v1480, 0.0
        %1494 = vadd.xlane.f32.xlu0 %v1493
        %v1495 = vpop.xlane.xlu0 %1494
        %v1496 = vsel %vm1486, %v1481, 0.0
        %1497 = vadd.xlane.f32.xlu0 %v1496
        %v1498 = vpop.xlane.xlu0 %1497
        %v1499 = vsel %vm1486, %v1482, 0.0
        %1500 = vadd.xlane.f32.xlu0 %v1499
        %v1501 = vpop.xlane.xlu0 %1500
        %v1502 = vsel %vm1486, %v1483, 0.0
        %1503 = vadd.xlane.f32.xlu0 %v1502
        %v1504 = vpop.xlane.xlu0 %1503
        %v1505 = vsel %vm1486, %v1484, 0.0
        %1506 = vadd.xlane.f32.xlu0 %v1505
        %v1507 = vpop.xlane.xlu0 %1506
        %v1508 = vsel %vm1486, %v1485, 0.0
        %1509 = vadd.xlane.f32.xlu0 %v1508
        %v1510 = vpop.xlane.xlu0 %1509
        %1512 = vrot.lane.b32.xlu0 %v1340, 96
        %v1513 = vpop.permute.xlu0 %1512
        %v1522 = vlaneseq
        %v1523 = vshrl.u32 %v1522, 7
        %v1524 = vsub.s32 %v1205, %v1523
        %v1525 = vrot.slane %v1489, %v1524
        %v1526 = vlaneseq
        %v1527 = vshrl.u32 %v1526, 7
        %v1528 = vsub.s32 %v1205, %v1527
        %v1529 = vrot.slane %v1492, %v1528
        %v1530 = vlaneseq
        %v1531 = vshrl.u32 %v1530, 7
        %v1532 = vsub.s32 %v1205, %v1531
        %v1533 = vrot.slane %v1495, %v1532
        %v1534 = vlaneseq
        %v1535 = vshrl.u32 %v1534, 7
        %v1536 = vsub.s32 %v1205, %v1535
        %v1537 = vrot.slane %v1498, %v1536
        %v1538 = vlaneseq
        %v1539 = vshrl.u32 %v1538, 7
        %v1540 = vsub.s32 %v1205, %v1539
        %v1541 = vrot.slane %v1501, %v1540
        %v1542 = vlaneseq
        %v1543 = vshrl.u32 %v1542, 7
        %v1544 = vsub.s32 %v1205, %v1543
        %v1545 = vrot.slane %v1504, %v1544
        %v1546 = vlaneseq
        %v1547 = vshrl.u32 %v1546, 7
        %v1548 = vsub.s32 %v1205, %v1547
        %v1549 = vrot.slane %v1507, %v1548
        %v1550 = vlaneseq
        %v1551 = vshrl.u32 %v1550, 7
        %v1552 = vsub.s32 %v1205, %v1551
        %v1553 = vrot.slane %v1510, %v1552
        %vm1554 = vcmask 1041409
        %v1555 = vsel %vm1554, %v1529, %v1525
        %vm1556 = vcmask 1042434
        %v1557 = vsel %vm1556, %v1533, %v1555
        %vm1558 = vcmask 1043459
        %v1559 = vsel %vm1558, %v1537, %v1557
        %vm1560 = vcmask 1044484
        %v1561 = vsel %vm1560, %v1541, %v1559
        %vm1562 = vcmask 1045509
        %v1563 = vsel %vm1562, %v1545, %v1561
        %vm1564 = vcmask 1046534
        %v1565 = vsel %vm1564, %v1549, %v1563
        %vm1566 = vcmask 1047559
        %v1567 = vsel %vm1566, %v1553, %v1565
        %v1570 = vsel %vm995, %v1513, 0
        %1572 = vmatprep.subr.bf16.mxu0 0
        %1573 = vmatpush1.bf16.xpose.msra.mxu0 %v1570
        %1574 = vmatprep.subr.bf16.mxu0 0
        %1575 = vmatpush1.bf16.xpose.msra.mxu0 0
        %1576 = vmatprep.subr.bf16.mxu0 0
        %1577 = vmatpush1.bf16.xpose.msra.mxu0 0
        %1578 = vmatprep.subr.bf16.mxu0 0
        %1579 = vmatpush1.bf16.xpose.msra.mxu0 0
        %1580 = vmatprep.subr.bf16.mxu0 0
        %1581 = vmatpush1.bf16.xpose.msra.mxu0 0
        %1582 = vmatprep.subr.bf16.mxu0 0
        %1583 = vmatpush1.bf16.xpose.msra.mxu0 0
        %1584 = vmatprep.subr.bf16.mxu0 0
        %1585 = vmatpush1.bf16.xpose.msra.mxu0 0
        %1586 = vmatprep.subr.bf16.mxu0 0
        %1587 = vmatpush1.bf16.xpose.msra.mxu0 0
        %1588 = vmatprep.subr.bf16.mxu0 0
        %1589 = vmatpush1.bf16.xpose.msra.mxu0 0
        %1590 = vmatprep.subr.bf16.mxu0 0
        %1591 = vmatpush1.bf16.xpose.msra.mxu0 0
        %1592 = vmatprep.subr.bf16.mxu0 0
        %1593 = vmatpush1.bf16.xpose.msra.mxu0 0
        %1594 = vmatprep.subr.bf16.mxu0 0
        %1595 = vmatpush1.bf16.xpose.msra.mxu0 0
        %1596 = vmatprep.subr.bf16.mxu0 0
        %1597 = vmatpush1.bf16.xpose.msra.mxu0 0
        %1598 = vmatprep.subr.bf16.mxu0 0
        %1599 = vmatpush1.bf16.xpose.msra.mxu0 0
        %1600 = vmatprep.subr.bf16.mxu0 0
        %1601 = vmatpush1.bf16.xpose.msra.mxu0 0
        %1602 = vmatprep.subr.bf16.mxu0 0
        %1603 = vmatpush1.bf16.xpose.msra.mxu0 0
        %1604 = vmatprep.mubr.bf16.mxu0 0
        %1605 = vmatmul.mubr.bf16.gmra.mrb[0].mxu0 %v1343
        %v1606 = vpop.f32.mrb[0].mxu0
        %v1607 = vadd.f32 %v1567, %v1606
        %v1608 = vpop.f32.mrb[0].mxu0
        %v1609 = vpop.f32.mrb[0].mxu0
        %v1610 = vpop.f32.mrb[0].mxu0
        %1611 = vdwg.mxu0
        %v1612 = vmul.f32 %v1607, 0.25
        %vm1613 = vcmask 64512
        %v1614 = vsel %vm1613, %v1612, -inf
        %1615 = vmax.xlane.f32.xlu0 %v1614
        %v1616 = vpop.xlane.xlu0 %1615
        %v1617 = vsub.f32 %v1612, %v1616
        %v1618 = vmul.f32 %v1617, 1.442695
        %v1619 = vpow.pop %v1618
        %v1620 = vsel %vm1613, %v1619, 0.0
        %1621 = vadd.xlane.f32.xlu0 %v1620
        %v1622 = vpop.xlane.xlu0 %1621
        %v1623 = vrcp.pop %v1622
        %v1624 = vmul.f32 %v1619, %v1623
        %v1625 = vpack.c.bf16 %v1624, %v1624
        %1626 = vrot.lane.b32.xlu0 %v1340, 64
        %v1627 = vpop.permute.xlu0 %1626
        %v1629 = vsel %vm1613, %v1625, 0
        %vm1631 = vcmask 1043456
        %v1633 = vsel %vm1631, %v1627, 0
        %1635 = vmatprep.subr.bf16.mxu0 0
        %1636 = vmatpush1.bf16.msra.mxu0 %v1633
        %1637 = vmatprep.subr.bf16.mxu0 0
        %1638 = vmatpush1.bf16.msra.mxu0 0
        %1639 = vmatprep.subr.bf16.mxu0 0
        %1640 = vmatpush1.bf16.msra.mxu0 0
        %1641 = vmatprep.subr.bf16.mxu0 0
        %1642 = vmatpush1.bf16.msra.mxu0 0
        %1643 = vmatprep.subr.bf16.mxu0 0
        %1644 = vmatpush1.bf16.msra.mxu0 0
        %1645 = vmatprep.subr.bf16.mxu0 0
        %1646 = vmatpush1.bf16.msra.mxu0 0
        %1647 = vmatprep.subr.bf16.mxu0 0
        %1648 = vmatpush1.bf16.msra.mxu0 0
        %1649 = vmatprep.subr.bf16.mxu0 0
        %1650 = vmatpush1.bf16.msra.mxu0 0
        %1651 = vmatprep.subr.bf16.mxu0 0
        %1652 = vmatpush1.bf16.msra.mxu0 0
        %1653 = vmatprep.subr.bf16.mxu0 0
        %1654 = vmatpush1.bf16.msra.mxu0 0
        %1655 = vmatprep.subr.bf16.mxu0 0
        %1656 = vmatpush1.bf16.msra.mxu0 0
        %1657 = vmatprep.subr.bf16.mxu0 0
        %1658 = vmatpush1.bf16.msra.mxu0 0
        %1659 = vmatprep.subr.bf16.mxu0 0
        %1660 = vmatpush1.bf16.msra.mxu0 0
        %1661 = vmatprep.subr.bf16.mxu0 0
        %1662 = vmatpush1.bf16.msra.mxu0 0
        %1663 = vmatprep.subr.bf16.mxu0 0
        %1664 = vmatpush1.bf16.msra.mxu0 0
        %1665 = vmatprep.subr.bf16.mxu0 0
        %1666 = vmatpush1.bf16.msra.mxu0 0
        %1667 = vmatprep.mubr.bf16.mxu0 0
        %1668 = vmatmul.mubr.bf16.gmra.mrb[0].mxu0 %v1629
        %v1669 = vpop.f32.mrb[0].mxu0
        %v1670 = vadd.f32 0.0, %v1669
        %v1671 = vpop.f32.mrb[0].mxu0
        %v1672 = vpop.f32.mrb[0].mxu0
        %v1673 = vpop.f32.mrb[0].mxu0
        %1674 = vdwg.mxu0
        %1675 = vrot.lane.b32.xlu0 %v1340, 112
        %v1676 = vpop.permute.xlu0 %1675
        %v1678 = vsel %vm995, %v1676, 0
        %1680 = vmatprep.subr.bf16.mxu0 0
        %1681 = vmatpush1.bf16.xpose.msra.mxu0 %v1346
        %1682 = vmatprep.subr.bf16.mxu0 0
        %1683 = vmatpush1.bf16.xpose.msra.mxu0 0
        %1684 = vmatprep.subr.bf16.mxu0 0
        %1685 = vmatpush1.bf16.xpose.msra.mxu0 0
        %1686 = vmatprep.subr.bf16.mxu0 0
        %1687 = vmatpush1.bf16.xpose.msra.mxu0 0
        %1688 = vmatprep.subr.bf16.mxu0 0
        %1689 = vmatpush1.bf16.xpose.msra.mxu0 0
        %1690 = vmatprep.subr.bf16.mxu0 0
        %1691 = vmatpush1.bf16.xpose.msra.mxu0 0
        %1692 = vmatprep.subr.bf16.mxu0 0
        %1693 = vmatpush1.bf16.xpose.msra.mxu0 0
        %1694 = vmatprep.subr.bf16.mxu0 0
        %1695 = vmatpush1.bf16.xpose.msra.mxu0 0
        %1696 = vmatprep.subr.bf16.mxu0 0
        %1697 = vmatpush1.bf16.xpose.msra.mxu0 0
        %1698 = vmatprep.subr.bf16.mxu0 0
        %1699 = vmatpush1.bf16.xpose.msra.mxu0 0
        %1700 = vmatprep.subr.bf16.mxu0 0
        %1701 = vmatpush1.bf16.xpose.msra.mxu0 0
        %1702 = vmatprep.subr.bf16.mxu0 0
        %1703 = vmatpush1.bf16.xpose.msra.mxu0 0
        %1704 = vmatprep.subr.bf16.mxu0 0
        %1705 = vmatpush1.bf16.xpose.msra.mxu0 0
        %1706 = vmatprep.subr.bf16.mxu0 0
        %1707 = vmatpush1.bf16.xpose.msra.mxu0 0
        %1708 = vmatprep.subr.bf16.mxu0 0
        %1709 = vmatpush1.bf16.xpose.msra.mxu0 0
        %1710 = vmatprep.subr.bf16.mxu0 0
        %1711 = vmatpush1.bf16.xpose.msra.mxu0 0
        %1712 = vmatprep.mubr.bf16.mxu0 0
        %1713 = vmatmul.mubr.bf16.gmra.mrb[0].mxu0 %v1678
        %v1714 = vpop.f32.mrb[0].mxu0
        %v1715 = vadd.f32 0.0, %v1714
        %v1716 = vpop.f32.mrb[0].mxu0
        %v1717 = vpop.f32.mrb[0].mxu0
        %v1718 = vpop.f32.mrb[0].mxu0
        %1719 = vdwg.mxu0
        %v1721 = vcombine.high %v1715, %v1715
        %v1723 = vunpack.c.l.s4 1966171168
        %v1724 = vunpack.c.0.s8 %v1723
        %v1725 = vlaneseq
        %v1726 = vshrl.u32 %v1725, 7
        %v1727 = vsub.s32 %v1724, %v1726
        %v1728 = vrot.slane %v1715, %v1727
        %v1730 = vunpack.c.l.s4 1966171168
        %v1731 = vunpack.c.0.s8 %v1730
        %v1732 = vlaneseq
        %v1733 = vshrl.u32 %v1732, 7
        %v1734 = vsub.s32 %v1731, %v1733
        %v1735 = vrot.slane %v1721, %v1734
        %v1736 = vcombine.high %v1728, %v1728
        %v1737 = vcombine.high %v1735, %v1735
        %v1739 = vunpack.c.l.s4 1966171168
        %v1740 = vunpack.c.0.s8 %v1739
        %v1741 = vlaneseq
        %v1742 = vshrl.u32 %v1741, 7
        %v1743 = vsub.s32 %v1740, %v1742
        %v1744 = vrot.slane %v1728, %v1743
        %v1746 = vunpack.c.l.s4 1966171168
        %v1747 = vunpack.c.0.s8 %v1746
        %v1748 = vlaneseq
        %v1749 = vshrl.u32 %v1748, 7
        %v1750 = vsub.s32 %v1747, %v1749
        %v1751 = vrot.slane %v1735, %v1750
        %v1753 = vunpack.c.l.s4 1966171168
        %v1754 = vunpack.c.0.s8 %v1753
        %v1755 = vlaneseq
        %v1756 = vshrl.u32 %v1755, 7
        %v1757 = vsub.s32 %v1754, %v1756
        %v1758 = vrot.slane %v1736, %v1757
        %v1760 = vunpack.c.l.s4 1966171168
        %v1761 = vunpack.c.0.s8 %v1760
        %v1762 = vlaneseq
        %v1763 = vshrl.u32 %v1762, 7
        %v1764 = vsub.s32 %v1761, %v1763
        %v1765 = vrot.slane %v1737, %v1764
        %v1766 = vcombine.high %v1744, %v1744
        %v1767 = vcombine.high %v1751, %v1751
        %v1768 = vcombine.high %v1758, %v1758
        %v1769 = vcombine.high %v1765, %v1765
        %v1770 = vlaneseq
        %v1771 = vshrl.u32 %v1770, 7
        %v1772 = vsub.s32 0, %v1771
        %v1773 = vrot.slane %v1744, %v1772
        %v1774 = vlaneseq
        %v1775 = vshrl.u32 %v1774, 7
        %v1776 = vsub.s32 0, %v1775
        %v1777 = vrot.slane %v1758, %v1776
        %v1778 = vlaneseq
        %v1779 = vshrl.u32 %v1778, 7
        %v1780 = vsub.s32 0, %v1779
        %v1781 = vrot.slane %v1766, %v1780
        %v1782 = vlaneseq
        %v1783 = vshrl.u32 %v1782, 7
        %v1784 = vsub.s32 0, %v1783
        %v1785 = vrot.slane %v1768, %v1784
        %v1786 = vlaneseq
        %v1787 = vshrl.u32 %v1786, 7
        %v1788 = vsub.s32 0, %v1787
        %v1789 = vrot.slane %v1751, %v1788
        %v1790 = vlaneseq
        %v1791 = vshrl.u32 %v1790, 7
        %v1792 = vsub.s32 0, %v1791
        %v1793 = vrot.slane %v1765, %v1792
        %v1794 = vlaneseq
        %v1795 = vshrl.u32 %v1794, 7
        %v1796 = vsub.s32 0, %v1795
        %v1797 = vrot.slane %v1767, %v1796
        %v1798 = vlaneseq
        %v1799 = vshrl.u32 %v1798, 7
        %v1800 = vsub.s32 0, %v1799
        %v1801 = vrot.slane %v1769, %v1800
        %v1810 = vmul.f32 %v1773, %v1235
        %v1811 = vmul.f32 %v1777, %v1236
        %v1812 = vmul.f32 %v1781, %v1237
        %v1813 = vmul.f32 %v1785, %v1238
        %v1814 = vmul.f32 %v1789, %v1239
        %v1815 = vmul.f32 %v1793, %v1240
        %v1816 = vmul.f32 %v1797, %v1241
        %v1817 = vmul.f32 %v1801, %v1242
        %v1818 = vsel %vm1486, %v1810, 0.0
        %1819 = vadd.xlane.f32.xlu0 %v1818
        %v1820 = vpop.xlane.xlu0 %1819
        %v1821 = vsel %vm1486, %v1811, 0.0
        %1822 = vadd.xlane.f32.xlu0 %v1821
        %v1823 = vpop.xlane.xlu0 %1822
        %v1824 = vsel %vm1486, %v1812, 0.0
        %1825 = vadd.xlane.f32.xlu0 %v1824
        %v1826 = vpop.xlane.xlu0 %1825
        %v1827 = vsel %vm1486, %v1813, 0.0
        %1828 = vadd.xlane.f32.xlu0 %v1827
        %v1829 = vpop.xlane.xlu0 %1828
        %v1830 = vsel %vm1486, %v1814, 0.0
        %1831 = vadd.xlane.f32.xlu0 %v1830
        %v1832 = vpop.xlane.xlu0 %1831
        %v1833 = vsel %vm1486, %v1815, 0.0
        %1834 = vadd.xlane.f32.xlu0 %v1833
        %v1835 = vpop.xlane.xlu0 %1834
        %v1836 = vsel %vm1486, %v1816, 0.0
        %1837 = vadd.xlane.f32.xlu0 %v1836
        %v1838 = vpop.xlane.xlu0 %1837
        %v1839 = vsel %vm1486, %v1817, 0.0
        %1840 = vadd.xlane.f32.xlu0 %v1839
        %v1841 = vpop.xlane.xlu0 %1840
        %1842 = vrot.lane.b32.xlu0 %v1340, 80
        %v1843 = vpop.permute.xlu0 %1842
        %v1852 = vlaneseq
        %v1853 = vshrl.u32 %v1852, 7
        %v1854 = vsub.s32 %v1205, %v1853
        %v1855 = vrot.slane %v1820, %v1854
        %v1856 = vlaneseq
        %v1857 = vshrl.u32 %v1856, 7
        %v1858 = vsub.s32 %v1205, %v1857
        %v1859 = vrot.slane %v1823, %v1858
        %v1860 = vlaneseq
        %v1861 = vshrl.u32 %v1860, 7
        %v1862 = vsub.s32 %v1205, %v1861
        %v1863 = vrot.slane %v1826, %v1862
        %v1864 = vlaneseq
        %v1865 = vshrl.u32 %v1864, 7
        %v1866 = vsub.s32 %v1205, %v1865
        %v1867 = vrot.slane %v1829, %v1866
        %v1868 = vlaneseq
        %v1869 = vshrl.u32 %v1868, 7
        %v1870 = vsub.s32 %v1205, %v1869
        %v1871 = vrot.slane %v1832, %v1870
        %v1872 = vlaneseq
        %v1873 = vshrl.u32 %v1872, 7
        %v1874 = vsub.s32 %v1205, %v1873
        %v1875 = vrot.slane %v1835, %v1874
        %v1876 = vlaneseq
        %v1877 = vshrl.u32 %v1876, 7
        %v1878 = vsub.s32 %v1205, %v1877
        %v1879 = vrot.slane %v1838, %v1878
        %v1880 = vlaneseq
        %v1881 = vshrl.u32 %v1880, 7
        %v1882 = vsub.s32 %v1205, %v1881
        %v1883 = vrot.slane %v1841, %v1882
        %v1884 = vsel %vm1554, %v1859, %v1855
        %v1885 = vsel %vm1556, %v1863, %v1884
        %v1886 = vsel %vm1558, %v1867, %v1885
        %v1887 = vsel %vm1560, %v1871, %v1886
        %v1888 = vsel %vm1562, %v1875, %v1887
        %v1889 = vsel %vm1564, %v1879, %v1888
        %v1890 = vsel %vm1566, %v1883, %v1889
        %v1893 = vsel %vm995, %v1843, 0
        %1895 = vmatprep.subr.bf16.mxu0 0
        %1896 = vmatpush1.bf16.xpose.msra.mxu0 %v1893
        %1897 = vmatprep.subr.bf16.mxu0 0
        %1898 = vmatpush1.bf16.xpose.msra.mxu0 0
        %1899 = vmatprep.subr.bf16.mxu0 0
        %1900 = vmatpush1.bf16.xpose.msra.mxu0 0
        %1901 = vmatprep.subr.bf16.mxu0 0
        %1902 = vmatpush1.bf16.xpose.msra.mxu0 0
        %1903 = vmatprep.subr.bf16.mxu0 0
        %1904 = vmatpush1.bf16.xpose.msra.mxu0 0
        %1905 = vmatprep.subr.bf16.mxu0 0
        %1906 = vmatpush1.bf16.xpose.msra.mxu0 0
        %1907 = vmatprep.subr.bf16.mxu0 0
        %1908 = vmatpush1.bf16.xpose.msra.mxu0 0
        %1909 = vmatprep.subr.bf16.mxu0 0
        %1910 = vmatpush1.bf16.xpose.msra.mxu0 0
        %1911 = vmatprep.subr.bf16.mxu0 0
        %1912 = vmatpush1.bf16.xpose.msra.mxu0 0
        %1913 = vmatprep.subr.bf16.mxu0 0
        %1914 = vmatpush1.bf16.xpose.msra.mxu0 0
        %1915 = vmatprep.subr.bf16.mxu0 0
        %1916 = vmatpush1.bf16.xpose.msra.mxu0 0
        %1917 = vmatprep.subr.bf16.mxu0 0
        %1918 = vmatpush1.bf16.xpose.msra.mxu0 0
        %1919 = vmatprep.subr.bf16.mxu0 0
        %1920 = vmatpush1.bf16.xpose.msra.mxu0 0
        %1921 = vmatprep.subr.bf16.mxu0 0
        %1922 = vmatpush1.bf16.xpose.msra.mxu0 0
        %1923 = vmatprep.subr.bf16.mxu0 0
        %1924 = vmatpush1.bf16.xpose.msra.mxu0 0
        %1925 = vmatprep.subr.bf16.mxu0 0
        %1926 = vmatpush1.bf16.xpose.msra.mxu0 0
        %1927 = vmatprep.mubr.bf16.mxu0 0
        %1928 = vmatmul.mubr.bf16.gmra.mrb[0].mxu0 %v1678
        %v1929 = vpop.f32.mrb[0].mxu0
        %v1930 = vadd.f32 %v1890, %v1929
        %v1931 = vpop.f32.mrb[0].mxu0
        %v1932 = vpop.f32.mrb[0].mxu0
        %v1933 = vpop.f32.mrb[0].mxu0
        %1934 = vdwg.mxu0
        %v1935 = vmul.f32 %v1930, 0.25
        %v1936 = vsel %vm1613, %v1935, -inf
        %1937 = vmax.xlane.f32.xlu0 %v1936
        %v1938 = vpop.xlane.xlu0 %1937
        %v1939 = vsub.f32 %v1935, %v1938
        %v1940 = vmul.f32 %v1939, 1.442695
        %v1941 = vpow.pop %v1940
        %v1942 = vsel %vm1613, %v1941, 0.0
        %1943 = vadd.xlane.f32.xlu0 %v1942
        %v1944 = vpop.xlane.xlu0 %1943
        %v1945 = vrcp.pop %v1944
        %v1946 = vmul.f32 %v1941, %v1945
        %v1947 = vpack.c.bf16 %v1946, %v1946
        %1948 = vrot.lane.b32.xlu0 %v1340, 48
        %v1949 = vpop.permute.xlu0 %1948
        %v1951 = vsel %vm1613, %v1947, 0
        %v1954 = vsel %vm1631, %v1949, 0
        %1956 = vmatprep.subr.bf16.mxu0 0
        %1957 = vmatpush1.bf16.msra.mxu0 %v1954
        %1958 = vmatprep.subr.bf16.mxu0 0
        %1959 = vmatpush1.bf16.msra.mxu0 0
        %1960 = vmatprep.subr.bf16.mxu0 0
        %1961 = vmatpush1.bf16.msra.mxu0 0
        %1962 = vmatprep.subr.bf16.mxu0 0
        %1963 = vmatpush1.bf16.msra.mxu0 0
        %1964 = vmatprep.subr.bf16.mxu0 0
        %1965 = vmatpush1.bf16.msra.mxu0 0
        %1966 = vmatprep.subr.bf16.mxu0 0
        %1967 = vmatpush1.bf16.msra.mxu0 0
        %1968 = vmatprep.subr.bf16.mxu0 0
        %1969 = vmatpush1.bf16.msra.mxu0 0
        %1970 = vmatprep.subr.bf16.mxu0 0
        %1971 = vmatpush1.bf16.msra.mxu0 0
        %1972 = vmatprep.subr.bf16.mxu0 0
        %1973 = vmatpush1.bf16.msra.mxu0 0
        %1974 = vmatprep.subr.bf16.mxu0 0
        %1975 = vmatpush1.bf16.msra.mxu0 0
        %1976 = vmatprep.subr.bf16.mxu0 0
        %1977 = vmatpush1.bf16.msra.mxu0 0
        %1978 = vmatprep.subr.bf16.mxu0 0
        %1979 = vmatpush1.bf16.msra.mxu0 0
        %1980 = vmatprep.subr.bf16.mxu0 0
        %1981 = vmatpush1.bf16.msra.mxu0 0
        %1982 = vmatprep.subr.bf16.mxu0 0
        %1983 = vmatpush1.bf16.msra.mxu0 0
        %1984 = vmatprep.subr.bf16.mxu0 0
        %1985 = vmatpush1.bf16.msra.mxu0 0
        %1986 = vmatprep.subr.bf16.mxu0 0
        %1987 = vmatpush1.bf16.msra.mxu0 0
        %1988 = vmatprep.mubr.bf16.mxu0 0
        %1989 = vmatmul.mubr.bf16.gmra.mrb[0].mxu0 %v1951
        %v1990 = vpop.f32.mrb[0].mxu0
        %v1991 = vadd.f32 0.0, %v1990
        %v1992 = vpop.f32.mrb[0].mxu0
        %v1993 = vpop.f32.mrb[0].mxu0
        %v1994 = vpop.f32.mrb[0].mxu0
        %1995 = vdwg.mxu0
        %1997 = vrot.lane.b32.xlu0 %v1991, 16
        %v1998 = vpop.permute.xlu0 %1997
        %v2000 = vsel %vm995, %v1670, %v1998
        %v2001 = vld [vmem:[%s11] sm:$0xf]
        %v2002 = vld [vmem:[%s11 + $0x4] sm:$0xf]
        %v2003 = vld [vmem:[%s11 + $0x8] sm:$0xf]
        %v2004 = vld [vmem:[%s11 + $0xc] sm:$0xf]
        %v2005 = vpack.c.bf16 %v2000, %v2000
        %v2006 = vld [vmem:[#allocation10] sm:$0x1]
        %v2008 = vlaneseq
        %v2009 = vshrl.u32 %v2008, 7
        %v2010 = vsub.s32 0, %v2009
        %v2011 = vrot.slane %v2006, %v2010
        %v2017 = vunpack.c.l.b16 %v2001
        %v2018 = vunpack.c.l.b16 %v2002
        %v2019 = vunpack.c.l.b16 %v2003
        %v2020 = vunpack.c.l.b16 %v2004
        %v2021 = vpack.c.b16 %v2018, %v2017
        %v2022 = vpack.c.b16 %v2020, %v2019
        %v2026 = vsel %vm1066, %v2005, 0
        %2028 = vmatprep.subr.bf16.mxu0 0
        %2029 = vmatpush1.bf16.msra.mxu0 %v2021
        %2030 = vmatprep.subr.bf16.mxu0 0
        %2031 = vmatpush1.bf16.msra.mxu0 %v2022
        %2032 = vmatprep.subr.bf16.mxu0 0
        %2033 = vmatpush1.bf16.msra.mxu0 0
        %2034 = vmatprep.subr.bf16.mxu0 0
        %2035 = vmatpush1.bf16.msra.mxu0 0
        %2036 = vmatprep.subr.bf16.mxu0 0
        %2037 = vmatpush1.bf16.msra.mxu0 0
        %2038 = vmatprep.subr.bf16.mxu0 0
        %2039 = vmatpush1.bf16.msra.mxu0 0
        %2040 = vmatprep.subr.bf16.mxu0 0
        %2041 = vmatpush1.bf16.msra.mxu0 0
        %2042 = vmatprep.subr.bf16.mxu0 0
        %2043 = vmatpush1.bf16.msra.mxu0 0
        %2044 = vmatprep.subr.bf16.mxu0 0
        %2045 = vmatpush1.bf16.msra.mxu0 0
        %2046 = vmatprep.subr.bf16.mxu0 0
        %2047 = vmatpush1.bf16.msra.mxu0 0
        %2048 = vmatprep.subr.bf16.mxu0 0
        %2049 = vmatpush1.bf16.msra.mxu0 0
        %2050 = vmatprep.subr.bf16.mxu0 0
        %2051 = vmatpush1.bf16.msra.mxu0 0
        %2052 = vmatprep.subr.bf16.mxu0 0
        %2053 = vmatpush1.bf16.msra.mxu0 0
        %2054 = vmatprep.subr.bf16.mxu0 0
        %2055 = vmatpush1.bf16.msra.mxu0 0
        %2056 = vmatprep.subr.bf16.mxu0 0
        %2057 = vmatpush1.bf16.msra.mxu0 0
        %2058 = vmatprep.subr.bf16.mxu0 0
        %2059 = vmatpush1.bf16.msra.mxu0 0
        %2060 = vmatprep.mubr.bf16.mxu0 0
        %2061 = vmatmul.mubr.bf16.gmra.mrb[0].mxu0 %v2026
        %v2062 = vpop.f32.mrb[0].mxu0
        %v2063 = vadd.f32 %v2011, %v2062
        %v2064 = vpop.f32.mrb[0].mxu0
        %v2065 = vpop.f32.mrb[0].mxu0
        %v2066 = vpop.f32.mrb[0].mxu0
        %2067 = vdwg.mxu0
        %v2068 = vadd.f32 %v1112, %v2063
        %v2069 = vld [vmem:[%s19] sm:$0x1]
        %v2070 = vld [vmem:[%s20] sm:$0x1]
        %v2071 = vsel %vm1066, %v2068, 0.0
        %2072 = vadd.xlane.f32.xlu0 %v2071
        %v2073 = vpop.xlane.xlu0 %2072
        %v2074 = vmul.f32 %v2073, %v1248
        %v2075 = vsub.f32 %v2068, %v2074
        %v2076 = vmul.f32 %v2075, %v2075
        %v2077 = vsel %vm1066, %v2076, 0.0
        %2078 = vadd.xlane.f32.xlu0 %v2077
        %v2079 = vpop.xlane.xlu0 %2078
        %v2080 = vmul.f32 %v2079, %v1248
        %v2081 = vadd.f32 %v2080, 1e-05
        %v2082 = vrsqrt.pop %v2081
        %v2083 = vmul.f32 %v2075, %v2082
        %v2085 = vlaneseq
        %v2086 = vshrl.u32 %v2085, 7
        %v2087 = vsub.s32 0, %v2086
        %v2088 = vrot.slane %v2069, %v2087
        %v2090 = vmul.f32 %v2083, %v2088
        %v2092 = vlaneseq
        %v2093 = vshrl.u32 %v2092, 7
        %v2094 = vsub.s32 0, %v2093
        %v2095 = vrot.slane %v2070, %v2094
        %v2097 = vadd.f32 %v2090, %v2095
        %v2098 = vld [vmem:[%s15] sm:$0xf]
        %v2099 = vld [vmem:[%s15 + $0x4] sm:$0xf]
        %v2100 = vld [vmem:[%s15 + $0x8] sm:$0xf]
        %v2101 = vld [vmem:[%s15 + $0xc] sm:$0xf]
        %v2102 = vpack.c.bf16 %v2097, %v2097
        %v2103 = vld [vmem:[%s16] sm:$0x1]
        %v2105 = vlaneseq
        %v2106 = vshrl.u32 %v2105, 7
        %v2107 = vsub.s32 0, %v2106
        %v2108 = vrot.slane %v2103, %v2107
        %v2114 = vunpack.c.l.b16 %v2098
        %v2115 = vunpack.c.l.b16 %v2099
        %v2116 = vunpack.c.l.b16 %v2100
        %v2117 = vunpack.c.l.b16 %v2101
        %v2118 = vpack.c.b16 %v2115, %v2114
        %v2119 = vpack.c.b16 %v2117, %v2116
        %v2123 = vsel %vm1066, %v2102, 0
        %2125 = vmatprep.subr.bf16.mxu0 0
        %2126 = vmatpush1.bf16.msra.mxu0 %v2118
        %2127 = vmatprep.subr.bf16.mxu0 0
        %2128 = vmatpush1.bf16.msra.mxu0 %v2119
        %2129 = vmatprep.subr.bf16.mxu0 0
        %2130 = vmatpush1.bf16.msra.mxu0 0
        %2131 = vmatprep.subr.bf16.mxu0 0
        %2132 = vmatpush1.bf16.msra.mxu0 0
        %2133 = vmatprep.subr.bf16.mxu0 0
        %2134 = vmatpush1.bf16.msra.mxu0 0
        %2135 = vmatprep.subr.bf16.mxu0 0
        %2136 = vmatpush1.bf16.msra.mxu0 0
        %2137 = vmatprep.subr.bf16.mxu0 0
        %2138 = vmatpush1.bf16.msra.mxu0 0
        %2139 = vmatprep.subr.bf16.mxu0 0
        %2140 = vmatpush1.bf16.msra.mxu0 0
        %2141 = vmatprep.subr.bf16.mxu0 0
        %2142 = vmatpush1.bf16.msra.mxu0 0
        %2143 = vmatprep.subr.bf16.mxu0 0
        %2144 = vmatpush1.bf16.msra.mxu0 0
        %2145 = vmatprep.subr.bf16.mxu0 0
        %2146 = vmatpush1.bf16.msra.mxu0 0
        %2147 = vmatprep.subr.bf16.mxu0 0
        %2148 = vmatpush1.bf16.msra.mxu0 0
        %2149 = vmatprep.subr.bf16.mxu0 0
        %2150 = vmatpush1.bf16.msra.mxu0 0
        %2151 = vmatprep.subr.bf16.mxu0 0
        %2152 = vmatpush1.bf16.msra.mxu0 0
        %2153 = vmatprep.subr.bf16.mxu0 0
        %2154 = vmatpush1.bf16.msra.mxu0 0
        %2155 = vmatprep.subr.bf16.mxu0 0
        %2156 = vmatpush1.bf16.msra.mxu0 0
        %2157 = vmatprep.mubr.bf16.mxu0 0
        %2158 = vmatmul.mubr.bf16.gmra.mrb[0].mxu0 %v2123
        %v2159 = vpop.f32.mrb[0].mxu0
        %v2160 = vadd.f32 %v2108, %v2159
        %v2161 = vpop.f32.mrb[0].mxu0
        %v2162 = vpop.f32.mrb[0].mxu0
        %v2163 = vpop.f32.mrb[0].mxu0
        %2164 = vdwg.mxu0
        %v2165 = vmax.f32 %v2160, 0.0
        %v2166 = vld [vmem:[%s17] sm:$0xf]
        %v2167 = vld [vmem:[%s17 + $0x4] sm:$0xf]
        %v2168 = vld [vmem:[%s17 + $0x8] sm:$0xf]
        %v2169 = vld [vmem:[%s17 + $0xc] sm:$0xf]
        %v2170 = vld [vmem:[%s17 + $0x10] sm:$0xf]
        %v2171 = vld [vmem:[%s17 + $0x14] sm:$0xf]
        %v2172 = vld [vmem:[%s17 + $0x18] sm:$0xf]
        %v2173 = vld [vmem:[%s17 + $0x1c] sm:$0xf]
        %v2174 = vpack.c.bf16 %v2165, %v2165
        %v2175 = vld [vmem:[%s18] sm:$0x1]
        %v2177 = vlaneseq
        %v2178 = vshrl.u32 %v2177, 7
        %v2179 = vsub.s32 0, %v2178
        %v2180 = vrot.slane %v2175, %v2179
        %v2190 = vunpack.c.l.b16 %v2166
        %v2191 = vunpack.c.l.b16 %v2167
        %v2192 = vunpack.c.l.b16 %v2168
        %v2193 = vunpack.c.l.b16 %v2169
        %v2194 = vunpack.c.l.b16 %v2170
        %v2195 = vunpack.c.l.b16 %v2171
        %v2196 = vunpack.c.l.b16 %v2172
        %v2197 = vunpack.c.l.b16 %v2173
        %v2198 = vpack.c.b16 %v2191, %v2190
        %v2199 = vpack.c.b16 %v2193, %v2192
        %v2200 = vpack.c.b16 %v2195, %v2194
        %v2201 = vpack.c.b16 %v2197, %v2196
        %vm2206 = vcmask 523264
        %v2208 = vsel %vm2206, %v2174, 0
        %2210 = vmatprep.subr.bf16.mxu0 0
        %2211 = vmatpush1.bf16.msra.mxu0 %v2198
        %2212 = vmatprep.subr.bf16.mxu0 0
        %2213 = vmatpush1.bf16.msra.mxu0 %v2199
        %2214 = vmatprep.subr.bf16.mxu0 0
        %2215 = vmatpush1.bf16.msra.mxu0 %v2200
        %2216 = vmatprep.subr.bf16.mxu0 0
        %2217 = vmatpush1.bf16.msra.mxu0 %v2201
        %2218 = vmatprep.subr.bf16.mxu0 0
        %2219 = vmatpush1.bf16.msra.mxu0 0
        %2220 = vmatprep.subr.bf16.mxu0 0
        %2221 = vmatpush1.bf16.msra.mxu0 0
        %2222 = vmatprep.subr.bf16.mxu0 0
        %2223 = vmatpush1.bf16.msra.mxu0 0
        %2224 = vmatprep.subr.bf16.mxu0 0
        %2225 = vmatpush1.bf16.msra.mxu0 0
        %2226 = vmatprep.subr.bf16.mxu0 0
        %2227 = vmatpush1.bf16.msra.mxu0 0
        %2228 = vmatprep.subr.bf16.mxu0 0
        %2229 = vmatpush1.bf16.msra.mxu0 0
        %2230 = vmatprep.subr.bf16.mxu0 0
        %2231 = vmatpush1.bf16.msra.mxu0 0
        %2232 = vmatprep.subr.bf16.mxu0 0
        %2233 = vmatpush1.bf16.msra.mxu0 0
        %2234 = vmatprep.subr.bf16.mxu0 0
        %2235 = vmatpush1.bf16.msra.mxu0 0
        %2236 = vmatprep.subr.bf16.mxu0 0
        %2237 = vmatpush1.bf16.msra.mxu0 0
        %2238 = vmatprep.subr.bf16.mxu0 0
        %2239 = vmatpush1.bf16.msra.mxu0 0
        %2240 = vmatprep.subr.bf16.mxu0 0
        %2241 = vmatpush1.bf16.msra.mxu0 0
        %2242 = vmatprep.mubr.bf16.mxu0 0
        %2243 = vmatmul.mubr.bf16.gmra.mrb[0].mxu0 %v2208
        %v2244 = vpop.f32.mrb[0].mxu0
        %v2245 = vadd.f32 %v2180, %v2244
        %v2246 = vpop.f32.mrb[0].mxu0
        %v2247 = vpop.f32.mrb[0].mxu0
        %v2248 = vpop.f32.mrb[0].mxu0
        %2249 = vdwg.mxu0
        %v2250 = vadd.f32 %v2068, %v2245
        %s2251 = scalar_lea.vmem [#allocation11], 1
        %v2252 = vld [vmem:[%s2251] sm:$0x1]
        %s2253 = scalar_lea.vmem [#allocation13], 1
        %v2254 = vld [vmem:[%s2253] sm:$0x1]
        %v2255 = vsel %vm1066, %v2250, 0.0
        %2256 = vadd.xlane.f32.xlu0 %v2255
        %v2257 = vpop.xlane.xlu0 %2256
        %v2258 = vmul.f32 %v2257, %v1248
        %v2259 = vsub.f32 %v2250, %v2258
        %v2260 = vmul.f32 %v2259, %v2259
        %v2261 = vsel %vm1066, %v2260, 0.0
        %2262 = vadd.xlane.f32.xlu0 %v2261
        %v2263 = vpop.xlane.xlu0 %2262
        %v2264 = vmul.f32 %v2263, %v1248
        %v2265 = vadd.f32 %v2264, 1e-05
        %v2266 = vrsqrt.pop %v2265
        %v2267 = vmul.f32 %v2259, %v2266
        %v2269 = vlaneseq
        %v2270 = vshrl.u32 %v2269, 7
        %v2271 = vsub.s32 0, %v2270
        %v2272 = vrot.slane %v2252, %v2271
        %v2274 = vmul.f32 %v2267, %v2272
        %v2276 = vlaneseq
        %v2277 = vshrl.u32 %v2276, 7
        %v2278 = vsub.s32 0, %v2277
        %v2279 = vrot.slane %v2254, %v2278
        %v2281 = vadd.f32 %v2274, %v2279
        %s2282 = scalar_lea.vmem %s9, 16
        %v2283 = vld [vmem:[%s2282] sm:$0xf]
        %v2284 = vld [vmem:[%s2282 + $0x4] sm:$0xf]
        %v2285 = vld [vmem:[%s2282 + $0x8] sm:$0xf]
        %v2286 = vld [vmem:[%s2282 + $0xc] sm:$0xf]
        %v2287 = vpack.c.bf16 %v2281, %v2281
        %s2288 = scalar_lea.vmem [#allocation8], 1
        %v2289 = vld [vmem:[%s2288] sm:$0x1]
        %v2291 = vlaneseq
        %v2292 = vshrl.u32 %v2291, 7
        %v2293 = vsub.s32 0, %v2292
        %v2294 = vrot.slane %v2289, %v2293
        %v2300 = vunpack.c.l.b16 %v2283
        %v2301 = vunpack.c.l.b16 %v2284
        %v2302 = vunpack.c.l.b16 %v2285
        %v2303 = vunpack.c.l.b16 %v2286
        %v2304 = vpack.c.b16 %v2301, %v2300
        %v2305 = vpack.c.b16 %v2303, %v2302
        %v2309 = vsel %vm1066, %v2287, 0
        %2311 = vmatprep.subr.bf16.mxu0 0
        %2312 = vmatpush1.bf16.msra.mxu0 %v2304
        %2313 = vmatprep.subr.bf16.mxu0 0
        %2314 = vmatpush1.bf16.msra.mxu0 %v2305
        %2315 = vmatprep.subr.bf16.mxu0 0
        %2316 = vmatpush1.bf16.msra.mxu0 0
        %2317 = vmatprep.subr.bf16.mxu0 0
        %2318 = vmatpush1.bf16.msra.mxu0 0
        %2319 = vmatprep.subr.bf16.mxu0 0
        %2320 = vmatpush1.bf16.msra.mxu0 0
        %2321 = vmatprep.subr.bf16.mxu0 0
        %2322 = vmatpush1.bf16.msra.mxu0 0
        %2323 = vmatprep.subr.bf16.mxu0 0
        %2324 = vmatpush1.bf16.msra.mxu0 0
        %2325 = vmatprep.subr.bf16.mxu0 0
        %2326 = vmatpush1.bf16.msra.mxu0 0
        %2327 = vmatprep.subr.bf16.mxu0 0
        %2328 = vmatpush1.bf16.msra.mxu0 0
        %2329 = vmatprep.subr.bf16.mxu0 0
        %2330 = vmatpush1.bf16.msra.mxu0 0
        %2331 = vmatprep.subr.bf16.mxu0 0
        %2332 = vmatpush1.bf16.msra.mxu0 0
        %2333 = vmatprep.subr.bf16.mxu0 0
        %2334 = vmatpush1.bf16.msra.mxu0 0
        %2335 = vmatprep.subr.bf16.mxu0 0
        %2336 = vmatpush1.bf16.msra.mxu0 0
        %2337 = vmatprep.subr.bf16.mxu0 0
        %2338 = vmatpush1.bf16.msra.mxu0 0
        %2339 = vmatprep.subr.bf16.mxu0 0
        %2340 = vmatpush1.bf16.msra.mxu0 0
        %2341 = vmatprep.subr.bf16.mxu0 0
        %2342 = vmatpush1.bf16.msra.mxu0 0
        %2343 = vmatprep.mubr.bf16.mxu0 0
        %2344 = vmatmul.mubr.bf16.gmra.mrb[0].mxu0 %v2309
        %v2345 = vpop.f32.mrb[0].mxu0
        %v2346 = vadd.f32 %v2294, %v2345
        %v2347 = vpop.f32.mrb[0].mxu0
        %v2348 = vpop.f32.mrb[0].mxu0
        %v2349 = vpop.f32.mrb[0].mxu0
        %2350 = vdwg.mxu0
        %v2351 = vpack.c.bf16 %v2346, %v2346
        %v2353 = vsel %vm995, %v2351, 0
        %2355 = vmatprep.subr.bf16.mxu0 0
        %2356 = vmatpush1.bf16.xpose.msra.mxu0 %v1346
        %2357 = vmatprep.subr.bf16.mxu0 0
        %2358 = vmatpush1.bf16.xpose.msra.mxu0 0
        %2359 = vmatprep.subr.bf16.mxu0 0
        %2360 = vmatpush1.bf16.xpose.msra.mxu0 0
        %2361 = vmatprep.subr.bf16.mxu0 0
        %2362 = vmatpush1.bf16.xpose.msra.mxu0 0
        %2363 = vmatprep.subr.bf16.mxu0 0
        %2364 = vmatpush1.bf16.xpose.msra.mxu0 0
        %2365 = vmatprep.subr.bf16.mxu0 0
        %2366 = vmatpush1.bf16.xpose.msra.mxu0 0
        %2367 = vmatprep.subr.bf16.mxu0 0
        %2368 = vmatpush1.bf16.xpose.msra.mxu0 0
        %2369 = vmatprep.subr.bf16.mxu0 0
        %2370 = vmatpush1.bf16.xpose.msra.mxu0 0
        %2371 = vmatprep.subr.bf16.mxu0 0
        %2372 = vmatpush1.bf16.xpose.msra.mxu0 0
        %2373 = vmatprep.subr.bf16.mxu0 0
        %2374 = vmatpush1.bf16.xpose.msra.mxu0 0
        %2375 = vmatprep.subr.bf16.mxu0 0
        %2376 = vmatpush1.bf16.xpose.msra.mxu0 0
        %2377 = vmatprep.subr.bf16.mxu0 0
        %2378 = vmatpush1.bf16.xpose.msra.mxu0 0
        %2379 = vmatprep.subr.bf16.mxu0 0
        %2380 = vmatpush1.bf16.xpose.msra.mxu0 0
        %2381 = vmatprep.subr.bf16.mxu0 0
        %2382 = vmatpush1.bf16.xpose.msra.mxu0 0
        %2383 = vmatprep.subr.bf16.mxu0 0
        %2384 = vmatpush1.bf16.xpose.msra.mxu0 0
        %2385 = vmatprep.subr.bf16.mxu0 0
        %2386 = vmatpush1.bf16.xpose.msra.mxu0 0
        %2387 = vmatprep.mubr.bf16.mxu0 0
        %2388 = vmatmul.mubr.bf16.gmra.mrb[0].mxu0 %v2353
        %v2389 = vpop.f32.mrb[0].mxu0
        %v2390 = vadd.f32 0.0, %v2389
        %v2391 = vpop.f32.mrb[0].mxu0
        %v2392 = vpop.f32.mrb[0].mxu0
        %v2393 = vpop.f32.mrb[0].mxu0
        %2394 = vdwg.mxu0
        %v2396 = vcombine.high %v2390, %v2390
        %v2398 = vunpack.c.l.s4 1966171168
        %v2399 = vunpack.c.0.s8 %v2398
        %v2400 = vlaneseq
        %v2401 = vshrl.u32 %v2400, 7
        %v2402 = vsub.s32 %v2399, %v2401
        %v2403 = vrot.slane %v2390, %v2402
        %v2405 = vunpack.c.l.s4 1966171168
        %v2406 = vunpack.c.0.s8 %v2405
        %v2407 = vlaneseq
        %v2408 = vshrl.u32 %v2407, 7
        %v2409 = vsub.s32 %v2406, %v2408
        %v2410 = vrot.slane %v2396, %v2409
        %v2411 = vcombine.high %v2403, %v2403
        %v2412 = vcombine.high %v2410, %v2410
        %v2414 = vunpack.c.l.s4 1966171168
        %v2415 = vunpack.c.0.s8 %v2414
        %v2416 = vlaneseq
        %v2417 = vshrl.u32 %v2416, 7
        %v2418 = vsub.s32 %v2415, %v2417
        %v2419 = vrot.slane %v2403, %v2418
        %v2421 = vunpack.c.l.s4 1966171168
        %v2422 = vunpack.c.0.s8 %v2421
        %v2423 = vlaneseq
        %v2424 = vshrl.u32 %v2423, 7
        %v2425 = vsub.s32 %v2422, %v2424
        %v2426 = vrot.slane %v2410, %v2425
        %v2428 = vunpack.c.l.s4 1966171168
        %v2429 = vunpack.c.0.s8 %v2428
        %v2430 = vlaneseq
        %v2431 = vshrl.u32 %v2430, 7
        %v2432 = vsub.s32 %v2429, %v2431
        %v2433 = vrot.slane %v2411, %v2432
        %v2435 = vunpack.c.l.s4 1966171168
        %v2436 = vunpack.c.0.s8 %v2435
        %v2437 = vlaneseq
        %v2438 = vshrl.u32 %v2437, 7
        %v2439 = vsub.s32 %v2436, %v2438
        %v2440 = vrot.slane %v2412, %v2439
        %v2441 = vcombine.high %v2419, %v2419
        %v2442 = vcombine.high %v2426, %v2426
        %v2443 = vcombine.high %v2433, %v2433
        %v2444 = vcombine.high %v2440, %v2440
        %v2445 = vlaneseq
        %v2446 = vshrl.u32 %v2445, 7
        %v2447 = vsub.s32 0, %v2446
        %v2448 = vrot.slane %v2419, %v2447
        %v2449 = vlaneseq
        %v2450 = vshrl.u32 %v2449, 7
        %v2451 = vsub.s32 0, %v2450
        %v2452 = vrot.slane %v2433, %v2451
        %v2453 = vlaneseq
        %v2454 = vshrl.u32 %v2453, 7
        %v2455 = vsub.s32 0, %v2454
        %v2456 = vrot.slane %v2441, %v2455
        %v2457 = vlaneseq
        %v2458 = vshrl.u32 %v2457, 7
        %v2459 = vsub.s32 0, %v2458
        %v2460 = vrot.slane %v2443, %v2459
        %v2461 = vlaneseq
        %v2462 = vshrl.u32 %v2461, 7
        %v2463 = vsub.s32 0, %v2462
        %v2464 = vrot.slane %v2426, %v2463
        %v2465 = vlaneseq
        %v2466 = vshrl.u32 %v2465, 7
        %v2467 = vsub.s32 0, %v2466
        %v2468 = vrot.slane %v2440, %v2467
        %v2469 = vlaneseq
        %v2470 = vshrl.u32 %v2469, 7
        %v2471 = vsub.s32 0, %v2470
        %v2472 = vrot.slane %v2442, %v2471
        %v2473 = vlaneseq
        %v2474 = vshrl.u32 %v2473, 7
        %v2475 = vsub.s32 0, %v2474
        %v2476 = vrot.slane %v2444, %v2475
        %v2485 = vmul.f32 %v2448, %v1235
        %v2486 = vmul.f32 %v2452, %v1236
        %v2487 = vmul.f32 %v2456, %v1237
        %v2488 = vmul.f32 %v2460, %v1238
        %v2489 = vmul.f32 %v2464, %v1239
        %v2490 = vmul.f32 %v2468, %v1240
        %v2491 = vmul.f32 %v2472, %v1241
        %v2492 = vmul.f32 %v2476, %v1242
        %v2493 = vsel %vm1486, %v2485, 0.0
        %2494 = vadd.xlane.f32.xlu0 %v2493
        %v2495 = vpop.xlane.xlu0 %2494
        %v2496 = vsel %vm1486, %v2486, 0.0
        %2497 = vadd.xlane.f32.xlu0 %v2496
        %v2498 = vpop.xlane.xlu0 %2497
        %v2499 = vsel %vm1486, %v2487, 0.0
        %2500 = vadd.xlane.f32.xlu0 %v2499
        %v2501 = vpop.xlane.xlu0 %2500
        %v2502 = vsel %vm1486, %v2488, 0.0
        %2503 = vadd.xlane.f32.xlu0 %v2502
        %v2504 = vpop.xlane.xlu0 %2503
        %v2505 = vsel %vm1486, %v2489, 0.0
        %2506 = vadd.xlane.f32.xlu0 %v2505
        %v2507 = vpop.xlane.xlu0 %2506
        %v2508 = vsel %vm1486, %v2490, 0.0
        %2509 = vadd.xlane.f32.xlu0 %v2508
        %v2510 = vpop.xlane.xlu0 %2509
        %v2511 = vsel %vm1486, %v2491, 0.0
        %2512 = vadd.xlane.f32.xlu0 %v2511
        %v2513 = vpop.xlane.xlu0 %2512
        %v2514 = vsel %vm1486, %v2492, 0.0
        %2515 = vadd.xlane.f32.xlu0 %v2514
        %v2516 = vpop.xlane.xlu0 %2515
        %2518 = vrot.lane.b32.xlu0 %v2351, 96
        %v2519 = vpop.permute.xlu0 %2518
        %v2528 = vlaneseq
        %v2529 = vshrl.u32 %v2528, 7
        %v2530 = vsub.s32 %v1205, %v2529
        %v2531 = vrot.slane %v2495, %v2530
        %v2532 = vlaneseq
        %v2533 = vshrl.u32 %v2532, 7
        %v2534 = vsub.s32 %v1205, %v2533
        %v2535 = vrot.slane %v2498, %v2534
        %v2536 = vlaneseq
        %v2537 = vshrl.u32 %v2536, 7
        %v2538 = vsub.s32 %v1205, %v2537
        %v2539 = vrot.slane %v2501, %v2538
        %v2540 = vlaneseq
        %v2541 = vshrl.u32 %v2540, 7
        %v2542 = vsub.s32 %v1205, %v2541
        %v2543 = vrot.slane %v2504, %v2542
        %v2544 = vlaneseq
        %v2545 = vshrl.u32 %v2544, 7
        %v2546 = vsub.s32 %v1205, %v2545
        %v2547 = vrot.slane %v2507, %v2546
        %v2548 = vlaneseq
        %v2549 = vshrl.u32 %v2548, 7
        %v2550 = vsub.s32 %v1205, %v2549
        %v2551 = vrot.slane %v2510, %v2550
        %v2552 = vlaneseq
        %v2553 = vshrl.u32 %v2552, 7
        %v2554 = vsub.s32 %v1205, %v2553
        %v2555 = vrot.slane %v2513, %v2554
        %v2556 = vlaneseq
        %v2557 = vshrl.u32 %v2556, 7
        %v2558 = vsub.s32 %v1205, %v2557
        %v2559 = vrot.slane %v2516, %v2558
        %v2560 = vsel %vm1554, %v2535, %v2531
        %v2561 = vsel %vm1556, %v2539, %v2560
        %v2562 = vsel %vm1558, %v2543, %v2561
        %v2563 = vsel %vm1560, %v2547, %v2562
        %v2564 = vsel %vm1562, %v2551, %v2563
        %v2565 = vsel %vm1564, %v2555, %v2564
        %v2566 = vsel %vm1566, %v2559, %v2565
        %v2569 = vsel %vm995, %v2519, 0
        %2571 = vmatprep.subr.bf16.mxu0 0
        %2572 = vmatpush1.bf16.xpose.msra.mxu0 %v2569
        %2573 = vmatprep.subr.bf16.mxu0 0
        %2574 = vmatpush1.bf16.xpose.msra.mxu0 0
        %2575 = vmatprep.subr.bf16.mxu0 0
        %2576 = vmatpush1.bf16.xpose.msra.mxu0 0
        %2577 = vmatprep.subr.bf16.mxu0 0
        %2578 = vmatpush1.bf16.xpose.msra.mxu0 0
        %2579 = vmatprep.subr.bf16.mxu0 0
        %2580 = vmatpush1.bf16.xpose.msra.mxu0 0
        %2581 = vmatprep.subr.bf16.mxu0 0
        %2582 = vmatpush1.bf16.xpose.msra.mxu0 0
        %2583 = vmatprep.subr.bf16.mxu0 0
        %2584 = vmatpush1.bf16.xpose.msra.mxu0 0
        %2585 = vmatprep.subr.bf16.mxu0 0
        %2586 = vmatpush1.bf16.xpose.msra.mxu0 0
        %2587 = vmatprep.subr.bf16.mxu0 0
        %2588 = vmatpush1.bf16.xpose.msra.mxu0 0
        %2589 = vmatprep.subr.bf16.mxu0 0
        %2590 = vmatpush1.bf16.xpose.msra.mxu0 0
        %2591 = vmatprep.subr.bf16.mxu0 0
        %2592 = vmatpush1.bf16.xpose.msra.mxu0 0
        %2593 = vmatprep.subr.bf16.mxu0 0
        %2594 = vmatpush1.bf16.xpose.msra.mxu0 0
        %2595 = vmatprep.subr.bf16.mxu0 0
        %2596 = vmatpush1.bf16.xpose.msra.mxu0 0
        %2597 = vmatprep.subr.bf16.mxu0 0
        %2598 = vmatpush1.bf16.xpose.msra.mxu0 0
        %2599 = vmatprep.subr.bf16.mxu0 0
        %2600 = vmatpush1.bf16.xpose.msra.mxu0 0
        %2601 = vmatprep.subr.bf16.mxu0 0
        %2602 = vmatpush1.bf16.xpose.msra.mxu0 0
        %2603 = vmatprep.mubr.bf16.mxu0 0
        %2604 = vmatmul.mubr.bf16.gmra.mrb[0].mxu0 %v2353
        %v2605 = vpop.f32.mrb[0].mxu0
        %v2606 = vadd.f32 %v2566, %v2605
        %v2607 = vpop.f32.mrb[0].mxu0
        %v2608 = vpop.f32.mrb[0].mxu0
        %v2609 = vpop.f32.mrb[0].mxu0
        %2610 = vdwg.mxu0
        %v2611 = vmul.f32 %v2606, 0.25
        %v2612 = vsel %vm1613, %v2611, -inf
        %2613 = vmax.xlane.f32.xlu0 %v2612
        %v2614 = vpop.xlane.xlu0 %2613
        %v2615 = vsub.f32 %v2611, %v2614
        %v2616 = vmul.f32 %v2615, 1.442695
        %v2617 = vpow.pop %v2616
        %v2618 = vsel %vm1613, %v2617, 0.0
        %2619 = vadd.xlane.f32.xlu0 %v2618
        %v2620 = vpop.xlane.xlu0 %2619
        %v2621 = vrcp.pop %v2620
        %v2622 = vmul.f32 %v2617, %v2621
        %v2623 = vpack.c.bf16 %v2622, %v2622
        %2624 = vrot.lane.b32.xlu0 %v2351, 64
        %v2625 = vpop.permute.xlu0 %2624
        %v2627 = vsel %vm1613, %v2623, 0
        %v2630 = vsel %vm1631, %v2625, 0
        %2632 = vmatprep.subr.bf16.mxu0 0
        %2633 = vmatpush1.bf16.msra.mxu0 %v2630
        %2634 = vmatprep.subr.bf16.mxu0 0
        %2635 = vmatpush1.bf16.msra.mxu0 0
        %2636 = vmatprep.subr.bf16.mxu0 0
        %2637 = vmatpush1.bf16.msra.mxu0 0
        %2638 = vmatprep.subr.bf16.mxu0 0
        %2639 = vmatpush1.bf16.msra.mxu0 0
        %2640 = vmatprep.subr.bf16.mxu0 0
        %2641 = vmatpush1.bf16.msra.mxu0 0
        %2642 = vmatprep.subr.bf16.mxu0 0
        %2643 = vmatpush1.bf16.msra.mxu0 0
        %2644 = vmatprep.subr.bf16.mxu0 0
        %2645 = vmatpush1.bf16.msra.mxu0 0
        %2646 = vmatprep.subr.bf16.mxu0 0
        %2647 = vmatpush1.bf16.msra.mxu0 0
        %2648 = vmatprep.subr.bf16.mxu0 0
        %2649 = vmatpush1.bf16.msra.mxu0 0
        %2650 = vmatprep.subr.bf16.mxu0 0
        %2651 = vmatpush1.bf16.msra.mxu0 0
        %2652 = vmatprep.subr.bf16.mxu0 0
        %2653 = vmatpush1.bf16.msra.mxu0 0
        %2654 = vmatprep.subr.bf16.mxu0 0
        %2655 = vmatpush1.bf16.msra.mxu0 0
        %2656 = vmatprep.subr.bf16.mxu0 0
        %2657 = vmatpush1.bf16.msra.mxu0 0
        %2658 = vmatprep.subr.bf16.mxu0 0
        %2659 = vmatpush1.bf16.msra.mxu0 0
        %2660 = vmatprep.subr.bf16.mxu0 0
        %2661 = vmatpush1.bf16.msra.mxu0 0
        %2662 = vmatprep.subr.bf16.mxu0 0
        %2663 = vmatpush1.bf16.msra.mxu0 0
        %2664 = vmatprep.mubr.bf16.mxu0 0
        %2665 = vmatmul.mubr.bf16.gmra.mrb[0].mxu0 %v2627
        %v2666 = vpop.f32.mrb[0].mxu0
        %v2667 = vadd.f32 0.0, %v2666
        %v2668 = vpop.f32.mrb[0].mxu0
        %v2669 = vpop.f32.mrb[0].mxu0
        %v2670 = vpop.f32.mrb[0].mxu0
        %2671 = vdwg.mxu0
        %2672 = vrot.lane.b32.xlu0 %v2351, 112
        %v2673 = vpop.permute.xlu0 %2672
        %v2675 = vsel %vm995, %v2673, 0
        %2677 = vmatprep.subr.bf16.mxu0 0
        %2678 = vmatpush1.bf16.xpose.msra.mxu0 %v1346
        %2679 = vmatprep.subr.bf16.mxu0 0
        %2680 = vmatpush1.bf16.xpose.msra.mxu0 0
        %2681 = vmatprep.subr.bf16.mxu0 0
        %2682 = vmatpush1.bf16.xpose.msra.mxu0 0
        %2683 = vmatprep.subr.bf16.mxu0 0
        %2684 = vmatpush1.bf16.xpose.msra.mxu0 0
        %2685 = vmatprep.subr.bf16.mxu0 0
        %2686 = vmatpush1.bf16.xpose.msra.mxu0 0
        %2687 = vmatprep.subr.bf16.mxu0 0
        %2688 = vmatpush1.bf16.xpose.msra.mxu0 0
        %2689 = vmatprep.subr.bf16.mxu0 0
        %2690 = vmatpush1.bf16.xpose.msra.mxu0 0
        %2691 = vmatprep.subr.bf16.mxu0 0
        %2692 = vmatpush1.bf16.xpose.msra.mxu0 0
        %2693 = vmatprep.subr.bf16.mxu0 0
        %2694 = vmatpush1.bf16.xpose.msra.mxu0 0
        %2695 = vmatprep.subr.bf16.mxu0 0
        %2696 = vmatpush1.bf16.xpose.msra.mxu0 0
        %2697 = vmatprep.subr.bf16.mxu0 0
        %2698 = vmatpush1.bf16.xpose.msra.mxu0 0
        %2699 = vmatprep.subr.bf16.mxu0 0
        %2700 = vmatpush1.bf16.xpose.msra.mxu0 0
        %2701 = vmatprep.subr.bf16.mxu0 0
        %2702 = vmatpush1.bf16.xpose.msra.mxu0 0
        %2703 = vmatprep.subr.bf16.mxu0 0
        %2704 = vmatpush1.bf16.xpose.msra.mxu0 0
        %2705 = vmatprep.subr.bf16.mxu0 0
        %2706 = vmatpush1.bf16.xpose.msra.mxu0 0
        %2707 = vmatprep.subr.bf16.mxu0 0
        %2708 = vmatpush1.bf16.xpose.msra.mxu0 0
        %2709 = vmatprep.mubr.bf16.mxu0 0
        %2710 = vmatmul.mubr.bf16.gmra.mrb[0].mxu0 %v2675
        %v2711 = vpop.f32.mrb[0].mxu0
        %v2712 = vadd.f32 0.0, %v2711
        %v2713 = vpop.f32.mrb[0].mxu0
        %v2714 = vpop.f32.mrb[0].mxu0
        %v2715 = vpop.f32.mrb[0].mxu0
        %2716 = vdwg.mxu0
        %v2718 = vcombine.high %v2712, %v2712
        %v2720 = vunpack.c.l.s4 1966171168
        %v2721 = vunpack.c.0.s8 %v2720
        %v2722 = vlaneseq
        %v2723 = vshrl.u32 %v2722, 7
        %v2724 = vsub.s32 %v2721, %v2723
        %v2725 = vrot.slane %v2712, %v2724
        %v2727 = vunpack.c.l.s4 1966171168
        %v2728 = vunpack.c.0.s8 %v2727
        %v2729 = vlaneseq
        %v2730 = vshrl.u32 %v2729, 7
        %v2731 = vsub.s32 %v2728, %v2730
        %v2732 = vrot.slane %v2718, %v2731
        %v2733 = vcombine.high %v2725, %v2725
        %v2734 = vcombine.high %v2732, %v2732
        %v2736 = vunpack.c.l.s4 1966171168
        %v2737 = vunpack.c.0.s8 %v2736
        %v2738 = vlaneseq
        %v2739 = vshrl.u32 %v2738, 7
        %v2740 = vsub.s32 %v2737, %v2739
        %v2741 = vrot.slane %v2725, %v2740
        %v2743 = vunpack.c.l.s4 1966171168
        %v2744 = vunpack.c.0.s8 %v2743
        %v2745 = vlaneseq
        %v2746 = vshrl.u32 %v2745, 7
        %v2747 = vsub.s32 %v2744, %v2746
        %v2748 = vrot.slane %v2732, %v2747
        %v2750 = vunpack.c.l.s4 1966171168
        %v2751 = vunpack.c.0.s8 %v2750
        %v2752 = vlaneseq
        %v2753 = vshrl.u32 %v2752, 7
        %v2754 = vsub.s32 %v2751, %v2753
        %v2755 = vrot.slane %v2733, %v2754
        %v2757 = vunpack.c.l.s4 1966171168
        %v2758 = vunpack.c.0.s8 %v2757
        %v2759 = vlaneseq
        %v2760 = vshrl.u32 %v2759, 7
        %v2761 = vsub.s32 %v2758, %v2760
        %v2762 = vrot.slane %v2734, %v2761
        %v2763 = vcombine.high %v2741, %v2741
        %v2764 = vcombine.high %v2748, %v2748
        %v2765 = vcombine.high %v2755, %v2755
        %v2766 = vcombine.high %v2762, %v2762
        %v2767 = vlaneseq
        %v2768 = vshrl.u32 %v2767, 7
        %v2769 = vsub.s32 0, %v2768
        %v2770 = vrot.slane %v2741, %v2769
        %v2771 = vlaneseq
        %v2772 = vshrl.u32 %v2771, 7
        %v2773 = vsub.s32 0, %v2772
        %v2774 = vrot.slane %v2755, %v2773
        %v2775 = vlaneseq
        %v2776 = vshrl.u32 %v2775, 7
        %v2777 = vsub.s32 0, %v2776
        %v2778 = vrot.slane %v2763, %v2777
        %v2779 = vlaneseq
        %v2780 = vshrl.u32 %v2779, 7
        %v2781 = vsub.s32 0, %v2780
        %v2782 = vrot.slane %v2765, %v2781
        %v2783 = vlaneseq
        %v2784 = vshrl.u32 %v2783, 7
        %v2785 = vsub.s32 0, %v2784
        %v2786 = vrot.slane %v2748, %v2785
        %v2787 = vlaneseq
        %v2788 = vshrl.u32 %v2787, 7
        %v2789 = vsub.s32 0, %v2788
        %v2790 = vrot.slane %v2762, %v2789
        %v2791 = vlaneseq
        %v2792 = vshrl.u32 %v2791, 7
        %v2793 = vsub.s32 0, %v2792
        %v2794 = vrot.slane %v2764, %v2793
        %v2795 = vlaneseq
        %v2796 = vshrl.u32 %v2795, 7
        %v2797 = vsub.s32 0, %v2796
        %v2798 = vrot.slane %v2766, %v2797
        %v2807 = vmul.f32 %v2770, %v1235
        %v2808 = vmul.f32 %v2774, %v1236
        %v2809 = vmul.f32 %v2778, %v1237
        %v2810 = vmul.f32 %v2782, %v1238
        %v2811 = vmul.f32 %v2786, %v1239
        %v2812 = vmul.f32 %v2790, %v1240
        %v2813 = vmul.f32 %v2794, %v1241
        %v2814 = vmul.f32 %v2798, %v1242
        %v2815 = vsel %vm1486, %v2807, 0.0
        %2816 = vadd.xlane.f32.xlu0 %v2815
        %v2817 = vpop.xlane.xlu0 %2816
        %v2818 = vsel %vm1486, %v2808, 0.0
        %2819 = vadd.xlane.f32.xlu0 %v2818
        %v2820 = vpop.xlane.xlu0 %2819
        %v2821 = vsel %vm1486, %v2809, 0.0
        %2822 = vadd.xlane.f32.xlu0 %v2821
        %v2823 = vpop.xlane.xlu0 %2822
        %v2824 = vsel %vm1486, %v2810, 0.0
        %2825 = vadd.xlane.f32.xlu0 %v2824
        %v2826 = vpop.xlane.xlu0 %2825
        %v2827 = vsel %vm1486, %v2811, 0.0
        %2828 = vadd.xlane.f32.xlu0 %v2827
        %v2829 = vpop.xlane.xlu0 %2828
        %v2830 = vsel %vm1486, %v2812, 0.0
        %2831 = vadd.xlane.f32.xlu0 %v2830
        %v2832 = vpop.xlane.xlu0 %2831
        %v2833 = vsel %vm1486, %v2813, 0.0
        %2834 = vadd.xlane.f32.xlu0 %v2833
        %v2835 = vpop.xlane.xlu0 %2834
        %v2836 = vsel %vm1486, %v2814, 0.0
        %2837 = vadd.xlane.f32.xlu0 %v2836
        %v2838 = vpop.xlane.xlu0 %2837
        %2839 = vrot.lane.b32.xlu0 %v2351, 80
        %v2840 = vpop.permute.xlu0 %2839
        %v2849 = vlaneseq
        %v2850 = vshrl.u32 %v2849, 7
        %v2851 = vsub.s32 %v1205, %v2850
        %v2852 = vrot.slane %v2817, %v2851
        %v2853 = vlaneseq
        %v2854 = vshrl.u32 %v2853, 7
        %v2855 = vsub.s32 %v1205, %v2854
        %v2856 = vrot.slane %v2820, %v2855
        %v2857 = vlaneseq
        %v2858 = vshrl.u32 %v2857, 7
        %v2859 = vsub.s32 %v1205, %v2858
        %v2860 = vrot.slane %v2823, %v2859
        %v2861 = vlaneseq
        %v2862 = vshrl.u32 %v2861, 7
        %v2863 = vsub.s32 %v1205, %v2862
        %v2864 = vrot.slane %v2826, %v2863
        %v2865 = vlaneseq
        %v2866 = vshrl.u32 %v2865, 7
        %v2867 = vsub.s32 %v1205, %v2866
        %v2868 = vrot.slane %v2829, %v2867
        %v2869 = vlaneseq
        %v2870 = vshrl.u32 %v2869, 7
        %v2871 = vsub.s32 %v1205, %v2870
        %v2872 = vrot.slane %v2832, %v2871
        %v2873 = vlaneseq
        %v2874 = vshrl.u32 %v2873, 7
        %v2875 = vsub.s32 %v1205, %v2874
        %v2876 = vrot.slane %v2835, %v2875
        %v2877 = vlaneseq
        %v2878 = vshrl.u32 %v2877, 7
        %v2879 = vsub.s32 %v1205, %v2878
        %v2880 = vrot.slane %v2838, %v2879
        %v2881 = vsel %vm1554, %v2856, %v2852
        %v2882 = vsel %vm1556, %v2860, %v2881
        %v2883 = vsel %vm1558, %v2864, %v2882
        %v2884 = vsel %vm1560, %v2868, %v2883
        %v2885 = vsel %vm1562, %v2872, %v2884
        %v2886 = vsel %vm1564, %v2876, %v2885
        %v2887 = vsel %vm1566, %v2880, %v2886
        %v2890 = vsel %vm995, %v2840, 0
        %2892 = vmatprep.subr.bf16.mxu0 0
        %2893 = vmatpush1.bf16.xpose.msra.mxu0 %v2890
        %2894 = vmatprep.subr.bf16.mxu0 0
        %2895 = vmatpush1.bf16.xpose.msra.mxu0 0
        %2896 = vmatprep.subr.bf16.mxu0 0
        %2897 = vmatpush1.bf16.xpose.msra.mxu0 0
        %2898 = vmatprep.subr.bf16.mxu0 0
        %2899 = vmatpush1.bf16.xpose.msra.mxu0 0
        %2900 = vmatprep.subr.bf16.mxu0 0
        %2901 = vmatpush1.bf16.xpose.msra.mxu0 0
        %2902 = vmatprep.subr.bf16.mxu0 0
        %2903 = vmatpush1.bf16.xpose.msra.mxu0 0
        %2904 = vmatprep.subr.bf16.mxu0 0
        %2905 = vmatpush1.bf16.xpose.msra.mxu0 0
        %2906 = vmatprep.subr.bf16.mxu0 0
        %2907 = vmatpush1.bf16.xpose.msra.mxu0 0
        %2908 = vmatprep.subr.bf16.mxu0 0
        %2909 = vmatpush1.bf16.xpose.msra.mxu0 0
        %2910 = vmatprep.subr.bf16.mxu0 0
        %2911 = vmatpush1.bf16.xpose.msra.mxu0 0
        %2912 = vmatprep.subr.bf16.mxu0 0
        %2913 = vmatpush1.bf16.xpose.msra.mxu0 0
        %2914 = vmatprep.subr.bf16.mxu0 0
        %2915 = vmatpush1.bf16.xpose.msra.mxu0 0
        %2916 = vmatprep.subr.bf16.mxu0 0
        %2917 = vmatpush1.bf16.xpose.msra.mxu0 0
        %2918 = vmatprep.subr.bf16.mxu0 0
        %2919 = vmatpush1.bf16.xpose.msra.mxu0 0
        %2920 = vmatprep.subr.bf16.mxu0 0
        %2921 = vmatpush1.bf16.xpose.msra.mxu0 0
        %2922 = vmatprep.subr.bf16.mxu0 0
        %2923 = vmatpush1.bf16.xpose.msra.mxu0 0
        %2924 = vmatprep.mubr.bf16.mxu0 0
        %2925 = vmatmul.mubr.bf16.gmra.mrb[0].mxu0 %v2675
        %v2926 = vpop.f32.mrb[0].mxu0
        %v2927 = vadd.f32 %v2887, %v2926
        %v2928 = vpop.f32.mrb[0].mxu0
        %v2929 = vpop.f32.mrb[0].mxu0
        %v2930 = vpop.f32.mrb[0].mxu0
        %2931 = vdwg.mxu0
        %v2932 = vmul.f32 %v2927, 0.25
        %v2933 = vsel %vm1613, %v2932, -inf
        %2934 = vmax.xlane.f32.xlu0 %v2933
        %v2935 = vpop.xlane.xlu0 %2934
        %v2936 = vsub.f32 %v2932, %v2935
        %v2937 = vmul.f32 %v2936, 1.442695
        %v2938 = vpow.pop %v2937
        %v2939 = vsel %vm1613, %v2938, 0.0
        %2940 = vadd.xlane.f32.xlu0 %v2939
        %v2941 = vpop.xlane.xlu0 %2940
        %v2942 = vrcp.pop %v2941
        %v2943 = vmul.f32 %v2938, %v2942
        %v2944 = vpack.c.bf16 %v2943, %v2943
        %2945 = vrot.lane.b32.xlu0 %v2351, 48
        %v2946 = vpop.permute.xlu0 %2945
        %v2948 = vsel %vm1613, %v2944, 0
        %v2951 = vsel %vm1631, %v2946, 0
        %2953 = vmatprep.subr.bf16.mxu0 0
        %2954 = vmatpush1.bf16.msra.mxu0 %v2951
        %2955 = vmatprep.subr.bf16.mxu0 0
        %2956 = vmatpush1.bf16.msra.mxu0 0
        %2957 = vmatprep.subr.bf16.mxu0 0
        %2958 = vmatpush1.bf16.msra.mxu0 0
        %2959 = vmatprep.subr.bf16.mxu0 0
        %2960 = vmatpush1.bf16.msra.mxu0 0
        %2961 = vmatprep.subr.bf16.mxu0 0
        %2962 = vmatpush1.bf16.msra.mxu0 0
        %2963 = vmatprep.subr.bf16.mxu0 0
        %2964 = vmatpush1.bf16.msra.mxu0 0
        %2965 = vmatprep.subr.bf16.mxu0 0
        %2966 = vmatpush1.bf16.msra.mxu0 0
        %2967 = vmatprep.subr.bf16.mxu0 0
        %2968 = vmatpush1.bf16.msra.mxu0 0
        %2969 = vmatprep.subr.bf16.mxu0 0
        %2970 = vmatpush1.bf16.msra.mxu0 0
        %2971 = vmatprep.subr.bf16.mxu0 0
        %2972 = vmatpush1.bf16.msra.mxu0 0
        %2973 = vmatprep.subr.bf16.mxu0 0
        %2974 = vmatpush1.bf16.msra.mxu0 0
        %2975 = vmatprep.subr.bf16.mxu0 0
        %2976 = vmatpush1.bf16.msra.mxu0 0
        %2977 = vmatprep.subr.bf16.mxu0 0
        %2978 = vmatpush1.bf16.msra.mxu0 0
        %2979 = vmatprep.subr.bf16.mxu0 0
        %2980 = vmatpush1.bf16.msra.mxu0 0
        %2981 = vmatprep.subr.bf16.mxu0 0
        %2982 = vmatpush1.bf16.msra.mxu0 0
        %2983 = vmatprep.subr.bf16.mxu0 0
        %2984 = vmatpush1.bf16.msra.mxu0 0
        %2985 = vmatprep.mubr.bf16.mxu0 0
        %2986 = vmatmul.mubr.bf16.gmra.mrb[0].mxu0 %v2948
        %v2987 = vpop.f32.mrb[0].mxu0
        %v2988 = vadd.f32 0.0, %v2987
        %v2989 = vpop.f32.mrb[0].mxu0
        %v2990 = vpop.f32.mrb[0].mxu0
        %v2991 = vpop.f32.mrb[0].mxu0
        %2992 = vdwg.mxu0
        %2994 = vrot.lane.b32.xlu0 %v2988, 16
        %v2995 = vpop.permute.xlu0 %2994
        %v2997 = vsel %vm995, %v2667, %v2995
        %s2998 = scalar_lea.vmem %s11, 16
        %v2999 = vld [vmem:[%s2998] sm:$0xf]
        %v3000 = vld [vmem:[%s2998 + $0x4] sm:$0xf]
        %v3001 = vld [vmem:[%s2998 + $0x8] sm:$0xf]
        %v3002 = vld [vmem:[%s2998 + $0xc] sm:$0xf]
        %v3003 = vpack.c.bf16 %v2997, %v2997
        %s3004 = scalar_lea.vmem [#allocation10], 1
        %v3005 = vld [vmem:[%s3004] sm:$0x1]
        %v3007 = vlaneseq
        %v3008 = vshrl.u32 %v3007, 7
        %v3009 = vsub.s32 0, %v3008
        %v3010 = vrot.slane %v3005, %v3009
        %v3016 = vunpack.c.l.b16 %v2999
        %v3017 = vunpack.c.l.b16 %v3000
        %v3018 = vunpack.c.l.b16 %v3001
        %v3019 = vunpack.c.l.b16 %v3002
        %v3020 = vpack.c.b16 %v3017, %v3016
        %v3021 = vpack.c.b16 %v3019, %v3018
        %v3025 = vsel %vm1066, %v3003, 0
        %3027 = vmatprep.subr.bf16.mxu0 0
        %3028 = vmatpush1.bf16.msra.mxu0 %v3020
        %3029 = vmatprep.subr.bf16.mxu0 0
        %3030 = vmatpush1.bf16.msra.mxu0 %v3021
        %3031 = vmatprep.subr.bf16.mxu0 0
        %3032 = vmatpush1.bf16.msra.mxu0 0
        %3033 = vmatprep.subr.bf16.mxu0 0
        %3034 = vmatpush1.bf16.msra.mxu0 0
        %3035 = vmatprep.subr.bf16.mxu0 0
        %3036 = vmatpush1.bf16.msra.mxu0 0
        %3037 = vmatprep.subr.bf16.mxu0 0
        %3038 = vmatpush1.bf16.msra.mxu0 0
        %3039 = vmatprep.subr.bf16.mxu0 0
        %3040 = vmatpush1.bf16.msra.mxu0 0
        %3041 = vmatprep.subr.bf16.mxu0 0
        %3042 = vmatpush1.bf16.msra.mxu0 0
        %3043 = vmatprep.subr.bf16.mxu0 0
        %3044 = vmatpush1.bf16.msra.mxu0 0
        %3045 = vmatprep.subr.bf16.mxu0 0
        %3046 = vmatpush1.bf16.msra.mxu0 0
        %3047 = vmatprep.subr.bf16.mxu0 0
        %3048 = vmatpush1.bf16.msra.mxu0 0
        %3049 = vmatprep.subr.bf16.mxu0 0
        %3050 = vmatpush1.bf16.msra.mxu0 0
        %3051 = vmatprep.subr.bf16.mxu0 0
        %3052 = vmatpush1.bf16.msra.mxu0 0
        %3053 = vmatprep.subr.bf16.mxu0 0
        %3054 = vmatpush1.bf16.msra.mxu0 0
        %3055 = vmatprep.subr.bf16.mxu0 0
        %3056 = vmatpush1.bf16.msra.mxu0 0
        %3057 = vmatprep.subr.bf16.mxu0 0
        %3058 = vmatpush1.bf16.msra.mxu0 0
        %3059 = vmatprep.mubr.bf16.mxu0 0
        %3060 = vmatmul.mubr.bf16.gmra.mrb[0].mxu0 %v3025
        %v3061 = vpop.f32.mrb[0].mxu0
        %v3062 = vadd.f32 %v3010, %v3061
        %v3063 = vpop.f32.mrb[0].mxu0
        %v3064 = vpop.f32.mrb[0].mxu0
        %v3065 = vpop.f32.mrb[0].mxu0
        %3066 = vdwg.mxu0
        %v3067 = vadd.f32 %v2250, %v3062
        %s3068 = scalar_lea.vmem %s19, 1
        %v3069 = vld [vmem:[%s3068] sm:$0x1]
        %s3070 = scalar_lea.vmem %s20, 1
        %v3071 = vld [vmem:[%s3070] sm:$0x1]
        %v3072 = vsel %vm1066, %v3067, 0.0
        %3073 = vadd.xlane.f32.xlu0 %v3072
        %v3074 = vpop.xlane.xlu0 %3073
        %v3075 = vmul.f32 %v3074, %v1248
        %v3076 = vsub.f32 %v3067, %v3075
        %v3077 = vmul.f32 %v3076, %v3076
        %v3078 = vsel %vm1066, %v3077, 0.0
        %3079 = vadd.xlane.f32.xlu0 %v3078
        %v3080 = vpop.xlane.xlu0 %3079
        %v3081 = vmul.f32 %v3080, %v1248
        %v3082 = vadd.f32 %v3081, 1e-05
        %v3083 = vrsqrt.pop %v3082
        %v3084 = vmul.f32 %v3076, %v3083
        %v3086 = vlaneseq
        %v3087 = vshrl.u32 %v3086, 7
        %v3088 = vsub.s32 0, %v3087
        %v3089 = vrot.slane %v3069, %v3088
        %v3091 = vmul.f32 %v3084, %v3089
        %v3093 = vlaneseq
        %v3094 = vshrl.u32 %v3093, 7
        %v3095 = vsub.s32 0, %v3094
        %v3096 = vrot.slane %v3071, %v3095
        %v3098 = vadd.f32 %v3091, %v3096
        %s3099 = scalar_lea.vmem %s15, 16
        %v3100 = vld [vmem:[%s3099] sm:$0xf]
        %v3101 = vld [vmem:[%s3099 + $0x4] sm:$0xf]
        %v3102 = vld [vmem:[%s3099 + $0x8] sm:$0xf]
        %v3103 = vld [vmem:[%s3099 + $0xc] sm:$0xf]
        %v3104 = vpack.c.bf16 %v3098, %v3098
        %s3105 = scalar_lea.vmem %s16, 1
        %v3106 = vld [vmem:[%s3105] sm:$0x1]
        %v3108 = vlaneseq
        %v3109 = vshrl.u32 %v3108, 7
        %v3110 = vsub.s32 0, %v3109
        %v3111 = vrot.slane %v3106, %v3110
        %v3117 = vunpack.c.l.b16 %v3100
        %v3118 = vunpack.c.l.b16 %v3101
        %v3119 = vunpack.c.l.b16 %v3102
        %v3120 = vunpack.c.l.b16 %v3103
        %v3121 = vpack.c.b16 %v3118, %v3117
        %v3122 = vpack.c.b16 %v3120, %v3119
        %v3126 = vsel %vm1066, %v3104, 0
        %3128 = vmatprep.subr.bf16.mxu0 0
        %3129 = vmatpush1.bf16.msra.mxu0 %v3121
        %3130 = vmatprep.subr.bf16.mxu0 0
        %3131 = vmatpush1.bf16.msra.mxu0 %v3122
        %3132 = vmatprep.subr.bf16.mxu0 0
        %3133 = vmatpush1.bf16.msra.mxu0 0
        %3134 = vmatprep.subr.bf16.mxu0 0
        %3135 = vmatpush1.bf16.msra.mxu0 0
        %3136 = vmatprep.subr.bf16.mxu0 0
        %3137 = vmatpush1.bf16.msra.mxu0 0
        %3138 = vmatprep.subr.bf16.mxu0 0
        %3139 = vmatpush1.bf16.msra.mxu0 0
        %3140 = vmatprep.subr.bf16.mxu0 0
        %3141 = vmatpush1.bf16.msra.mxu0 0
        %3142 = vmatprep.subr.bf16.mxu0 0
        %3143 = vmatpush1.bf16.msra.mxu0 0
        %3144 = vmatprep.subr.bf16.mxu0 0
        %3145 = vmatpush1.bf16.msra.mxu0 0
        %3146 = vmatprep.subr.bf16.mxu0 0
        %3147 = vmatpush1.bf16.msra.mxu0 0
        %3148 = vmatprep.subr.bf16.mxu0 0
        %3149 = vmatpush1.bf16.msra.mxu0 0
        %3150 = vmatprep.subr.bf16.mxu0 0
        %3151 = vmatpush1.bf16.msra.mxu0 0
        %3152 = vmatprep.subr.bf16.mxu0 0
        %3153 = vmatpush1.bf16.msra.mxu0 0
        %3154 = vmatprep.subr.bf16.mxu0 0
        %3155 = vmatpush1.bf16.msra.mxu0 0
        %3156 = vmatprep.subr.bf16.mxu0 0
        %3157 = vmatpush1.bf16.msra.mxu0 0
        %3158 = vmatprep.subr.bf16.mxu0 0
        %3159 = vmatpush1.bf16.msra.mxu0 0
        %3160 = vmatprep.mubr.bf16.mxu0 0
        %3161 = vmatmul.mubr.bf16.gmra.mrb[0].mxu0 %v3126
        %v3162 = vpop.f32.mrb[0].mxu0
        %v3163 = vadd.f32 %v3111, %v3162
        %v3164 = vpop.f32.mrb[0].mxu0
        %v3165 = vpop.f32.mrb[0].mxu0
        %v3166 = vpop.f32.mrb[0].mxu0
        %3167 = vdwg.mxu0
        %v3168 = vmax.f32 %v3163, 0.0
        %s3169 = scalar_lea.vmem %s17, 32
        %v3170 = vld [vmem:[%s3169] sm:$0xf]
        %v3171 = vld [vmem:[%s3169 + $0x4] sm:$0xf]
        %v3172 = vld [vmem:[%s3169 + $0x8] sm:$0xf]
        %v3173 = vld [vmem:[%s3169 + $0xc] sm:$0xf]
        %v3174 = vld [vmem:[%s3169 + $0x10] sm:$0xf]
        %v3175 = vld [vmem:[%s3169 + $0x14] sm:$0xf]
        %v3176 = vld [vmem:[%s3169 + $0x18] sm:$0xf]
        %v3177 = vld [vmem:[%s3169 + $0x1c] sm:$0xf]
        %v3178 = vpack.c.bf16 %v3168, %v3168
        %s3179 = scalar_lea.vmem %s18, 1
        %v3180 = vld [vmem:[%s3179] sm:$0x1]
        %v3182 = vlaneseq
        %v3183 = vshrl.u32 %v3182, 7
        %v3184 = vsub.s32 0, %v3183
        %v3185 = vrot.slane %v3180, %v3184
        %v3195 = vunpack.c.l.b16 %v3170
        %v3196 = vunpack.c.l.b16 %v3171
        %v3197 = vunpack.c.l.b16 %v3172
        %v3198 = vunpack.c.l.b16 %v3173
        %v3199 = vunpack.c.l.b16 %v3174
        %v3200 = vunpack.c.l.b16 %v3175
        %v3201 = vunpack.c.l.b16 %v3176
        %v3202 = vunpack.c.l.b16 %v3177
        %v3203 = vpack.c.b16 %v3196, %v3195
        %v3204 = vpack.c.b16 %v3198, %v3197
        %v3205 = vpack.c.b16 %v3200, %v3199
        %v3206 = vpack.c.b16 %v3202, %v3201
        %v3212 = vsel %vm2206, %v3178, 0
        %3214 = vmatprep.subr.bf16.mxu0 0
        %3215 = vmatpush1.bf16.msra.mxu0 %v3203
        %3216 = vmatprep.subr.bf16.mxu0 0
        %3217 = vmatpush1.bf16.msra.mxu0 %v3204
        %3218 = vmatprep.subr.bf16.mxu0 0
        %3219 = vmatpush1.bf16.msra.mxu0 %v3205
        %3220 = vmatprep.subr.bf16.mxu0 0
        %3221 = vmatpush1.bf16.msra.mxu0 %v3206
        %3222 = vmatprep.subr.bf16.mxu0 0
        %3223 = vmatpush1.bf16.msra.mxu0 0
        %3224 = vmatprep.subr.bf16.mxu0 0
        %3225 = vmatpush1.bf16.msra.mxu0 0
        %3226 = vmatprep.subr.bf16.mxu0 0
        %3227 = vmatpush1.bf16.msra.mxu0 0
        %3228 = vmatprep.subr.bf16.mxu0 0
        %3229 = vmatpush1.bf16.msra.mxu0 0
        %3230 = vmatprep.subr.bf16.mxu0 0
        %3231 = vmatpush1.bf16.msra.mxu0 0
        %3232 = vmatprep.subr.bf16.mxu0 0
        %3233 = vmatpush1.bf16.msra.mxu0 0
        %3234 = vmatprep.subr.bf16.mxu0 0
        %3235 = vmatpush1.bf16.msra.mxu0 0
        %3236 = vmatprep.subr.bf16.mxu0 0
        %3237 = vmatpush1.bf16.msra.mxu0 0
        %3238 = vmatprep.subr.bf16.mxu0 0
        %3239 = vmatpush1.bf16.msra.mxu0 0
        %3240 = vmatprep.subr.bf16.mxu0 0
        %3241 = vmatpush1.bf16.msra.mxu0 0
        %3242 = vmatprep.subr.bf16.mxu0 0
        %3243 = vmatpush1.bf16.msra.mxu0 0
        %3244 = vmatprep.subr.bf16.mxu0 0
        %3245 = vmatpush1.bf16.msra.mxu0 0
        %3246 = vmatprep.mubr.bf16.mxu0 0
        %3247 = vmatmul.mubr.bf16.gmra.mrb[0].mxu0 %v3212
        %v3248 = vpop.f32.mrb[0].mxu0
        %v3249 = vadd.f32 %v3185, %v3248
        %v3250 = vpop.f32.mrb[0].mxu0
        %v3251 = vpop.f32.mrb[0].mxu0
        %v3252 = vpop.f32.mrb[0].mxu0
        %3253 = vdwg.mxu0
        %v3254 = vadd.f32 %v3067, %v3249
        %v3255 = vld [vmem:[#allocation14] sm:$0x1]
        %v3256 = vld [vmem:[#allocation16] sm:$0x1]
        %v3257 = vsel %vm1066, %v3254, 0.0
        %3258 = vadd.xlane.f32.xlu0 %v3257
        %v3259 = vpop.xlane.xlu0 %3258
        %v3260 = vmul.f32 %v3259, %v1248
        %v3261 = vsub.f32 %v3254, %v3260
        %v3262 = vmul.f32 %v3261, %v3261
        %v3263 = vsel %vm1066, %v3262, 0.0
        %3264 = vadd.xlane.f32.xlu0 %v3263
        %v3265 = vpop.xlane.xlu0 %3264
        %v3266 = vmul.f32 %v3265, %v1248
        %v3267 = vadd.f32 %v3266, 1e-05
        %v3268 = vrsqrt.pop %v3267
        %v3269 = vmul.f32 %v3261, %v3268
        %v3271 = vlaneseq
        %v3272 = vshrl.u32 %v3271, 7
        %v3273 = vsub.s32 0, %v3272
        %v3274 = vrot.slane %v3255, %v3273
        %v3276 = vmul.f32 %v3269, %v3274
        %v3278 = vlaneseq
        %v3279 = vshrl.u32 %v3278, 7
        %v3280 = vsub.s32 0, %v3279
        %v3281 = vrot.slane %v3256, %v3280
        %v3283 = vadd.f32 %v3276, %v3281
        %v3284 = vld [vmem:[#allocation17] sm:$0xf]
        %v3285 = vld [vmem:[#allocation17 + $0x4] sm:$0xf]
        %v3286 = vld [vmem:[#allocation17 + $0x8] sm:$0xf]
        %v3287 = vld [vmem:[#allocation17 + $0xc] sm:$0xf]
        %v3288 = vpack.c.bf16 %v3283, %v3283
        %v3289 = vld [vmem:[#allocation19] sm:$0x1]
        %v3291 = vlaneseq
        %v3292 = vshrl.u32 %v3291, 7
        %v3293 = vsub.s32 0, %v3292
        %v3294 = vrot.slane %v3289, %v3293
        %v3300 = vunpack.c.l.b16 %v3284
        %v3301 = vunpack.c.l.b16 %v3285
        %v3302 = vunpack.c.l.b16 %v3286
        %v3303 = vunpack.c.l.b16 %v3287
        %v3304 = vpack.c.b16 %v3301, %v3300
        %v3305 = vpack.c.b16 %v3303, %v3302
        %v3309 = vsel %vm1066, %v3288, 0
        %3311 = vmatprep.subr.bf16.mxu0 0
        %3312 = vmatpush1.bf16.msra.mxu0 %v3304
        %3313 = vmatprep.subr.bf16.mxu0 0
        %3314 = vmatpush1.bf16.msra.mxu0 %v3305
        %3315 = vmatprep.subr.bf16.mxu0 0
        %3316 = vmatpush1.bf16.msra.mxu0 0
        %3317 = vmatprep.subr.bf16.mxu0 0
        %3318 = vmatpush1.bf16.msra.mxu0 0
        %3319 = vmatprep.subr.bf16.mxu0 0
        %3320 = vmatpush1.bf16.msra.mxu0 0
        %3321 = vmatprep.subr.bf16.mxu0 0
        %3322 = vmatpush1.bf16.msra.mxu0 0
        %3323 = vmatprep.subr.bf16.mxu0 0
        %3324 = vmatpush1.bf16.msra.mxu0 0
        %3325 = vmatprep.subr.bf16.mxu0 0
        %3326 = vmatpush1.bf16.msra.mxu0 0
        %3327 = vmatprep.subr.bf16.mxu0 0
        %3328 = vmatpush1.bf16.msra.mxu0 0
        %3329 = vmatprep.subr.bf16.mxu0 0
        %3330 = vmatpush1.bf16.msra.mxu0 0
        %3331 = vmatprep.subr.bf16.mxu0 0
        %3332 = vmatpush1.bf16.msra.mxu0 0
        %3333 = vmatprep.subr.bf16.mxu0 0
        %3334 = vmatpush1.bf16.msra.mxu0 0
        %3335 = vmatprep.subr.bf16.mxu0 0
        %3336 = vmatpush1.bf16.msra.mxu0 0
        %3337 = vmatprep.subr.bf16.mxu0 0
        %3338 = vmatpush1.bf16.msra.mxu0 0
        %3339 = vmatprep.subr.bf16.mxu0 0
        %3340 = vmatpush1.bf16.msra.mxu0 0
        %3341 = vmatprep.subr.bf16.mxu0 0
        %3342 = vmatpush1.bf16.msra.mxu0 0
        %3343 = vmatprep.mubr.bf16.mxu0 0
        %3344 = vmatmul.mubr.bf16.gmra.mrb[0].mxu0 %v3309
        %v3345 = vpop.f32.mrb[0].mxu0
        %v3346 = vadd.f32 %v3294, %v3345
        %v3347 = vpop.f32.mrb[0].mxu0
        %v3348 = vpop.f32.mrb[0].mxu0
        %v3349 = vpop.f32.mrb[0].mxu0
        %3350 = vdwg.mxu0
        %vm3351 = vcmp.ge.f32.partialorder %v3346, 0.0
        %v3352 = vmul.f32 %v3346, 0.25
        %v3353 = vsel %vm3351, %v3346, %v3352
        %v3354 = vld [vmem:[%s25] sm:$0xf]
        %v3355 = vld [vmem:[%s25 + $0x4] sm:$0xf]
        %v3356 = vld [vmem:[%s25 + $0x8] sm:$0xf]
        %v3357 = vld [vmem:[%s25 + $0xc] sm:$0xf]
        %v3358 = vpack.c.bf16 %v3353, %v3353
        %v3359 = vld [vmem:[#allocation20] sm:$0x1]
        %v3361 = vlaneseq
        %v3362 = vshrl.u32 %v3361, 7
        %v3363 = vsub.s32 0, %v3362
        %v3364 = vrot.slane %v3359, %v3363
        %v3370 = vunpack.c.l.b16 %v3354
        %v3371 = vunpack.c.l.b16 %v3355
        %v3372 = vunpack.c.l.b16 %v3356
        %v3373 = vunpack.c.l.b16 %v3357
        %v3374 = vpack.c.b16 %v3371, %v3370
        %v3375 = vpack.c.b16 %v3373, %v3372
        %v3379 = vsel %vm1066, %v3358, 0
        %3381 = vmatprep.subr.bf16.mxu0 0
        %3382 = vmatpush1.bf16.msra.mxu0 %v3374
        %3383 = vmatprep.subr.bf16.mxu0 0
        %3384 = vmatpush1.bf16.msra.mxu0 %v3375
        %3385 = vmatprep.subr.bf16.mxu0 0
        %3386 = vmatpush1.bf16.msra.mxu0 0
        %3387 = vmatprep.subr.bf16.mxu0 0
        %3388 = vmatpush1.bf16.msra.mxu0 0
        %3389 = vmatprep.subr.bf16.mxu0 0
        %3390 = vmatpush1.bf16.msra.mxu0 0
        %3391 = vmatprep.subr.bf16.mxu0 0
        %3392 = vmatpush1.bf16.msra.mxu0 0
        %3393 = vmatprep.subr.bf16.mxu0 0
        %3394 = vmatpush1.bf16.msra.mxu0 0
        %3395 = vmatprep.subr.bf16.mxu0 0
        %3396 = vmatpush1.bf16.msra.mxu0 0
        %3397 = vmatprep.subr.bf16.mxu0 0
        %3398 = vmatpush1.bf16.msra.mxu0 0
        %3399 = vmatprep.subr.bf16.mxu0 0
        %3400 = vmatpush1.bf16.msra.mxu0 0
        %3401 = vmatprep.subr.bf16.mxu0 0
        %3402 = vmatpush1.bf16.msra.mxu0 0
        %3403 = vmatprep.subr.bf16.mxu0 0
        %3404 = vmatpush1.bf16.msra.mxu0 0
        %3405 = vmatprep.subr.bf16.mxu0 0
        %3406 = vmatpush1.bf16.msra.mxu0 0
        %3407 = vmatprep.subr.bf16.mxu0 0
        %3408 = vmatpush1.bf16.msra.mxu0 0
        %3409 = vmatprep.subr.bf16.mxu0 0
        %3410 = vmatpush1.bf16.msra.mxu0 0
        %3411 = vmatprep.subr.bf16.mxu0 0
        %3412 = vmatpush1.bf16.msra.mxu0 0
        %3413 = vmatprep.mubr.bf16.mxu0 0
        %3414 = vmatmul.mubr.bf16.gmra.mrb[0].mxu0 %v3379
        %v3415 = vpop.f32.mrb[0].mxu0
        %v3416 = vadd.f32 %v3364, %v3415
        %v3417 = vpop.f32.mrb[0].mxu0
        %v3418 = vpop.f32.mrb[0].mxu0
        %v3419 = vpop.f32.mrb[0].mxu0
        %3420 = vdwg.mxu0
        %3421 = vst.msk [vmem:[%s972] sm:$0xff] %vm995, %v3416
        %s3422 = sand.u32 %s628, 1
        %s3423 = scalar_lea.sflag [#allocation4], %s3422
        %s3424 = sand.u32 %s628, 1
        %s3425 = smul.addr %s3424, 8
        %s3426 = scalar_lea.vmem [#allocation22], %s3425
        // Predicated region
        $region177: #{_lambda_.1} parent=127 // pred_check
          %p3427 = pneg %p638
        $region178: #{_lambda_.1} parent=127 // pred_check_branch
          %3429 = sbr.rel (%p3427) target = $region180
        $region179: #{_lambda_.1} parent=127 // pred_region
          %s3431 = ssub.s32 128, 128
          %3432 = vsyncadd %s3423, %s3431
          %s3433 = smul.addr %s48, 128
          %s3434 = scalar_lea.hbm %s27, %s3433
          %s3436 = sshll.u32 %s3426, 4
          %s3437 = int_to_ptr.vmem [resolvable:$true] %s3436
          %3439 = dma.vmem_to_hbm [thread:$0]  %s3437, 128, %s3434, %s3423
        $region180: #{_lambda_.1} parent=127 // pred_fallthru
          _
      $region128: #{_lambda_.1} parent=5 // pred_fallthru
        _
      %p3440 = scmp.le.s32.totalorder 2, %s43
      // Predicated region
      $region181: #{_lambda_.1} parent=5 // pred_check
        %p3441 = pneg %p3440
      $region182: #{_lambda_.1} parent=5 // pred_check_branch
        %3443 = sbr.rel (%p3441) target = $region184
      $region183: #{_lambda_.1} parent=5 // pred_region
        %s3444 = ssub.s32 %s43, 2
        // Predicated region
        $region185: #{_lambda_.1} parent=183 // pred_check
          %p3445 = pneg %p644
        $region186: #{_lambda_.1} parent=183 // pred_check_branch
          %3447 = sbr.rel (%p3445) target = $region188
        $region187: #{_lambda_.1} parent=183 // pred_region
          %s3448 = sand.u32 %s629, 1
          %s3449 = scalar_lea.sflag [#allocation4], %s3448
          %s3450 = sand.u32 %s629, 1
          %s3451 = smul.addr %s3450, 8
          %s3452 = scalar_lea.vmem [#allocation22], %s3451
          %3453 = dma.done %s3449, 128
        $region188: #{_lambda_.1} parent=183 // pred_fallthru
          _
      $region184: #{_lambda_.1} parent=5 // pred_fallthru
        _
    $region6: #{_lambda_.1} parent=1 // loop_footer
      %s47 = sadd.s32 1, %s43
    $region7: #{_lambda_.1} parent=1 // loop_footer_branch
      %42 = sbr.rel target = $region3
    $region8: #{_lambda_.1} parent=1 // loop_exit
      _
    %3454 = vsyncpa [#allocation3], 1
    %s3455 = scalar_lea.sflag [#allocation3], 1
    %3456 = vsyncpa %s3455, 1
    %3457 = vsyncpa [#allocation6], 1
    %3458 = vsyncpa [#allocation9], 1
    %3459 = vsyncpa [#allocation12], 1
    %3460 = vsyncpa [#allocation15], 1
    %3461 = vsyncpa [#allocation18], 1
    %3462 = vsyncpa [#allocation21], 1
    %3463 = vsyncpa [#allocation4], 1
    %s3464 = scalar_lea.sflag [#allocation4], 1
    %3465 = vsyncpa %s3464, 1

</llo_original>
